<compile_context>
chip_gen: v7x
topology: tpu7x:2x2x1
jax: 0.10.0
libtpu: 0.0.40
codegen_flags: <defaults>
</compile_context>

<pallas_src>
import functools
import math

import numpy as np
import jax
import jax.numpy as jnp
from jax import lax
from jax.experimental import pallas as pl
from jax.experimental.pallas import tpu as pltpu


def rope_encoder_kernel(xd_ref, cosf_ref, sinf_ref,
                        wqk_ref, bqk_ref, wv_ref, bv_ref,
                        wo_ref, bo_ref,
                        g1_ref, be1_ref, w1_ref, b1_ref, w2_ref, b2_ref,
                        g2_ref, be2_ref,
                        out_ref, ctx_ref, *, nhead, seq_len):
    f32 = jnp.float32
    bf16 = jnp.bfloat16

    x = xd_ref[...]                       # (R, D) f32, de-interleaved [even|odd] basis
    R, D = x.shape
    S = seq_len
    BT = R // S                           # batches folded into this row tile
    hd = D // nhead

    # ---- RoPE: rotate-half via a single XLU roll (shift D//2 is direction-
    # symmetric).  In the [even|odd] basis this reproduces PyTorch's
    # cat([x1*cos - x2*sin, x1*sin + x2*cos], -1) exactly.
    x_rope = x * cosf_ref[...] + pltpu.roll(x, D // 2, axis=1) * sinf_ref[...]

    # ---- fused Q/K projection (1/sqrt(hd) pre-folded into the Q half) and V.
    qk = jnp.dot(x_rope.astype(bf16), wqk_ref[...],
                 preferred_element_type=f32) + bqk_ref[...]        # (R, 2D)
    v = jnp.dot(x.astype(bf16), wv_ref[...],
                preferred_element_type=f32) + bv_ref[...]          # (R, D)

    # ---- per-batch / per-head attention.  ctx goes into a lane-aligned bf16
    # scratch so the out-projection is a single K=D matmul after the loop.
    for b in range(BT):                   # static unroll (small BT)
        r0 = b * S
        for h in range(nhead):
            c0 = h * hd
            qh = qk[r0:r0 + S, c0:c0 + hd].astype(bf16)
            kh = qk[r0:r0 + S, D + c0:D + c0 + hd].astype(bf16)
            vh = v[r0:r0 + S, c0:c0 + hd].astype(bf16)
            # scores = qh @ kh^T (NT contraction, no explicit transpose).
            # TODO(synk): check bundle dump for a per-head vxpose once a
            # flash-style KV loop makes this the hot inner loop.
            s = lax.dot_general(qh, kh, (((1,), (1,)), ((), ())),
                                preferred_element_type=f32)        # (S, S) f32
            m = jnp.max(s, axis=-1, keepdims=True)
            p = jnp.exp(s - m)
            inv = pl.reciprocal(jnp.sum(p, axis=-1, keepdims=True), approx=True)
            ctx = jnp.dot(p.astype(bf16), vh, preferred_element_type=f32) * inv
            ctx_ref[r0:r0 + S, c0:c0 + hd] = ctx.astype(bf16)

    attn = jnp.dot(ctx_ref[...], wo_ref[...],
                   preferred_element_type=f32) + bo_ref[...]       # (R, D)

    # ---- residual + LayerNorm 1 (f32) --------------------------------------
    h1 = x + attn
    mu = jnp.mean(h1, axis=-1, keepdims=True)
    var = jnp.mean((h1 - mu) ** 2, axis=-1, keepdims=True)
    h1n = (h1 - mu) * lax.rsqrt(var + 1e-5) * g1_ref[...] + be1_ref[...]

    # ---- feed-forward (bf16 matmuls, f32 accumulation) ----------------------
    ff = jnp.dot(h1n.astype(bf16), w1_ref[...],
                 preferred_element_type=f32) + b1_ref[...]
    ff = jnp.maximum(ff, 0.0)
    ff = jnp.dot(ff.astype(bf16), w2_ref[...],
                 preferred_element_type=f32) + b2_ref[...]

    # ---- residual + LayerNorm 2 (f32) ---------------------------------------
    h2 = h1n + ff
    mu2 = jnp.mean(h2, axis=-1, keepdims=True)
    var2 = jnp.mean((h2 - mu2) ** 2, axis=-1, keepdims=True)
    out_ref[...] = (h2 - mu2) * lax.rsqrt(var2 + 1e-5) * g2_ref[...] + be2_ref[...]


def build_rope_tables(S, D):
    """cos / sin tables matching the PyTorch build_rope (glue, plain JAX)."""
    pos = jnp.arange(S, dtype=jnp.float32)[:, None]                  # (S, 1)
    freq = 1.0 / (10000.0 ** (jnp.arange(0, D, 2, dtype=jnp.float32) / D))
    ang = pos * freq                                                 # (S, D//2)
    return jnp.cos(ang), jnp.sin(ang)


def _pick_batch_tile(B, S, target_rows=256):
    """Largest divisor of B whose row tile BT*S stays <= target_rows."""
    bt = 1
    for cand in range(1, B + 1):
        if B % cand == 0 and cand * S <= max(target_rows, S):
            bt = cand
    return bt


def rope_encoder_layer(src, params, nhead):
    B, S, D = src.shape
    assert D % (2 * nhead) == 0
    f32, bf16 = jnp.float32, jnp.bfloat16
    hd = D // nhead
    scale = 1.0 / math.sqrt(hd)

    # de-interleave permutation: src_d[:, j] = src[:, perm_d[j]]
    perm_d = np.concatenate([np.arange(0, D, 2), np.arange(1, D, 2)])
    inv_perm = np.argsort(perm_d)

    BT = _pick_batch_tile(B, S)        # fold batches into matmul rows
    R = BT * S

    # ---- RoPE tables in the [even | odd] basis, tiled to the row tile -------
    cos, sin = build_rope_tables(S, D)
    cos_full = jnp.tile(jnp.concatenate([cos, cos], axis=-1), (BT, 1)).astype(f32)
    sin_signed = jnp.tile(jnp.concatenate([-sin, sin], axis=-1), (BT, 1)).astype(f32)

    # ---- single activation stream: only the de-interleaved src enters -------
    src_d = jnp.concatenate([src[..., 0::2], src[..., 1::2]], axis=-1)
    src_d = src_d.reshape(B * S, D).astype(f32)

    # ---- one-time weight repacking (plain XLA) -------------------------------
    #  * fused QK weight with 1/sqrt(hd) folded into the Q half,
    #  * everything touching the feature axis re-expressed in the de-interleaved
    #    basis (rows of Wv/W1, output cols of Wo/W2, LN gamma/beta),
    #  * all matmul weights pre-cast to bf16 for the MXU.
    wqk = jnp.concatenate([params['Wq'] * scale, params['Wk']], axis=-1).astype(bf16)
    bqk = jnp.concatenate([params['bq'] * scale, params['bk']], axis=-1).astype(f32)
    wv_d = params['Wv'][perm_d, :].astype(bf16)
    bv = params['bv'].astype(f32)
    wo_d = params['Wo'][:, perm_d].astype(bf16)
    bo_d = params['bo'][:, perm_d].astype(f32)
    g1_d = params['g1'][:, perm_d].astype(f32)
    be1_d = params['be1'][:, perm_d].astype(f32)
    w1_d = params['W1'][perm_d, :].astype(bf16)
    b1 = params['b1'].astype(f32)
    w2_d = params['W2'][:, perm_d].astype(bf16)
    b2_d = params['b2'][:, perm_d].astype(f32)
    g2_d = params['g2'][:, perm_d].astype(f32)
    be2_d = params['be2'][:, perm_d].astype(f32)

    operands = [src_d, cos_full, sin_signed,
                wqk, bqk, wv_d, bv, wo_d, bo_d,
                g1_d, be1_d, w1_d, b1, w2_d, b2_d, g2_d, be2_d]

    in_specs = [pl.BlockSpec((R, D), lambda i: (i, 0)),     # activations: row tile
                pl.BlockSpec((R, D), lambda i: (0, 0)),     # cos table
                pl.BlockSpec((R, D), lambda i: (0, 0))]     # signed sin table
    for a in operands[3:]:                                  # weights / biases
        nd = a.ndim
        in_specs.append(pl.BlockSpec(a.shape, lambda i, nd=nd: (0,) * nd))

    kernel = functools.partial(rope_encoder_kernel, nhead=nhead, seq_len=S)
    out_flat = pl.pallas_call(
        kernel,
        out_shape=jax.ShapeDtypeStruct((B * S, D), f32),
        grid=(B // BT,),
        in_specs=in_specs,
        out_specs=pl.BlockSpec((R, D), lambda i: (i, 0)),
        scratch_shapes=[pltpu.VMEM((R, D), bf16)],          # per-head ctx slab
        compiler_params=pltpu.CompilerParams(
            dimension_semantics=("parallel",),
            vmem_limit_bytes=32 * 1024 * 1024),
    )(*operands)

    # back to the original interleaved feature order (cheap XLA gather)
    return jnp.take(out_flat.reshape(B, S, D), inv_perm, axis=-1)


# ---------------------------- pure-JAX reference ----------------------------
def ref_forward(src, p, nhead):
    B, S, D = src.shape
    cos, sin = build_rope_tables(S, D)
    cos, sin = cos[None], sin[None]
    x1, x2 = src[..., 0::2], src[..., 1::2]
    xr = jnp.concatenate([x1 * cos - x2 * sin, x1 * sin + x2 * cos], axis=-1)

    q = xr @ p['Wq'] + p['bq']
    k = xr @ p['Wk'] + p['bk']
    v = src @ p['Wv'] + p['bv']
    hd = D // nhead
    qh = q.reshape(B, S, nhead, hd).transpose(0, 2, 1, 3)
    kh = k.reshape(B, S, nhead, hd).transpose(0, 2, 1, 3)
    vh = v.reshape(B, S, nhead, hd).transpose(0, 2, 1, 3)
    s = (qh @ kh.transpose(0, 1, 3, 2)) / jnp.sqrt(jnp.float32(hd))
    a = jax.nn.softmax(s, axis=-1)
    ctx = (a @ vh).transpose(0, 2, 1, 3).reshape(B, S, D)
    attn = ctx @ p['Wo'] + p['bo']

    def ln(x, g, b):
        mu = x.mean(-1, keepdims=True)
        var = ((x - mu) ** 2).mean(-1, keepdims=True)
        return (x - mu) / jnp.sqrt(var + 1e-5) * g + b

    h1 = ln(src + attn, p['g1'], p['be1'])
    ff = jnp.maximum(h1 @ p['W1'] + p['b1'], 0.0) @ p['W2'] + p['b2']
    return ln(h1 + ff, p['g2'], p['be2'])


def init_params(key, D):
    ks = jax.random.split(key, 8)
    f = lambda k, shape: (jax.random.normal(k, shape, jnp.float32) * 0.05)
    return {
        'Wq': f(ks[0], (D, D)),      'bq': f(ks[1], (1, D)),
        'Wk': f(ks[2], (D, D)),      'bk': jnp.zeros((1, D), jnp.float32),
        'Wv': f(ks[3], (D, D)),      'bv': jnp.zeros((1, D), jnp.float32),
        'Wo': f(ks[4], (D, D)),      'bo': jnp.zeros((1, D), jnp.float32),
        'W1': f(ks[5], (D, 4 * D)),  'b1': jnp.zeros((1, 4 * D), jnp.float32),
        'W2': f(ks[6], (4 * D, D)),  'b2': jnp.zeros((1, D), jnp.float32),
        'g1': jnp.ones((1, D), jnp.float32),  'be1': jnp.zeros((1, D), jnp.float32),
        'g2': jnp.ones((1, D), jnp.float32),  'be2': jnp.zeros((1, D), jnp.float32),
    }
    # TODO(synk): dropout layers are identity here (inference/eval semantics).


if __name__ == "__main__":
    # Lane-dense toy config: D multiple of 128, head_dim = 128, S sublane-aligned.
    B, S, D, NHEAD = 2, 8, 256, 2
    key = jax.random.PRNGKey(0)
    k_src, k_par = jax.random.split(key)
    src = jax.random.normal(k_src, (B, S, D), jnp.float32)
    params = init_params(k_par, D)

    out = rope_encoder_layer(src, params, NHEAD)
    out = jax.block_until_ready(out)

    ref = ref_forward(src, params, NHEAD)
    assert out.shape == (B, S, D)
    err = float(jnp.max(jnp.abs(out - ref)))
    assert jnp.allclose(out, ref, atol=5e-2, rtol=5e-2), err
    print("KERNEL_OK")
</pallas_src>

<mosaic_0001>
module attributes {stable_mosaic.version = 11 : i64} {
  func.func @rope_encoder_kernel(%arg0: i32, %arg1: memref<16x256xf32, #tpu.memory_space<vmem>>, %arg2: memref<16x256xf32, #tpu.memory_space<vmem>>, %arg3: memref<16x256xf32, #tpu.memory_space<vmem>>, %arg4: memref<256x512xbf16, #tpu.memory_space<vmem>>, %arg5: memref<1x512xf32, #tpu.memory_space<vmem>>, %arg6: memref<256x256xbf16, #tpu.memory_space<vmem>>, %arg7: memref<1x256xf32, #tpu.memory_space<vmem>>, %arg8: memref<256x256xbf16, #tpu.memory_space<vmem>>, %arg9: memref<1x256xf32, #tpu.memory_space<vmem>>, %arg10: memref<1x256xf32, #tpu.memory_space<vmem>>, %arg11: memref<1x256xf32, #tpu.memory_space<vmem>>, %arg12: memref<256x1024xbf16, #tpu.memory_space<vmem>>, %arg13: memref<1x1024xf32, #tpu.memory_space<vmem>>, %arg14: memref<1024x256xbf16, #tpu.memory_space<vmem>>, %arg15: memref<1x256xf32, #tpu.memory_space<vmem>>, %arg16: memref<1x256xf32, #tpu.memory_space<vmem>>, %arg17: memref<1x256xf32, #tpu.memory_space<vmem>>, %arg18: memref<16x256xf32, #tpu.memory_space<vmem>>, %arg19: memref<16x256xbf16, #tpu.memory_space<vmem>>) attributes {dimension_semantics = [#tpu.dimension_semantics<parallel>], iteration_bounds = array<i64: 1>, scalar_prefetch = 0 : i64, scratch_operands = 1 : i64, tpu.core_type = #tpu.core_type<tc>, window_params = [{transform_indices = @transform_0, window_bounds = array<i64: 16, 256>}, {pipeline_mode = #tpu.pipeline_mode<synchronous>, transform_indices = @transform_1, window_bounds = array<i64: 16, 256>}, {pipeline_mode = #tpu.pipeline_mode<synchronous>, transform_indices = @transform_2, window_bounds = array<i64: 16, 256>}, {pipeline_mode = #tpu.pipeline_mode<synchronous>, transform_indices = @transform_3, window_bounds = array<i64: 256, 512>}, {pipeline_mode = #tpu.pipeline_mode<synchronous>, transform_indices = @transform_4, window_bounds = array<i64: 1, 512>}, {pipeline_mode = #tpu.pipeline_mode<synchronous>, transform_indices = @transform_5, window_bounds = array<i64: 256, 256>}, {pipeline_mode = #tpu.pipeline_mode<synchronous>, transform_indices = @transform_6, window_bounds = array<i64: 1, 256>}, {pipeline_mode = #tpu.pipeline_mode<synchronous>, transform_indices = @transform_7, window_bounds = array<i64: 256, 256>}, {pipeline_mode = #tpu.pipeline_mode<synchronous>, transform_indices = @transform_8, window_bounds = array<i64: 1, 256>}, {pipeline_mode = #tpu.pipeline_mode<synchronous>, transform_indices = @transform_9, window_bounds = array<i64: 1, 256>}, {pipeline_mode = #tpu.pipeline_mode<synchronous>, transform_indices = @transform_10, window_bounds = array<i64: 1, 256>}, {pipeline_mode = #tpu.pipeline_mode<synchronous>, transform_indices = @transform_11, window_bounds = array<i64: 256, 1024>}, {pipeline_mode = #tpu.pipeline_mode<synchronous>, transform_indices = @transform_12, window_bounds = array<i64: 1, 1024>}, {pipeline_mode = #tpu.pipeline_mode<synchronous>, transform_indices = @transform_13, window_bounds = array<i64: 1024, 256>}, {pipeline_mode = #tpu.pipeline_mode<synchronous>, transform_indices = @transform_14, window_bounds = array<i64: 1, 256>}, {pipeline_mode = #tpu.pipeline_mode<synchronous>, transform_indices = @transform_15, window_bounds = array<i64: 1, 256>}, {pipeline_mode = #tpu.pipeline_mode<synchronous>, transform_indices = @transform_16, window_bounds = array<i64: 1, 256>}, {transform_indices = @transform_17, window_bounds = array<i64: 16, 256>}]} {
    %c0 = arith.constant 0 : index
    %c0_0 = arith.constant 0 : index
    %0 = vector.load %arg1[%c0, %c0_0] : memref<16x256xf32, #tpu.memory_space<vmem>>, vector<16x256xf32>
    %c0_1 = arith.constant 0 : index
    %c0_2 = arith.constant 0 : index
    %1 = vector.load %arg2[%c0_1, %c0_2] : memref<16x256xf32, #tpu.memory_space<vmem>>, vector<16x256xf32>
    %2 = arith.mulf %0, %1 : vector<16x256xf32>
    %c128_i32 = arith.constant 128 : i32
    %3 = tpu.dynamic_rotate %0 by %c128_i32 dim 1 : vector<16x256xf32>, i32 -> vector<16x256xf32>
    %c0_3 = arith.constant 0 : index
    %c0_4 = arith.constant 0 : index
    %4 = vector.load %arg3[%c0_3, %c0_4] : memref<16x256xf32, #tpu.memory_space<vmem>>, vector<16x256xf32>
    %5 = arith.mulf %3, %4 : vector<16x256xf32>
    %6 = arith.addf %2, %5 : vector<16x256xf32>
    %7 = arith.truncf %6 : vector<16x256xf32> to vector<16x256xbf16>
    %c0_5 = arith.constant 0 : index
    %c0_6 = arith.constant 0 : index
    %8 = vector.load %arg4[%c0_5, %c0_6] : memref<256x512xbf16, #tpu.memory_space<vmem>>, vector<256x512xbf16>
    %cst = arith.constant dense<0.000000e+00> : vector<16x512xf32>
    %9 = tpu.matmul %7, %8, %cst {dimension_numbers = #tpu.dot_dimension_numbers<[1], [0], [0], [1], [0, 0, 1, 1], [], []>} : vector<16x256xbf16>, vector<256x512xbf16>, vector<16x512xf32> -> vector<16x512xf32>
    %c0_7 = arith.constant 0 : index
    %c0_8 = arith.constant 0 : index
    %10 = vector.load %arg5[%c0_7, %c0_8] : memref<1x512xf32, #tpu.memory_space<vmem>>, vector<1x512xf32>
    %11 = vector.broadcast %10 : vector<1x512xf32> to vector<16x512xf32>
    %12 = arith.addf %9, %11 : vector<16x512xf32>
    %13 = arith.truncf %0 : vector<16x256xf32> to vector<16x256xbf16>
    %c0_9 = arith.constant 0 : index
    %c0_10 = arith.constant 0 : index
    %14 = vector.load %arg6[%c0_9, %c0_10] : memref<256x256xbf16, #tpu.memory_space<vmem>>, vector<256x256xbf16>
    %cst_11 = arith.constant dense<0.000000e+00> : vector<16x256xf32>
    %15 = tpu.matmul %13, %14, %cst_11 {dimension_numbers = #tpu.dot_dimension_numbers<[1], [0], [0], [1], [0, 0, 1, 1], [], []>} : vector<16x256xbf16>, vector<256x256xbf16>, vector<16x256xf32> -> vector<16x256xf32>
    %c0_12 = arith.constant 0 : index
    %c0_13 = arith.constant 0 : index
    %16 = vector.load %arg7[%c0_12, %c0_13] : memref<1x256xf32, #tpu.memory_space<vmem>>, vector<1x256xf32>
    %17 = vector.broadcast %16 : vector<1x256xf32> to vector<16x256xf32>
    %18 = arith.addf %15, %17 : vector<16x256xf32>
    %19 = vector.extract_strided_slice %12 {offsets = [0, 0], sizes = [8, 128], strides = [1, 1]} : vector<16x512xf32> to vector<8x128xf32>
    %20 = arith.truncf %19 : vector<8x128xf32> to vector<8x128xbf16>
    %21 = vector.extract_strided_slice %12 {offsets = [0, 256], sizes = [8, 128], strides = [1, 1]} : vector<16x512xf32> to vector<8x128xf32>
    %22 = arith.truncf %21 : vector<8x128xf32> to vector<8x128xbf16>
    %23 = vector.extract_strided_slice %18 {offsets = [0, 0], sizes = [8, 128], strides = [1, 1]} : vector<16x256xf32> to vector<8x128xf32>
    %24 = arith.truncf %23 : vector<8x128xf32> to vector<8x128xbf16>
    %cst_14 = arith.constant dense<0.000000e+00> : vector<8x8xf32>
    %25 = tpu.matmul %20, %22, %cst_14 {dimension_numbers = #tpu.dot_dimension_numbers<[1], [1], [0], [0], [0, 0, 1, 0], [], []>} : vector<8x128xbf16>, vector<8x128xbf16>, vector<8x8xf32> -> vector<8x8xf32>
    %cst_15 = arith.constant dense<0xFF800000> : vector<8xf32>
    %26 = vector.multi_reduction <maximumf>, %25, %cst_15 [1] : vector<8x8xf32> to vector<8xf32>
    %27 = vector.shape_cast %26 : vector<8xf32> to vector<8x1xf32>
    %28 = vector.broadcast %27 : vector<8x1xf32> to vector<8x8xf32>
    %29 = arith.subf %25, %28 : vector<8x8xf32>
    %30 = math.exp %29 : vector<8x8xf32>
    %cst_16 = arith.constant dense<0.000000e+00> : vector<8xf32>
    %31 = vector.multi_reduction <add>, %30, %cst_16 [1] : vector<8x8xf32> to vector<8xf32>
    %32 = vector.shape_cast %31 : vector<8xf32> to vector<8x1xf32>
    %33 = tpu.reciprocal %32 {approx = true} : vector<8x1xf32> -> vector<8x1xf32>
    %34 = arith.truncf %30 : vector<8x8xf32> to vector<8x8xbf16>
    %cst_17 = arith.constant dense<0.000000e+00> : vector<8x128xf32>
    %35 = tpu.matmul %34, %24, %cst_17 {dimension_numbers = #tpu.dot_dimension_numbers<[1], [0], [0], [1], [0, 0, 1, 1], [], []>} : vector<8x8xbf16>, vector<8x128xbf16>, vector<8x128xf32> -> vector<8x128xf32>
    %36 = vector.broadcast %33 : vector<8x1xf32> to vector<8x128xf32>
    %37 = arith.mulf %35, %36 : vector<8x128xf32>
    %38 = arith.truncf %37 : vector<8x128xf32> to vector<8x128xbf16>
    %c0_18 = arith.constant 0 : index
    %c0_19 = arith.constant 0 : index
    %39 = vector.load %arg19[%c0_18, %c0_19] : memref<16x256xbf16, #tpu.memory_space<vmem>>, vector<8x128xbf16>
    tpu.vector_store %arg19[%c0_18, %c0_19], %38 {strides = array<i32>} : memref<16x256xbf16, #tpu.memory_space<vmem>>, vector<8x128xbf16>,
    %40 = vector.extract_strided_slice %12 {offsets = [0, 128], sizes = [8, 128], strides = [1, 1]} : vector<16x512xf32> to vector<8x128xf32>
    %41 = arith.truncf %40 : vector<8x128xf32> to vector<8x128xbf16>
    %42 = vector.extract_strided_slice %12 {offsets = [0, 384], sizes = [8, 128], strides = [1, 1]} : vector<16x512xf32> to vector<8x128xf32>
    %43 = arith.truncf %42 : vector<8x128xf32> to vector<8x128xbf16>
    %44 = vector.extract_strided_slice %18 {offsets = [0, 128], sizes = [8, 128], strides = [1, 1]} : vector<16x256xf32> to vector<8x128xf32>
    %45 = arith.truncf %44 : vector<8x128xf32> to vector<8x128xbf16>
    %cst_20 = arith.constant dense<0.000000e+00> : vector<8x8xf32>
    %46 = tpu.matmul %41, %43, %cst_20 {dimension_numbers = #tpu.dot_dimension_numbers<[1], [1], [0], [0], [0, 0, 1, 0], [], []>} : vector<8x128xbf16>, vector<8x128xbf16>, vector<8x8xf32> -> vector<8x8xf32>
    %cst_21 = arith.constant dense<0xFF800000> : vector<8xf32>
    %47 = vector.multi_reduction <maximumf>, %46, %cst_21 [1] : vector<8x8xf32> to vector<8xf32>
    %48 = vector.shape_cast %47 : vector<8xf32> to vector<8x1xf32>
    %49 = vector.broadcast %48 : vector<8x1xf32> to vector<8x8xf32>
    %50 = arith.subf %46, %49 : vector<8x8xf32>
    %51 = math.exp %50 : vector<8x8xf32>
    %cst_22 = arith.constant dense<0.000000e+00> : vector<8xf32>
    %52 = vector.multi_reduction <add>, %51, %cst_22 [1] : vector<8x8xf32> to vector<8xf32>
    %53 = vector.shape_cast %52 : vector<8xf32> to vector<8x1xf32>
    %54 = tpu.reciprocal %53 {approx = true} : vector<8x1xf32> -> vector<8x1xf32>
    %55 = arith.truncf %51 : vector<8x8xf32> to vector<8x8xbf16>
    %cst_23 = arith.constant dense<0.000000e+00> : vector<8x128xf32>
    %56 = tpu.matmul %55, %45, %cst_23 {dimension_numbers = #tpu.dot_dimension_numbers<[1], [0], [0], [1], [0, 0, 1, 1], [], []>} : vector<8x8xbf16>, vector<8x128xbf16>, vector<8x128xf32> -> vector<8x128xf32>
    %57 = vector.broadcast %54 : vector<8x1xf32> to vector<8x128xf32>
    %58 = arith.mulf %56, %57 : vector<8x128xf32>
    %59 = arith.truncf %58 : vector<8x128xf32> to vector<8x128xbf16>
    %c0_24 = arith.constant 0 : index
    %c128 = arith.constant 128 : index
    %60 = vector.load %arg19[%c0_24, %c128] : memref<16x256xbf16, #tpu.memory_space<vmem>>, vector<8x128xbf16>
    tpu.vector_store %arg19[%c0_24, %c128], %59 {strides = array<i32>} : memref<16x256xbf16, #tpu.memory_space<vmem>>, vector<8x128xbf16>,
    %61 = vector.extract_strided_slice %12 {offsets = [8, 0], sizes = [8, 128], strides = [1, 1]} : vector<16x512xf32> to vector<8x128xf32>
    %62 = arith.truncf %61 : vector<8x128xf32> to vector<8x128xbf16>
    %63 = vector.extract_strided_slice %12 {offsets = [8, 256], sizes = [8, 128], strides = [1, 1]} : vector<16x512xf32> to vector<8x128xf32>
    %64 = arith.truncf %63 : vector<8x128xf32> to vector<8x128xbf16>
    %65 = vector.extract_strided_slice %18 {offsets = [8, 0], sizes = [8, 128], strides = [1, 1]} : vector<16x256xf32> to vector<8x128xf32>
    %66 = arith.truncf %65 : vector<8x128xf32> to vector<8x128xbf16>
    %cst_25 = arith.constant dense<0.000000e+00> : vector<8x8xf32>
    %67 = tpu.matmul %62, %64, %cst_25 {dimension_numbers = #tpu.dot_dimension_numbers<[1], [1], [0], [0], [0, 0, 1, 0], [], []>} : vector<8x128xbf16>, vector<8x128xbf16>, vector<8x8xf32> -> vector<8x8xf32>
    %cst_26 = arith.constant dense<0xFF800000> : vector<8xf32>
    %68 = vector.multi_reduction <maximumf>, %67, %cst_26 [1] : vector<8x8xf32> to vector<8xf32>
    %69 = vector.shape_cast %68 : vector<8xf32> to vector<8x1xf32>
    %70 = vector.broadcast %69 : vector<8x1xf32> to vector<8x8xf32>
    %71 = arith.subf %67, %70 : vector<8x8xf32>
    %72 = math.exp %71 : vector<8x8xf32>
    %cst_27 = arith.constant dense<0.000000e+00> : vector<8xf32>
    %73 = vector.multi_reduction <add>, %72, %cst_27 [1] : vector<8x8xf32> to vector<8xf32>
    %74 = vector.shape_cast %73 : vector<8xf32> to vector<8x1xf32>
    %75 = tpu.reciprocal %74 {approx = true} : vector<8x1xf32> -> vector<8x1xf32>
    %76 = arith.truncf %72 : vector<8x8xf32> to vector<8x8xbf16>
    %cst_28 = arith.constant dense<0.000000e+00> : vector<8x128xf32>
    %77 = tpu.matmul %76, %66, %cst_28 {dimension_numbers = #tpu.dot_dimension_numbers<[1], [0], [0], [1], [0, 0, 1, 1], [], []>} : vector<8x8xbf16>, vector<8x128xbf16>, vector<8x128xf32> -> vector<8x128xf32>
    %78 = vector.broadcast %75 : vector<8x1xf32> to vector<8x128xf32>
    %79 = arith.mulf %77, %78 : vector<8x128xf32>
    %80 = arith.truncf %79 : vector<8x128xf32> to vector<8x128xbf16>
    %c8 = arith.constant 8 : index
    %c0_29 = arith.constant 0 : index
    %81 = vector.load %arg19[%c8, %c0_29] : memref<16x256xbf16, #tpu.memory_space<vmem>>, vector<8x128xbf16>
    tpu.vector_store %arg19[%c8, %c0_29], %80 {strides = array<i32>} : memref<16x256xbf16, #tpu.memory_space<vmem>>, vector<8x128xbf16>,
    %82 = vector.extract_strided_slice %12 {offsets = [8, 128], sizes = [8, 128], strides = [1, 1]} : vector<16x512xf32> to vector<8x128xf32>
    %83 = arith.truncf %82 : vector<8x128xf32> to vector<8x128xbf16>
    %84 = vector.extract_strided_slice %12 {offsets = [8, 384], sizes = [8, 128], strides = [1, 1]} : vector<16x512xf32> to vector<8x128xf32>
    %85 = arith.truncf %84 : vector<8x128xf32> to vector<8x128xbf16>
    %86 = vector.extract_strided_slice %18 {offsets = [8, 128], sizes = [8, 128], strides = [1, 1]} : vector<16x256xf32> to vector<8x128xf32>
    %87 = arith.truncf %86 : vector<8x128xf32> to vector<8x128xbf16>
    %cst_30 = arith.constant dense<0.000000e+00> : vector<8x8xf32>
    %88 = tpu.matmul %83, %85, %cst_30 {dimension_numbers = #tpu.dot_dimension_numbers<[1], [1], [0], [0], [0, 0, 1, 0], [], []>} : vector<8x128xbf16>, vector<8x128xbf16>, vector<8x8xf32> -> vector<8x8xf32>
    %cst_31 = arith.constant dense<0xFF800000> : vector<8xf32>
    %89 = vector.multi_reduction <maximumf>, %88, %cst_31 [1] : vector<8x8xf32> to vector<8xf32>
    %90 = vector.shape_cast %89 : vector<8xf32> to vector<8x1xf32>
    %91 = vector.broadcast %90 : vector<8x1xf32> to vector<8x8xf32>
    %92 = arith.subf %88, %91 : vector<8x8xf32>
    %93 = math.exp %92 : vector<8x8xf32>
    %cst_32 = arith.constant dense<0.000000e+00> : vector<8xf32>
    %94 = vector.multi_reduction <add>, %93, %cst_32 [1] : vector<8x8xf32> to vector<8xf32>
    %95 = vector.shape_cast %94 : vector<8xf32> to vector<8x1xf32>
    %96 = tpu.reciprocal %95 {approx = true} : vector<8x1xf32> -> vector<8x1xf32>
    %97 = arith.truncf %93 : vector<8x8xf32> to vector<8x8xbf16>
    %cst_33 = arith.constant dense<0.000000e+00> : vector<8x128xf32>
    %98 = tpu.matmul %97, %87, %cst_33 {dimension_numbers = #tpu.dot_dimension_numbers<[1], [0], [0], [1], [0, 0, 1, 1], [], []>} : vector<8x8xbf16>, vector<8x128xbf16>, vector<8x128xf32> -> vector<8x128xf32>
    %99 = vector.broadcast %96 : vector<8x1xf32> to vector<8x128xf32>
    %100 = arith.mulf %98, %99 : vector<8x128xf32>
    %101 = arith.truncf %100 : vector<8x128xf32> to vector<8x128xbf16>
    %c8_34 = arith.constant 8 : index
    %c128_35 = arith.constant 128 : index
    %102 = vector.load %arg19[%c8_34, %c128_35] : memref<16x256xbf16, #tpu.memory_space<vmem>>, vector<8x128xbf16>
    tpu.vector_store %arg19[%c8_34, %c128_35], %101 {strides = array<i32>} : memref<16x256xbf16, #tpu.memory_space<vmem>>, vector<8x128xbf16>,
    %c0_36 = arith.constant 0 : index
    %c0_37 = arith.constant 0 : index
    %103 = vector.load %arg19[%c0_36, %c0_37] : memref<16x256xbf16, #tpu.memory_space<vmem>>, vector<16x256xbf16>
    %c0_38 = arith.constant 0 : index
    %c0_39 = arith.constant 0 : index
    %104 = vector.load %arg8[%c0_38, %c0_39] : memref<256x256xbf16, #tpu.memory_space<vmem>>, vector<256x256xbf16>
    %cst_40 = arith.constant dense<0.000000e+00> : vector<16x256xf32>
    %105 = tpu.matmul %103, %104, %cst_40 {dimension_numbers = #tpu.dot_dimension_numbers<[1], [0], [0], [1], [0, 0, 1, 1], [], []>} : vector<16x256xbf16>, vector<256x256xbf16>, vector<16x256xf32> -> vector<16x256xf32>
    %c0_41 = arith.constant 0 : index
    %c0_42 = arith.constant 0 : index
    %106 = vector.load %arg9[%c0_41, %c0_42] : memref<1x256xf32, #tpu.memory_space<vmem>>, vector<1x256xf32>
    %107 = vector.broadcast %106 : vector<1x256xf32> to vector<16x256xf32>
    %108 = arith.addf %105, %107 : vector<16x256xf32>
    %109 = arith.addf %0, %108 : vector<16x256xf32>
    %cst_43 = arith.constant dense<0.000000e+00> : vector<16xf32>
    %110 = vector.multi_reduction <add>, %109, %cst_43 [1] : vector<16x256xf32> to vector<16xf32>
    %111 = vector.shape_cast %110 : vector<16xf32> to vector<16x1xf32>
    %cst_44 = arith.constant 2.560000e+02 : f32
    %112 = vector.broadcast %cst_44 : f32 to vector<16x1xf32>
    %113 = arith.divf %111, %112 : vector<16x1xf32>
    %114 = vector.broadcast %113 : vector<16x1xf32> to vector<16x256xf32>
    %115 = arith.subf %109, %114 : vector<16x256xf32>
    %116 = arith.mulf %115, %115 : vector<16x256xf32>
    %cst_45 = arith.constant dense<0.000000e+00> : vector<16xf32>
    %117 = vector.multi_reduction <add>, %116, %cst_45 [1] : vector<16x256xf32> to vector<16xf32>
    %118 = vector.shape_cast %117 : vector<16xf32> to vector<16x1xf32>
    %cst_46 = arith.constant 2.560000e+02 : f32
    %119 = vector.broadcast %cst_46 : f32 to vector<16x1xf32>
    %120 = arith.divf %118, %119 : vector<16x1xf32>
    %121 = vector.broadcast %113 : vector<16x1xf32> to vector<16x256xf32>
    %122 = arith.subf %109, %121 : vector<16x256xf32>
    %cst_47 = arith.constant 9.99999974E-6 : f32
    %123 = vector.broadcast %cst_47 : f32 to vector<16x1xf32>
    %124 = arith.addf %120, %123 : vector<16x1xf32>
    %125 = math.rsqrt %124 : vector<16x1xf32>
    %126 = vector.broadcast %125 : vector<16x1xf32> to vector<16x256xf32>
    %127 = arith.mulf %122, %126 : vector<16x256xf32>
    %c0_48 = arith.constant 0 : index
    %c0_49 = arith.constant 0 : index
    %128 = vector.load %arg10[%c0_48, %c0_49] : memref<1x256xf32, #tpu.memory_space<vmem>>, vector<1x256xf32>
    %129 = vector.broadcast %128 : vector<1x256xf32> to vector<16x256xf32>
    %130 = arith.mulf %127, %129 : vector<16x256xf32>
    %c0_50 = arith.constant 0 : index
    %c0_51 = arith.constant 0 : index
    %131 = vector.load %arg11[%c0_50, %c0_51] : memref<1x256xf32, #tpu.memory_space<vmem>>, vector<1x256xf32>
    %132 = vector.broadcast %131 : vector<1x256xf32> to vector<16x256xf32>
    %133 = arith.addf %130, %132 : vector<16x256xf32>
    %134 = arith.truncf %133 : vector<16x256xf32> to vector<16x256xbf16>
    %c0_52 = arith.constant 0 : index
    %c0_53 = arith.constant 0 : index
    %135 = vector.load %arg12[%c0_52, %c0_53] : memref<256x1024xbf16, #tpu.memory_space<vmem>>, vector<256x1024xbf16>
    %cst_54 = arith.constant dense<0.000000e+00> : vector<16x1024xf32>
    %136 = tpu.matmul %134, %135, %cst_54 {dimension_numbers = #tpu.dot_dimension_numbers<[1], [0], [0], [1], [0, 0, 1, 1], [], []>} : vector<16x256xbf16>, vector<256x1024xbf16>, vector<16x1024xf32> -> vector<16x1024xf32>
    %c0_55 = arith.constant 0 : index
    %c0_56 = arith.constant 0 : index
    %137 = vector.load %arg13[%c0_55, %c0_56] : memref<1x1024xf32, #tpu.memory_space<vmem>>, vector<1x1024xf32>
    %138 = vector.broadcast %137 : vector<1x1024xf32> to vector<16x1024xf32>
    %139 = arith.addf %136, %138 : vector<16x1024xf32>
    %cst_57 = arith.constant 0.000000e+00 : f32
    %140 = vector.broadcast %cst_57 : f32 to vector<16x1024xf32>
    %141 = arith.maximumf %139, %140 : vector<16x1024xf32>
    %142 = arith.truncf %141 : vector<16x1024xf32> to vector<16x1024xbf16>
    %c0_58 = arith.constant 0 : index
    %c0_59 = arith.constant 0 : index
    %143 = vector.load %arg14[%c0_58, %c0_59] : memref<1024x256xbf16, #tpu.memory_space<vmem>>, vector<1024x256xbf16>
    %cst_60 = arith.constant dense<0.000000e+00> : vector<16x256xf32>
    %144 = tpu.matmul %142, %143, %cst_60 {dimension_numbers = #tpu.dot_dimension_numbers<[1], [0], [0], [1], [0, 0, 1, 1], [], []>} : vector<16x1024xbf16>, vector<1024x256xbf16>, vector<16x256xf32> -> vector<16x256xf32>
    %c0_61 = arith.constant 0 : index
    %c0_62 = arith.constant 0 : index
    %145 = vector.load %arg15[%c0_61, %c0_62] : memref<1x256xf32, #tpu.memory_space<vmem>>, vector<1x256xf32>
    %146 = vector.broadcast %145 : vector<1x256xf32> to vector<16x256xf32>
    %147 = arith.addf %144, %146 : vector<16x256xf32>
    %148 = arith.addf %133, %147 : vector<16x256xf32>
    %cst_63 = arith.constant dense<0.000000e+00> : vector<16xf32>
    %149 = vector.multi_reduction <add>, %148, %cst_63 [1] : vector<16x256xf32> to vector<16xf32>
    %150 = vector.shape_cast %149 : vector<16xf32> to vector<16x1xf32>
    %cst_64 = arith.constant 2.560000e+02 : f32
    %151 = vector.broadcast %cst_64 : f32 to vector<16x1xf32>
    %152 = arith.divf %150, %151 : vector<16x1xf32>
    %153 = vector.broadcast %152 : vector<16x1xf32> to vector<16x256xf32>
    %154 = arith.subf %148, %153 : vector<16x256xf32>
    %155 = arith.mulf %154, %154 : vector<16x256xf32>
    %cst_65 = arith.constant dense<0.000000e+00> : vector<16xf32>
    %156 = vector.multi_reduction <add>, %155, %cst_65 [1] : vector<16x256xf32> to vector<16xf32>
    %157 = vector.shape_cast %156 : vector<16xf32> to vector<16x1xf32>
    %cst_66 = arith.constant 2.560000e+02 : f32
    %158 = vector.broadcast %cst_66 : f32 to vector<16x1xf32>
    %159 = arith.divf %157, %158 : vector<16x1xf32>
    %160 = vector.broadcast %152 : vector<16x1xf32> to vector<16x256xf32>
    %161 = arith.subf %148, %160 : vector<16x256xf32>
    %cst_67 = arith.constant 9.99999974E-6 : f32
    %162 = vector.broadcast %cst_67 : f32 to vector<16x1xf32>
    %163 = arith.addf %159, %162 : vector<16x1xf32>
    %164 = math.rsqrt %163 : vector<16x1xf32>
    %165 = vector.broadcast %164 : vector<16x1xf32> to vector<16x256xf32>
    %166 = arith.mulf %161, %165 : vector<16x256xf32>
    %c0_68 = arith.constant 0 : index
    %c0_69 = arith.constant 0 : index
    %167 = vector.load %arg16[%c0_68, %c0_69] : memref<1x256xf32, #tpu.memory_space<vmem>>, vector<1x256xf32>
    %168 = vector.broadcast %167 : vector<1x256xf32> to vector<16x256xf32>
    %169 = arith.mulf %166, %168 : vector<16x256xf32>
    %c0_70 = arith.constant 0 : index
    %c0_71 = arith.constant 0 : index
    %170 = vector.load %arg17[%c0_70, %c0_71] : memref<1x256xf32, #tpu.memory_space<vmem>>, vector<1x256xf32>
    %171 = vector.broadcast %170 : vector<1x256xf32> to vector<16x256xf32>
    %172 = arith.addf %169, %171 : vector<16x256xf32>
    %c0_72 = arith.constant 0 : index
    %c0_73 = arith.constant 0 : index
    %173 = vector.load %arg18[%c0_72, %c0_73] : memref<16x256xf32, #tpu.memory_space<vmem>>, vector<16x256xf32>
    tpu.vector_store %arg18[%c0_72, %c0_73], %172 {strides = array<i32>} : memref<16x256xf32, #tpu.memory_space<vmem>>, vector<16x256xf32>,
    return
  }
  func.func @transform_0(%arg0: i32) -> (i32, i32) {
    %c0_i32 = arith.constant 0 : i32
    %c0_i32_0 = arith.constant 0 : i32
    return %arg0, %c0_i32 : i32, i32
  }
  func.func @transform_1(%arg0: i32) -> (i32, i32) {
    %c0_i32 = arith.constant 0 : i32
    %c0_i32_0 = arith.constant 0 : i32
    %c0_i32_1 = arith.constant 0 : i32
    return %c0_i32, %c0_i32_0 : i32, i32
  }
  func.func @transform_2(%arg0: i32) -> (i32, i32) {
    %c0_i32 = arith.constant 0 : i32
    %c0_i32_0 = arith.constant 0 : i32
    %c0_i32_1 = arith.constant 0 : i32
    return %c0_i32, %c0_i32_0 : i32, i32
  }
  func.func @transform_3(%arg0: i32) -> (i32, i32) {
    %c0_i32 = arith.constant 0 : i32
    %c0_i32_0 = arith.constant 0 : i32
    %c0_i32_1 = arith.constant 0 : i32
    return %c0_i32, %c0_i32_0 : i32, i32
  }
  func.func @transform_4(%arg0: i32) -> (i32, i32) {
    %c0_i32 = arith.constant 0 : i32
    %c0_i32_0 = arith.constant 0 : i32
    %c0_i32_1 = arith.constant 0 : i32
    return %c0_i32, %c0_i32_0 : i32, i32
  }
  func.func @transform_5(%arg0: i32) -> (i32, i32) {
    %c0_i32 = arith.constant 0 : i32
    %c0_i32_0 = arith.constant 0 : i32
    %c0_i32_1 = arith.constant 0 : i32
    return %c0_i32, %c0_i32_0 : i32, i32
  }
  func.func @transform_6(%arg0: i32) -> (i32, i32) {
    %c0_i32 = arith.constant 0 : i32
    %c0_i32_0 = arith.constant 0 : i32
    %c0_i32_1 = arith.constant 0 : i32
    return %c0_i32, %c0_i32_0 : i32, i32
  }
  func.func @transform_7(%arg0: i32) -> (i32, i32) {
    %c0_i32 = arith.constant 0 : i32
    %c0_i32_0 = arith.constant 0 : i32
    %c0_i32_1 = arith.constant 0 : i32
    return %c0_i32, %c0_i32_0 : i32, i32
  }
  func.func @transform_8(%arg0: i32) -> (i32, i32) {
    %c0_i32 = arith.constant 0 : i32
    %c0_i32_0 = arith.constant 0 : i32
    %c0_i32_1 = arith.constant 0 : i32
    return %c0_i32, %c0_i32_0 : i32, i32
  }
  func.func @transform_9(%arg0: i32) -> (i32, i32) {
    %c0_i32 = arith.constant 0 : i32
    %c0_i32_0 = arith.constant 0 : i32
    %c0_i32_1 = arith.constant 0 : i32
    return %c0_i32, %c0_i32_0 : i32, i32
  }
  func.func @transform_10(%arg0: i32) -> (i32, i32) {
    %c0_i32 = arith.constant 0 : i32
    %c0_i32_0 = arith.constant 0 : i32
    %c0_i32_1 = arith.constant 0 : i32
    return %c0_i32, %c0_i32_0 : i32, i32
  }
  func.func @transform_11(%arg0: i32) -> (i32, i32) {
    %c0_i32 = arith.constant 0 : i32
    %c0_i32_0 = arith.constant 0 : i32
    %c0_i32_1 = arith.constant 0 : i32
    return %c0_i32, %c0_i32_0 : i32, i32
  }
  func.func @transform_12(%arg0: i32) -> (i32, i32) {
    %c0_i32 = arith.constant 0 : i32
    %c0_i32_0 = arith.constant 0 : i32
    %c0_i32_1 = arith.constant 0 : i32
    return %c0_i32, %c0_i32_0 : i32, i32
  }
  func.func @transform_13(%arg0: i32) -> (i32, i32) {
    %c0_i32 = arith.constant 0 : i32
    %c0_i32_0 = arith.constant 0 : i32
    %c0_i32_1 = arith.constant 0 : i32
    return %c0_i32, %c0_i32_0 : i32, i32
  }
  func.func @transform_14(%arg0: i32) -> (i32, i32) {
    %c0_i32 = arith.constant 0 : i32
    %c0_i32_0 = arith.constant 0 : i32
    %c0_i32_1 = arith.constant 0 : i32
    return %c0_i32, %c0_i32_0 : i32, i32
  }
  func.func @transform_15(%arg0: i32) -> (i32, i32) {
    %c0_i32 = arith.constant 0 : i32
    %c0_i32_0 = arith.constant 0 : i32
    %c0_i32_1 = arith.constant 0 : i32
    return %c0_i32, %c0_i32_0 : i32, i32
  }
  func.func @transform_16(%arg0: i32) -> (i32, i32) {
    %c0_i32 = arith.constant 0 : i32
    %c0_i32_0 = arith.constant 0 : i32
    %c0_i32_1 = arith.constant 0 : i32
    return %c0_i32, %c0_i32_0 : i32, i32
  }
  func.func @transform_17(%arg0: i32) -> (i32, i32) {
    %c0_i32 = arith.constant 0 : i32
    %c0_i32_0 = arith.constant 0 : i32
    return %arg0, %c0_i32 : i32, i32
  }
}

</mosaic_0001>

<llo_original>
// kernel: tpu_custom_call.1
$region0: #{tpu_custom_call.1}
  #allocation0 [shape = 'u32[]', space=smem, size = 0x4, offset = 0x4, fixed_abs, tag = 'smem constant byte address 0x4 - core index']
  #allocation1 [shape = 'u32[144,128]{1,0:T(1,128)}', space=vmem, size = 0x12000, scoped, tag = 'internal scratch']
  #allocation2 [shape = 'bf16[16,256]{1,0:T(16,128)(2,1)}', space=vmem, size = 0x2000, scoped, tag = 'scratch operand']
  %s0 = inlined_call_operand.hbm [shape: f32[16,256], index: 0, kind: input, shape index: {}]
  %s1 = inlined_call_operand.hbm [shape: f32[16,256], index: 1, kind: input, shape index: {}]
  %s2 = inlined_call_operand.hbm [shape: f32[16,256], index: 2, kind: input, shape index: {}]
  %s3 = inlined_call_operand.hbm [shape: bf16[256,512], index: 3, kind: input, shape index: {}]
  %s4 = inlined_call_operand.vmem [shape: f32[1,512], index: 4, kind: input, shape index: {}]
  %s5 = inlined_call_operand.hbm [shape: bf16[256,256], index: 5, kind: input, shape index: {}]
  %s6 = inlined_call_operand.vmem [shape: f32[1,256], index: 6, kind: input, shape index: {}]
  %s7 = inlined_call_operand.hbm [shape: bf16[256,256], index: 7, kind: input, shape index: {}]
  %s8 = inlined_call_operand.vmem [shape: f32[1,256], index: 8, kind: input, shape index: {}]
  %s9 = inlined_call_operand.vmem [shape: f32[1,256], index: 9, kind: input, shape index: {}]
  %s10 = inlined_call_operand.vmem [shape: f32[1,256], index: 10, kind: input, shape index: {}]
  %s11 = inlined_call_operand.hbm [shape: bf16[256,1024], index: 11, kind: input, shape index: {}]
  %s12 = inlined_call_operand.vmem [shape: f32[1,1024], index: 12, kind: input, shape index: {}]
  %s13 = inlined_call_operand.hbm [shape: bf16[1024,256], index: 13, kind: input, shape index: {}]
  %s14 = inlined_call_operand.vmem [shape: f32[1,256], index: 14, kind: input, shape index: {}]
  %s15 = inlined_call_operand.vmem [shape: f32[1,256], index: 15, kind: input, shape index: {}]
  %s16 = inlined_call_operand.vmem [shape: f32[1,256], index: 16, kind: input, shape index: {}]
  %s17 = inlined_call_operand.hbm [shape: f32[16,256], index: 17, kind: output, shape index: {}]
  %s18 = sld [smem:[#allocation0]]
  $region110: #{tpu_custom_call.1} parent=0
    _
  %s20 = ssub.s32 1, %s18
  %s21 = scalar_select 0, %s20, %s18
  $region1: #{tpu_custom_call.1} parent=0
    #allocation3 [shape = 'u8[16384]{0}', space=vmem, size = 0x4000, scoped, tag = 'input window, operand 0, single buffered']
    #allocation4 [shape = 's32[1]{0}', space=sflag, size = 0x4, scoped, tag = 'scoped memory for tpu_custom_call.1']
    #allocation5 [shape = 's32[1]{0}', space=sflag, size = 0x4, scoped, tag = 'scoped memory for tpu_custom_call.1']
    #allocation6 [shape = 'u8[16384]{0}', space=vmem, size = 0x4000, scoped, tag = 'input window, operand 1, single buffered']
    #allocation7 [shape = 's32[1]{0}', space=sflag, size = 0x4, scoped, tag = 'scoped memory for tpu_custom_call.1']
    #allocation8 [shape = 'u8[16384]{0}', space=vmem, size = 0x4000, scoped, tag = 'input window, operand 2, single buffered']
    #allocation9 [shape = 'u8[262144]{0}', space=vmem, size = 0x40000, scoped, tag = 'input window, operand 3, single buffered']
    #allocation10 [shape = 's32[1]{0}', space=sflag, size = 0x4, scoped, tag = 'scoped memory for tpu_custom_call.1']
    #allocation11 [shape = 'u8[131072]{0}', space=vmem, size = 0x20000, scoped, tag = 'input window, operand 5, single buffered']
    #allocation12 [shape = 'u8[131072]{0}', space=vmem, size = 0x20000, scoped, tag = 'input window, operand 7, single buffered']
    #allocation13 [shape = 's32[1]{0}', space=sflag, size = 0x4, scoped, tag = 'scoped memory for tpu_custom_call.1']
    #allocation14 [shape = 'u8[524288]{0}', space=vmem, size = 0x80000, scoped, tag = 'input window, operand 11, single buffered']
    #allocation15 [shape = 'u8[524288]{0}', space=vmem, size = 0x80000, scoped, tag = 'input window, operand 13, single buffered']
    #allocation16 [shape = 's32[1]{0}', space=sflag, size = 0x4, scoped, tag = 'scoped memory for tpu_custom_call.1']
    #allocation17 [shape = 'u8[16384]{0}', space=vmem, size = 0x4000, scoped, tag = 'output window, operand 0, single buffered']
    %22 = vsyncpa [#allocation4], 0
    %23 = vsyncpa [#allocation7], 0
    %24 = vsyncpa [#allocation10], 0
    %25 = vsyncpa [#allocation13], 0
    %26 = vsyncpa [#allocation16], 0
    %27 = vsyncpa [#allocation5], 0
    // Predicated region
    $region2: #{tpu_custom_call.1} parent=1 // pred_check
      _
    $region3: #{tpu_custom_call.1} parent=1 // pred_check_branch
      %29 = sbr.rel (0) target = $region5
    $region4: #{tpu_custom_call.1} parent=1 // pred_region
      %s31 = ssub.s32 512, 512
      %32 = vsyncadd [#allocation4], %s31
      %s33 = sshll.u32 [#allocation3], 4
      %s34 = int_to_ptr.vmem [resolvable:$true] %s33
      %39 = dma.hbm_to_vmem [thread:$0]  %s0, 512, %s34, [#allocation4], 256, 256, 16
    $region5: #{tpu_custom_call.1} parent=1 // pred_fallthru
      _
    // Predicated region
    $region6: #{tpu_custom_call.1} parent=1 // pred_check
      _
    $region7: #{tpu_custom_call.1} parent=1 // pred_check_branch
      %41 = sbr.rel (0) target = $region9
    $region8: #{tpu_custom_call.1} parent=1 // pred_region
      %s43 = ssub.s32 512, 512
      %44 = vsyncadd [#allocation7], %s43
      %s45 = sshll.u32 [#allocation6], 4
      %s46 = int_to_ptr.vmem [resolvable:$true] %s45
      %51 = dma.hbm_to_vmem [thread:$0]  %s1, 512, %s46, [#allocation7], 256, 256, 16
    $region9: #{tpu_custom_call.1} parent=1 // pred_fallthru
      _
    // Predicated region
    $region10: #{tpu_custom_call.1} parent=1 // pred_check
      _
    $region11: #{tpu_custom_call.1} parent=1 // pred_check_branch
      %53 = sbr.rel (0) target = $region13
    $region12: #{tpu_custom_call.1} parent=1 // pred_region
      %s55 = ssub.s32 512, 512
      %56 = vsyncadd [#allocation7], %s55
      %s57 = sshll.u32 [#allocation8], 4
      %s58 = int_to_ptr.vmem [resolvable:$true] %s57
      %63 = dma.hbm_to_vmem [thread:$0]  %s2, 512, %s58, [#allocation7], 256, 256, 16
    $region13: #{tpu_custom_call.1} parent=1 // pred_fallthru
      _
    // Predicated region
    $region14: #{tpu_custom_call.1} parent=1 // pred_check
      _
    $region15: #{tpu_custom_call.1} parent=1 // pred_check_branch
      %65 = sbr.rel (0) target = $region17
    $region16: #{tpu_custom_call.1} parent=1 // pred_region
      %s67 = ssub.s32 8192, 8192
      %68 = vsyncadd [#allocation10], %s67
      %s69 = sshll.u32 [#allocation9], 4
      %s70 = int_to_ptr.vmem [resolvable:$true] %s69
      %75 = dma.hbm_to_vmem [thread:$0]  %s3, 8192, %s70, [#allocation10], 256, 256, 16
    $region17: #{tpu_custom_call.1} parent=1 // pred_fallthru
      _
    // Predicated region
    $region18: #{tpu_custom_call.1} parent=1 // pred_check
      _
    $region19: #{tpu_custom_call.1} parent=1 // pred_check_branch
      %77 = sbr.rel (0) target = $region21
    $region20: #{tpu_custom_call.1} parent=1 // pred_region
      _
    $region21: #{tpu_custom_call.1} parent=1 // pred_fallthru
      _
    // Predicated region
    $region22: #{tpu_custom_call.1} parent=1 // pred_check
      _
    $region23: #{tpu_custom_call.1} parent=1 // pred_check_branch
      %79 = sbr.rel (0) target = $region25
    $region24: #{tpu_custom_call.1} parent=1 // pred_region
      %s81 = ssub.s32 4096, 4096
      %82 = vsyncadd [#allocation10], %s81
      %s83 = sshll.u32 [#allocation11], 4
      %s84 = int_to_ptr.vmem [resolvable:$true] %s83
      %89 = dma.hbm_to_vmem [thread:$0]  %s5, 4096, %s84, [#allocation10], 128, 128, 8
    $region25: #{tpu_custom_call.1} parent=1 // pred_fallthru
      _
    // Predicated region
    $region26: #{tpu_custom_call.1} parent=1 // pred_check
      _
    $region27: #{tpu_custom_call.1} parent=1 // pred_check_branch
      %91 = sbr.rel (0) target = $region29
    $region28: #{tpu_custom_call.1} parent=1 // pred_region
      _
    $region29: #{tpu_custom_call.1} parent=1 // pred_fallthru
      _
    // Predicated region
    $region30: #{tpu_custom_call.1} parent=1 // pred_check
      _
    $region31: #{tpu_custom_call.1} parent=1 // pred_check_branch
      %93 = sbr.rel (0) target = $region33
    $region32: #{tpu_custom_call.1} parent=1 // pred_region
      %s95 = ssub.s32 4096, 4096
      %96 = vsyncadd [#allocation13], %s95
      %s97 = sshll.u32 [#allocation12], 4
      %s98 = int_to_ptr.vmem [resolvable:$true] %s97
      %103 = dma.hbm_to_vmem [thread:$0]  %s7, 4096, %s98, [#allocation13], 128, 128, 8
    $region33: #{tpu_custom_call.1} parent=1 // pred_fallthru
      _
    // Predicated region
    $region34: #{tpu_custom_call.1} parent=1 // pred_check
      _
    $region35: #{tpu_custom_call.1} parent=1 // pred_check_branch
      %105 = sbr.rel (0) target = $region37
    $region36: #{tpu_custom_call.1} parent=1 // pred_region
      _
    $region37: #{tpu_custom_call.1} parent=1 // pred_fallthru
      _
    // Predicated region
    $region38: #{tpu_custom_call.1} parent=1 // pred_check
      _
    $region39: #{tpu_custom_call.1} parent=1 // pred_check_branch
      %107 = sbr.rel (0) target = $region41
    $region40: #{tpu_custom_call.1} parent=1 // pred_region
      _
    $region41: #{tpu_custom_call.1} parent=1 // pred_fallthru
      _
    // Predicated region
    $region42: #{tpu_custom_call.1} parent=1 // pred_check
      _
    $region43: #{tpu_custom_call.1} parent=1 // pred_check_branch
      %109 = sbr.rel (0) target = $region45
    $region44: #{tpu_custom_call.1} parent=1 // pred_region
      _
    $region45: #{tpu_custom_call.1} parent=1 // pred_fallthru
      _
    // Predicated region
    $region46: #{tpu_custom_call.1} parent=1 // pred_check
      _
    $region47: #{tpu_custom_call.1} parent=1 // pred_check_branch
      %111 = sbr.rel (0) target = $region49
    $region48: #{tpu_custom_call.1} parent=1 // pred_region
      %s113 = ssub.s32 16384, 16384
      %114 = vsyncadd [#allocation13], %s113
      %s115 = sshll.u32 [#allocation14], 4
      %s116 = int_to_ptr.vmem [resolvable:$true] %s115
      %121 = dma.hbm_to_vmem [thread:$0]  %s11, 16384, %s116, [#allocation13], 512, 512, 32
    $region49: #{tpu_custom_call.1} parent=1 // pred_fallthru
      _
    // Predicated region
    $region50: #{tpu_custom_call.1} parent=1 // pred_check
      _
    $region51: #{tpu_custom_call.1} parent=1 // pred_check_branch
      %123 = sbr.rel (0) target = $region53
    $region52: #{tpu_custom_call.1} parent=1 // pred_region
      _
    $region53: #{tpu_custom_call.1} parent=1 // pred_fallthru
      _
    // Predicated region
    $region54: #{tpu_custom_call.1} parent=1 // pred_check
      _
    $region55: #{tpu_custom_call.1} parent=1 // pred_check_branch
      %125 = sbr.rel (0) target = $region57
    $region56: #{tpu_custom_call.1} parent=1 // pred_region
      %s127 = ssub.s32 16384, 16384
      %128 = vsyncadd [#allocation16], %s127
      %s129 = sshll.u32 [#allocation15], 4
      %s130 = int_to_ptr.vmem [resolvable:$true] %s129
      %135 = dma.hbm_to_vmem [thread:$0]  %s13, 16384, %s130, [#allocation16], 128, 128, 8
    $region57: #{tpu_custom_call.1} parent=1 // pred_fallthru
      _
    // Predicated region
    $region58: #{tpu_custom_call.1} parent=1 // pred_check
      _
    $region59: #{tpu_custom_call.1} parent=1 // pred_check_branch
      %137 = sbr.rel (0) target = $region61
    $region60: #{tpu_custom_call.1} parent=1 // pred_region
      _
    $region61: #{tpu_custom_call.1} parent=1 // pred_fallthru
      _
    // Predicated region
    $region62: #{tpu_custom_call.1} parent=1 // pred_check
      _
    $region63: #{tpu_custom_call.1} parent=1 // pred_check_branch
      %139 = sbr.rel (0) target = $region65
    $region64: #{tpu_custom_call.1} parent=1 // pred_region
      _
    $region65: #{tpu_custom_call.1} parent=1 // pred_fallthru
      _
    // Predicated region
    $region66: #{tpu_custom_call.1} parent=1 // pred_check
      _
    $region67: #{tpu_custom_call.1} parent=1 // pred_check_branch
      %141 = sbr.rel (0) target = $region69
    $region68: #{tpu_custom_call.1} parent=1 // pred_region
      _
    $region69: #{tpu_custom_call.1} parent=1 // pred_fallthru
      _
    // Predicated region
    $region70: #{tpu_custom_call.1} parent=1 // pred_check
      _
    $region71: #{tpu_custom_call.1} parent=1 // pred_check_branch
      %143 = sbr.rel (0) target = $region73
    $region72: #{tpu_custom_call.1} parent=1 // pred_region
      %144 = dma.done [#allocation4], 512
    $region73: #{tpu_custom_call.1} parent=1 // pred_fallthru
      _
    // Predicated region
    $region74: #{tpu_custom_call.1} parent=1 // pred_check
      _
    $region75: #{tpu_custom_call.1} parent=1 // pred_check_branch
      %146 = sbr.rel (0) target = $region77
    $region76: #{tpu_custom_call.1} parent=1 // pred_region
      %147 = dma.done [#allocation7], 512
    $region77: #{tpu_custom_call.1} parent=1 // pred_fallthru
      _
    // Predicated region
    $region78: #{tpu_custom_call.1} parent=1 // pred_check
      _
    $region79: #{tpu_custom_call.1} parent=1 // pred_check_branch
      %149 = sbr.rel (0) target = $region81
    $region80: #{tpu_custom_call.1} parent=1 // pred_region
      %150 = dma.done [#allocation7], 512
    $region81: #{tpu_custom_call.1} parent=1 // pred_fallthru
      _
    // Predicated region
    $region82: #{tpu_custom_call.1} parent=1 // pred_check
      _
    $region83: #{tpu_custom_call.1} parent=1 // pred_check_branch
      %152 = sbr.rel (0) target = $region85
    $region84: #{tpu_custom_call.1} parent=1 // pred_region
      %153 = dma.done [#allocation10], 8192
    $region85: #{tpu_custom_call.1} parent=1 // pred_fallthru
      _
    // Predicated region
    $region86: #{tpu_custom_call.1} parent=1 // pred_check
      _
    $region87: #{tpu_custom_call.1} parent=1 // pred_check_branch
      %155 = sbr.rel (0) target = $region89
    $region88: #{tpu_custom_call.1} parent=1 // pred_region
      %156 = dma.done [#allocation10], 4096
    $region89: #{tpu_custom_call.1} parent=1 // pred_fallthru
      _
    // Predicated region
    $region90: #{tpu_custom_call.1} parent=1 // pred_check
      _
    $region91: #{tpu_custom_call.1} parent=1 // pred_check_branch
      %158 = sbr.rel (0) target = $region93
    $region92: #{tpu_custom_call.1} parent=1 // pred_region
      %159 = dma.done [#allocation13], 4096
    $region93: #{tpu_custom_call.1} parent=1 // pred_fallthru
      _
    // Predicated region
    $region94: #{tpu_custom_call.1} parent=1 // pred_check
      _
    $region95: #{tpu_custom_call.1} parent=1 // pred_check_branch
      %161 = sbr.rel (0) target = $region97
    $region96: #{tpu_custom_call.1} parent=1 // pred_region
      %162 = dma.done [#allocation13], 16384
    $region97: #{tpu_custom_call.1} parent=1 // pred_fallthru
      _
    // Predicated region
    $region98: #{tpu_custom_call.1} parent=1 // pred_check
      _
    $region99: #{tpu_custom_call.1} parent=1 // pred_check_branch
      %164 = sbr.rel (0) target = $region101
    $region100: #{tpu_custom_call.1} parent=1 // pred_region
      %165 = dma.done [#allocation16], 16384
    $region101: #{tpu_custom_call.1} parent=1 // pred_fallthru
      _
    %v167 = vld [vmem:[#allocation3] sm:$0xff]
    %v168 = vld [vmem:[#allocation3 + $0x8] sm:$0xff]
    %v169 = vld [vmem:[#allocation3 + $0x10] sm:$0xff]
    %v170 = vld [vmem:[#allocation3 + $0x18] sm:$0xff]
    %v171 = vld [vmem:[#allocation6] sm:$0xff]
    %v172 = vld [vmem:[#allocation6 + $0x8] sm:$0xff]
    %v173 = vld [vmem:[#allocation6 + $0x10] sm:$0xff]
    %v174 = vld [vmem:[#allocation6 + $0x18] sm:$0xff]
    %v175 = vmul.f32 %v167, %v171
    %v176 = vmul.f32 %v168, %v172
    %v177 = vmul.f32 %v169, %v173
    %v178 = vmul.f32 %v170, %v174
    %v179 = vld [vmem:[#allocation8] sm:$0xff]
    %v180 = vld [vmem:[#allocation8 + $0x8] sm:$0xff]
    %v181 = vld [vmem:[#allocation8 + $0x10] sm:$0xff]
    %v182 = vld [vmem:[#allocation8 + $0x18] sm:$0xff]
    %v183 = vmul.f32 %v168, %v179
    %v184 = vmul.f32 %v167, %v180
    %v185 = vmul.f32 %v170, %v181
    %v186 = vmul.f32 %v169, %v182
    %v187 = vadd.f32 %v175, %v183
    %v188 = vadd.f32 %v176, %v184
    %v189 = vadd.f32 %v177, %v185
    %v190 = vadd.f32 %v178, %v186
    %v191 = vpack.c.bf16 %v189, %v187
    %v192 = vpack.c.bf16 %v190, %v188
    %v193 = vld [vmem:[#allocation9] sm:$0xff]
    %v194 = vld [vmem:[#allocation9 + $0x8] sm:$0xff]
    %v195 = vld [vmem:[#allocation9 + $0x10] sm:$0xff]
    %v196 = vld [vmem:[#allocation9 + $0x18] sm:$0xff]
    %v197 = vld [vmem:[#allocation9 + $0x20] sm:$0xff]
    %v198 = vld [vmem:[#allocation9 + $0x28] sm:$0xff]
    %v199 = vld [vmem:[#allocation9 + $0x30] sm:$0xff]
    %v200 = vld [vmem:[#allocation9 + $0x38] sm:$0xff]
    %v201 = vld [vmem:[#allocation9 + $0x40] sm:$0xff]
    %v202 = vld [vmem:[#allocation9 + $0x48] sm:$0xff]
    %v203 = vld [vmem:[#allocation9 + $0x50] sm:$0xff]
    %v204 = vld [vmem:[#allocation9 + $0x58] sm:$0xff]
    %v205 = vld [vmem:[#allocation9 + $0x60] sm:$0xff]
    %v206 = vld [vmem:[#allocation9 + $0x68] sm:$0xff]
    %v207 = vld [vmem:[#allocation9 + $0x70] sm:$0xff]
    %v208 = vld [vmem:[#allocation9 + $0x78] sm:$0xff]
    %v209 = vld [vmem:[#allocation9 + $0x80] sm:$0xff]
    %v210 = vld [vmem:[#allocation9 + $0x88] sm:$0xff]
    %v211 = vld [vmem:[#allocation9 + $0x90] sm:$0xff]
    %v212 = vld [vmem:[#allocation9 + $0x98] sm:$0xff]
    %v213 = vld [vmem:[#allocation9 + $0xa0] sm:$0xff]
    %v214 = vld [vmem:[#allocation9 + $0xa8] sm:$0xff]
    %v215 = vld [vmem:[#allocation9 + $0xb0] sm:$0xff]
    %v216 = vld [vmem:[#allocation9 + $0xb8] sm:$0xff]
    %v217 = vld [vmem:[#allocation9 + $0xc0] sm:$0xff]
    %v218 = vld [vmem:[#allocation9 + $0xc8] sm:$0xff]
    %v219 = vld [vmem:[#allocation9 + $0xd0] sm:$0xff]
    %v220 = vld [vmem:[#allocation9 + $0xd8] sm:$0xff]
    %v221 = vld [vmem:[#allocation9 + $0xe0] sm:$0xff]
    %v222 = vld [vmem:[#allocation9 + $0xe8] sm:$0xff]
    %v223 = vld [vmem:[#allocation9 + $0xf0] sm:$0xff]
    %v224 = vld [vmem:[#allocation9 + $0xf8] sm:$0xff]
    %v225 = vld [vmem:[#allocation9 + $0x100] sm:$0xff]
    %v226 = vld [vmem:[#allocation9 + $0x108] sm:$0xff]
    %v227 = vld [vmem:[#allocation9 + $0x110] sm:$0xff]
    %v228 = vld [vmem:[#allocation9 + $0x118] sm:$0xff]
    %v229 = vld [vmem:[#allocation9 + $0x120] sm:$0xff]
    %v230 = vld [vmem:[#allocation9 + $0x128] sm:$0xff]
    %v231 = vld [vmem:[#allocation9 + $0x130] sm:$0xff]
    %v232 = vld [vmem:[#allocation9 + $0x138] sm:$0xff]
    %v233 = vld [vmem:[#allocation9 + $0x140] sm:$0xff]
    %v234 = vld [vmem:[#allocation9 + $0x148] sm:$0xff]
    %v235 = vld [vmem:[#allocation9 + $0x150] sm:$0xff]
    %v236 = vld [vmem:[#allocation9 + $0x158] sm:$0xff]
    %v237 = vld [vmem:[#allocation9 + $0x160] sm:$0xff]
    %v238 = vld [vmem:[#allocation9 + $0x168] sm:$0xff]
    %v239 = vld [vmem:[#allocation9 + $0x170] sm:$0xff]
    %v240 = vld [vmem:[#allocation9 + $0x178] sm:$0xff]
    %v241 = vld [vmem:[#allocation9 + $0x180] sm:$0xff]
    %v242 = vld [vmem:[#allocation9 + $0x188] sm:$0xff]
    %v243 = vld [vmem:[#allocation9 + $0x190] sm:$0xff]
    %v244 = vld [vmem:[#allocation9 + $0x198] sm:$0xff]
    %v245 = vld [vmem:[#allocation9 + $0x1a0] sm:$0xff]
    %v246 = vld [vmem:[#allocation9 + $0x1a8] sm:$0xff]
    %v247 = vld [vmem:[#allocation9 + $0x1b0] sm:$0xff]
    %v248 = vld [vmem:[#allocation9 + $0x1b8] sm:$0xff]
    %v249 = vld [vmem:[#allocation9 + $0x1c0] sm:$0xff]
    %v250 = vld [vmem:[#allocation9 + $0x1c8] sm:$0xff]
    %v251 = vld [vmem:[#allocation9 + $0x1d0] sm:$0xff]
    %v252 = vld [vmem:[#allocation9 + $0x1d8] sm:$0xff]
    %v253 = vld [vmem:[#allocation9 + $0x1e0] sm:$0xff]
    %v254 = vld [vmem:[#allocation9 + $0x1e8] sm:$0xff]
    %v255 = vld [vmem:[#allocation9 + $0x1f0] sm:$0xff]
    %v256 = vld [vmem:[#allocation9 + $0x1f8] sm:$0xff]
    %v257 = vld [vmem:[%s4] sm:$0xf]
    %v259 = vlaneseq
    %v260 = vshrl.u32 %v259, 7
    %v261 = vsub.s32 0, %v260
    %v262 = vrot.slane %v257, %v261
    %v263 = vlaneseq
    %v264 = vshrl.u32 %v263, 7
    %v265 = vsub.s32 1, %v264
    %v266 = vrot.slane %v257, %v265
    %v267 = vlaneseq
    %v268 = vshrl.u32 %v267, 7
    %v269 = vsub.s32 2, %v268
    %v270 = vrot.slane %v257, %v269
    %v271 = vlaneseq
    %v272 = vshrl.u32 %v271, 7
    %v273 = vsub.s32 3, %v272
    %v274 = vrot.slane %v257, %v273
    %v343 = vunpack.c.l.b16 %v193
    %v344 = vunpack.c.h.b16 %v193
    %v345 = vunpack.c.l.b16 %v194
    %v346 = vunpack.c.h.b16 %v194
    %v347 = vunpack.c.l.b16 %v195
    %v348 = vunpack.c.h.b16 %v195
    %v349 = vunpack.c.l.b16 %v196
    %v350 = vunpack.c.h.b16 %v196
    %v351 = vunpack.c.l.b16 %v197
    %v352 = vunpack.c.h.b16 %v197
    %v353 = vunpack.c.l.b16 %v198
    %v354 = vunpack.c.h.b16 %v198
    %v355 = vunpack.c.l.b16 %v199
    %v356 = vunpack.c.h.b16 %v199
    %v357 = vunpack.c.l.b16 %v200
    %v358 = vunpack.c.h.b16 %v200
    %v359 = vunpack.c.l.b16 %v201
    %v360 = vunpack.c.h.b16 %v201
    %v361 = vunpack.c.l.b16 %v202
    %v362 = vunpack.c.h.b16 %v202
    %v363 = vunpack.c.l.b16 %v203
    %v364 = vunpack.c.h.b16 %v203
    %v365 = vunpack.c.l.b16 %v204
    %v366 = vunpack.c.h.b16 %v204
    %v367 = vunpack.c.l.b16 %v205
    %v368 = vunpack.c.h.b16 %v205
    %v369 = vunpack.c.l.b16 %v206
    %v370 = vunpack.c.h.b16 %v206
    %v371 = vunpack.c.l.b16 %v207
    %v372 = vunpack.c.h.b16 %v207
    %v373 = vunpack.c.l.b16 %v208
    %v374 = vunpack.c.h.b16 %v208
    %v375 = vunpack.c.l.b16 %v209
    %v376 = vunpack.c.h.b16 %v209
    %v377 = vunpack.c.l.b16 %v210
    %v378 = vunpack.c.h.b16 %v210
    %v379 = vunpack.c.l.b16 %v211
    %v380 = vunpack.c.h.b16 %v211
    %v381 = vunpack.c.l.b16 %v212
    %v382 = vunpack.c.h.b16 %v212
    %v383 = vunpack.c.l.b16 %v213
    %v384 = vunpack.c.h.b16 %v213
    %v385 = vunpack.c.l.b16 %v214
    %v386 = vunpack.c.h.b16 %v214
    %v387 = vunpack.c.l.b16 %v215
    %v388 = vunpack.c.h.b16 %v215
    %v389 = vunpack.c.l.b16 %v216
    %v390 = vunpack.c.h.b16 %v216
    %v391 = vunpack.c.l.b16 %v217
    %v392 = vunpack.c.h.b16 %v217
    %v393 = vunpack.c.l.b16 %v218
    %v394 = vunpack.c.h.b16 %v218
    %v395 = vunpack.c.l.b16 %v219
    %v396 = vunpack.c.h.b16 %v219
    %v397 = vunpack.c.l.b16 %v220
    %v398 = vunpack.c.h.b16 %v220
    %v399 = vunpack.c.l.b16 %v221
    %v400 = vunpack.c.h.b16 %v221
    %v401 = vunpack.c.l.b16 %v222
    %v402 = vunpack.c.h.b16 %v222
    %v403 = vunpack.c.l.b16 %v223
    %v404 = vunpack.c.h.b16 %v223
    %v405 = vunpack.c.l.b16 %v224
    %v406 = vunpack.c.h.b16 %v224
    %v407 = vunpack.c.l.b16 %v225
    %v408 = vunpack.c.h.b16 %v225
    %v409 = vunpack.c.l.b16 %v226
    %v410 = vunpack.c.h.b16 %v226
    %v411 = vunpack.c.l.b16 %v227
    %v412 = vunpack.c.h.b16 %v227
    %v413 = vunpack.c.l.b16 %v228
    %v414 = vunpack.c.h.b16 %v228
    %v415 = vunpack.c.l.b16 %v229
    %v416 = vunpack.c.h.b16 %v229
    %v417 = vunpack.c.l.b16 %v230
    %v418 = vunpack.c.h.b16 %v230
    %v419 = vunpack.c.l.b16 %v231
    %v420 = vunpack.c.h.b16 %v231
    %v421 = vunpack.c.l.b16 %v232
    %v422 = vunpack.c.h.b16 %v232
    %v423 = vunpack.c.l.b16 %v233
    %v424 = vunpack.c.h.b16 %v233
    %v425 = vunpack.c.l.b16 %v234
    %v426 = vunpack.c.h.b16 %v234
    %v427 = vunpack.c.l.b16 %v235
    %v428 = vunpack.c.h.b16 %v235
    %v429 = vunpack.c.l.b16 %v236
    %v430 = vunpack.c.h.b16 %v236
    %v431 = vunpack.c.l.b16 %v237
    %v432 = vunpack.c.h.b16 %v237
    %v433 = vunpack.c.l.b16 %v238
    %v434 = vunpack.c.h.b16 %v238
    %v435 = vunpack.c.l.b16 %v239
    %v436 = vunpack.c.h.b16 %v239
    %v437 = vunpack.c.l.b16 %v240
    %v438 = vunpack.c.h.b16 %v240
    %v439 = vunpack.c.l.b16 %v241
    %v440 = vunpack.c.h.b16 %v241
    %v441 = vunpack.c.l.b16 %v242
    %v442 = vunpack.c.h.b16 %v242
    %v443 = vunpack.c.l.b16 %v243
    %v444 = vunpack.c.h.b16 %v243
    %v445 = vunpack.c.l.b16 %v244
    %v446 = vunpack.c.h.b16 %v244
    %v447 = vunpack.c.l.b16 %v245
    %v448 = vunpack.c.h.b16 %v245
    %v449 = vunpack.c.l.b16 %v246
    %v450 = vunpack.c.h.b16 %v246
    %v451 = vunpack.c.l.b16 %v247
    %v452 = vunpack.c.h.b16 %v247
    %v453 = vunpack.c.l.b16 %v248
    %v454 = vunpack.c.h.b16 %v248
    %v455 = vunpack.c.l.b16 %v249
    %v456 = vunpack.c.h.b16 %v249
    %v457 = vunpack.c.l.b16 %v250
    %v458 = vunpack.c.h.b16 %v250
    %v459 = vunpack.c.l.b16 %v251
    %v460 = vunpack.c.h.b16 %v251
    %v461 = vunpack.c.l.b16 %v252
    %v462 = vunpack.c.h.b16 %v252
    %v463 = vunpack.c.l.b16 %v253
    %v464 = vunpack.c.h.b16 %v253
    %v465 = vunpack.c.l.b16 %v254
    %v466 = vunpack.c.h.b16 %v254
    %v467 = vunpack.c.l.b16 %v255
    %v468 = vunpack.c.h.b16 %v255
    %v469 = vunpack.c.l.b16 %v256
    %v470 = vunpack.c.h.b16 %v256
    %v471 = vpack.c.b16 %v347, %v343
    %v472 = vpack.c.b16 %v348, %v344
    %v473 = vpack.c.b16 %v349, %v345
    %v474 = vpack.c.b16 %v350, %v346
    %v475 = vpack.c.b16 %v355, %v351
    %v476 = vpack.c.b16 %v356, %v352
    %v477 = vpack.c.b16 %v357, %v353
    %v478 = vpack.c.b16 %v358, %v354
    %v479 = vpack.c.b16 %v363, %v359
    %v480 = vpack.c.b16 %v364, %v360
    %v481 = vpack.c.b16 %v365, %v361
    %v482 = vpack.c.b16 %v366, %v362
    %v483 = vpack.c.b16 %v371, %v367
    %v484 = vpack.c.b16 %v372, %v368
    %v485 = vpack.c.b16 %v373, %v369
    %v486 = vpack.c.b16 %v374, %v370
    %v487 = vpack.c.b16 %v379, %v375
    %v488 = vpack.c.b16 %v380, %v376
    %v489 = vpack.c.b16 %v381, %v377
    %v490 = vpack.c.b16 %v382, %v378
    %v491 = vpack.c.b16 %v387, %v383
    %v492 = vpack.c.b16 %v388, %v384
    %v493 = vpack.c.b16 %v389, %v385
    %v494 = vpack.c.b16 %v390, %v386
    %v495 = vpack.c.b16 %v395, %v391
    %v496 = vpack.c.b16 %v396, %v392
    %v497 = vpack.c.b16 %v397, %v393
    %v498 = vpack.c.b16 %v398, %v394
    %v499 = vpack.c.b16 %v403, %v399
    %v500 = vpack.c.b16 %v404, %v400
    %v501 = vpack.c.b16 %v405, %v401
    %v502 = vpack.c.b16 %v406, %v402
    %v503 = vpack.c.b16 %v411, %v407
    %v504 = vpack.c.b16 %v412, %v408
    %v505 = vpack.c.b16 %v413, %v409
    %v506 = vpack.c.b16 %v414, %v410
    %v507 = vpack.c.b16 %v419, %v415
    %v508 = vpack.c.b16 %v420, %v416
    %v509 = vpack.c.b16 %v421, %v417
    %v510 = vpack.c.b16 %v422, %v418
    %v511 = vpack.c.b16 %v427, %v423
    %v512 = vpack.c.b16 %v428, %v424
    %v513 = vpack.c.b16 %v429, %v425
    %v514 = vpack.c.b16 %v430, %v426
    %v515 = vpack.c.b16 %v435, %v431
    %v516 = vpack.c.b16 %v436, %v432
    %v517 = vpack.c.b16 %v437, %v433
    %v518 = vpack.c.b16 %v438, %v434
    %v519 = vpack.c.b16 %v443, %v439
    %v520 = vpack.c.b16 %v444, %v440
    %v521 = vpack.c.b16 %v445, %v441
    %v522 = vpack.c.b16 %v446, %v442
    %v523 = vpack.c.b16 %v451, %v447
    %v524 = vpack.c.b16 %v452, %v448
    %v525 = vpack.c.b16 %v453, %v449
    %v526 = vpack.c.b16 %v454, %v450
    %v527 = vpack.c.b16 %v459, %v455
    %v528 = vpack.c.b16 %v460, %v456
    %v529 = vpack.c.b16 %v461, %v457
    %v530 = vpack.c.b16 %v462, %v458
    %v531 = vpack.c.b16 %v467, %v463
    %v532 = vpack.c.b16 %v468, %v464
    %v533 = vpack.c.b16 %v469, %v465
    %v534 = vpack.c.b16 %v470, %v466
    %599 = vmatprep.subr.bf16.mxu0 %v472
    %600 = vmatpush1.bf16.msra.mxu0 %v471
    %601 = vmatprep.subr.bf16.mxu0 %v476
    %602 = vmatpush1.bf16.msra.mxu0 %v475
    %603 = vmatprep.subr.bf16.mxu0 %v480
    %604 = vmatpush1.bf16.msra.mxu0 %v479
    %605 = vmatprep.subr.bf16.mxu0 %v484
    %606 = vmatpush1.bf16.msra.mxu0 %v483
    %607 = vmatprep.subr.bf16.mxu0 %v488
    %608 = vmatpush1.bf16.msra.mxu0 %v487
    %609 = vmatprep.subr.bf16.mxu0 %v492
    %610 = vmatpush1.bf16.msra.mxu0 %v491
    %611 = vmatprep.subr.bf16.mxu0 %v496
    %612 = vmatpush1.bf16.msra.mxu0 %v495
    %613 = vmatprep.subr.bf16.mxu0 %v500
    %614 = vmatpush1.bf16.msra.mxu0 %v499
    %615 = vmatprep.subr.bf16.mxu0 %v504
    %616 = vmatpush1.bf16.msra.mxu0 %v503
    %617 = vmatprep.subr.bf16.mxu0 %v508
    %618 = vmatpush1.bf16.msra.mxu0 %v507
    %619 = vmatprep.subr.bf16.mxu0 %v512
    %620 = vmatpush1.bf16.msra.mxu0 %v511
    %621 = vmatprep.subr.bf16.mxu0 %v516
    %622 = vmatpush1.bf16.msra.mxu0 %v515
    %623 = vmatprep.subr.bf16.mxu0 %v520
    %624 = vmatpush1.bf16.msra.mxu0 %v519
    %625 = vmatprep.subr.bf16.mxu0 %v524
    %626 = vmatpush1.bf16.msra.mxu0 %v523
    %627 = vmatprep.subr.bf16.mxu0 %v528
    %628 = vmatpush1.bf16.msra.mxu0 %v527
    %629 = vmatprep.subr.bf16.mxu0 %v532
    %630 = vmatpush1.bf16.msra.mxu0 %v531
    %631 = vmatprep.mubr.bf16.mxu0 %v192
    %632 = vmatmul.mubr.bf16.gmra.mrb[0].mxu0 %v191
    %v633 = vpop.f32.mrb[0].mxu0
    %v634 = vadd.f32 %v262, %v633
    %v635 = vpop.f32.mrb[0].mxu0
    %v636 = vadd.f32 %v266, %v635
    %v637 = vpop.f32.mrb[0].mxu0
    %v638 = vadd.f32 %v262, %v637
    %v639 = vpop.f32.mrb[0].mxu0
    %v640 = vadd.f32 %v266, %v639
    %641 = vdwg.mxu0
    %642 = vmatprep.subr.bf16.mxu0 %v474
    %643 = vmatpush1.bf16.msra.mxu0 %v473
    %644 = vmatprep.subr.bf16.mxu0 %v478
    %645 = vmatpush1.bf16.msra.mxu0 %v477
    %646 = vmatprep.subr.bf16.mxu0 %v482
    %647 = vmatpush1.bf16.msra.mxu0 %v481
    %648 = vmatprep.subr.bf16.mxu0 %v486
    %649 = vmatpush1.bf16.msra.mxu0 %v485
    %650 = vmatprep.subr.bf16.mxu0 %v490
    %651 = vmatpush1.bf16.msra.mxu0 %v489
    %652 = vmatprep.subr.bf16.mxu0 %v494
    %653 = vmatpush1.bf16.msra.mxu0 %v493
    %654 = vmatprep.subr.bf16.mxu0 %v498
    %655 = vmatpush1.bf16.msra.mxu0 %v497
    %656 = vmatprep.subr.bf16.mxu0 %v502
    %657 = vmatpush1.bf16.msra.mxu0 %v501
    %658 = vmatprep.subr.bf16.mxu0 %v506
    %659 = vmatpush1.bf16.msra.mxu0 %v505
    %660 = vmatprep.subr.bf16.mxu0 %v510
    %661 = vmatpush1.bf16.msra.mxu0 %v509
    %662 = vmatprep.subr.bf16.mxu0 %v514
    %663 = vmatpush1.bf16.msra.mxu0 %v513
    %664 = vmatprep.subr.bf16.mxu0 %v518
    %665 = vmatpush1.bf16.msra.mxu0 %v517
    %666 = vmatprep.subr.bf16.mxu0 %v522
    %667 = vmatpush1.bf16.msra.mxu0 %v521
    %668 = vmatprep.subr.bf16.mxu0 %v526
    %669 = vmatpush1.bf16.msra.mxu0 %v525
    %670 = vmatprep.subr.bf16.mxu0 %v530
    %671 = vmatpush1.bf16.msra.mxu0 %v529
    %672 = vmatprep.subr.bf16.mxu0 %v534
    %673 = vmatpush1.bf16.msra.mxu0 %v533
    %674 = vmatprep.mubr.bf16.mxu0 %v192
    %675 = vmatmul.mubr.bf16.gmra.mrb[0].mxu0 %v191
    %v676 = vpop.f32.mrb[0].mxu0
    %v677 = vadd.f32 %v270, %v676
    %v678 = vpop.f32.mrb[0].mxu0
    %v679 = vadd.f32 %v274, %v678
    %v680 = vpop.f32.mrb[0].mxu0
    %v681 = vadd.f32 %v270, %v680
    %v682 = vpop.f32.mrb[0].mxu0
    %v683 = vadd.f32 %v274, %v682
    %684 = vdwg.mxu0
    %v685 = vpack.c.bf16 %v169, %v167
    %v686 = vpack.c.bf16 %v170, %v168
    %v687 = vld [vmem:[#allocation11] sm:$0xff]
    %v688 = vld [vmem:[#allocation11 + $0x8] sm:$0xff]
    %v689 = vld [vmem:[#allocation11 + $0x10] sm:$0xff]
    %v690 = vld [vmem:[#allocation11 + $0x18] sm:$0xff]
    %v691 = vld [vmem:[#allocation11 + $0x20] sm:$0xff]
    %v692 = vld [vmem:[#allocation11 + $0x28] sm:$0xff]
    %v693 = vld [vmem:[#allocation11 + $0x30] sm:$0xff]
    %v694 = vld [vmem:[#allocation11 + $0x38] sm:$0xff]
    %v695 = vld [vmem:[#allocation11 + $0x40] sm:$0xff]
    %v696 = vld [vmem:[#allocation11 + $0x48] sm:$0xff]
    %v697 = vld [vmem:[#allocation11 + $0x50] sm:$0xff]
    %v698 = vld [vmem:[#allocation11 + $0x58] sm:$0xff]
    %v699 = vld [vmem:[#allocation11 + $0x60] sm:$0xff]
    %v700 = vld [vmem:[#allocation11 + $0x68] sm:$0xff]
    %v701 = vld [vmem:[#allocation11 + $0x70] sm:$0xff]
    %v702 = vld [vmem:[#allocation11 + $0x78] sm:$0xff]
    %v703 = vld [vmem:[#allocation11 + $0x80] sm:$0xff]
    %v704 = vld [vmem:[#allocation11 + $0x88] sm:$0xff]
    %v705 = vld [vmem:[#allocation11 + $0x90] sm:$0xff]
    %v706 = vld [vmem:[#allocation11 + $0x98] sm:$0xff]
    %v707 = vld [vmem:[#allocation11 + $0xa0] sm:$0xff]
    %v708 = vld [vmem:[#allocation11 + $0xa8] sm:$0xff]
    %v709 = vld [vmem:[#allocation11 + $0xb0] sm:$0xff]
    %v710 = vld [vmem:[#allocation11 + $0xb8] sm:$0xff]
    %v711 = vld [vmem:[#allocation11 + $0xc0] sm:$0xff]
    %v712 = vld [vmem:[#allocation11 + $0xc8] sm:$0xff]
    %v713 = vld [vmem:[#allocation11 + $0xd0] sm:$0xff]
    %v714 = vld [vmem:[#allocation11 + $0xd8] sm:$0xff]
    %v715 = vld [vmem:[#allocation11 + $0xe0] sm:$0xff]
    %v716 = vld [vmem:[#allocation11 + $0xe8] sm:$0xff]
    %v717 = vld [vmem:[#allocation11 + $0xf0] sm:$0xff]
    %v718 = vld [vmem:[#allocation11 + $0xf8] sm:$0xff]
    %v719 = vld [vmem:[%s6] sm:$0x3]
    %v721 = vlaneseq
    %v722 = vshrl.u32 %v721, 7
    %v723 = vsub.s32 0, %v722
    %v724 = vrot.slane %v719, %v723
    %v725 = vlaneseq
    %v726 = vshrl.u32 %v725, 7
    %v727 = vsub.s32 1, %v726
    %v728 = vrot.slane %v719, %v727
    %v763 = vunpack.c.l.b16 %v687
    %v764 = vunpack.c.h.b16 %v687
    %v765 = vunpack.c.l.b16 %v688
    %v766 = vunpack.c.h.b16 %v688
    %v767 = vunpack.c.l.b16 %v689
    %v768 = vunpack.c.h.b16 %v689
    %v769 = vunpack.c.l.b16 %v690
    %v770 = vunpack.c.h.b16 %v690
    %v771 = vunpack.c.l.b16 %v691
    %v772 = vunpack.c.h.b16 %v691
    %v773 = vunpack.c.l.b16 %v692
    %v774 = vunpack.c.h.b16 %v692
    %v775 = vunpack.c.l.b16 %v693
    %v776 = vunpack.c.h.b16 %v693
    %v777 = vunpack.c.l.b16 %v694
    %v778 = vunpack.c.h.b16 %v694
    %v779 = vunpack.c.l.b16 %v695
    %v780 = vunpack.c.h.b16 %v695
    %v781 = vunpack.c.l.b16 %v696
    %v782 = vunpack.c.h.b16 %v696
    %v783 = vunpack.c.l.b16 %v697
    %v784 = vunpack.c.h.b16 %v697
    %v785 = vunpack.c.l.b16 %v698
    %v786 = vunpack.c.h.b16 %v698
    %v787 = vunpack.c.l.b16 %v699
    %v788 = vunpack.c.h.b16 %v699
    %v789 = vunpack.c.l.b16 %v700
    %v790 = vunpack.c.h.b16 %v700
    %v791 = vunpack.c.l.b16 %v701
    %v792 = vunpack.c.h.b16 %v701
    %v793 = vunpack.c.l.b16 %v702
    %v794 = vunpack.c.h.b16 %v702
    %v795 = vunpack.c.l.b16 %v703
    %v796 = vunpack.c.h.b16 %v703
    %v797 = vunpack.c.l.b16 %v704
    %v798 = vunpack.c.h.b16 %v704
    %v799 = vunpack.c.l.b16 %v705
    %v800 = vunpack.c.h.b16 %v705
    %v801 = vunpack.c.l.b16 %v706
    %v802 = vunpack.c.h.b16 %v706
    %v803 = vunpack.c.l.b16 %v707
    %v804 = vunpack.c.h.b16 %v707
    %v805 = vunpack.c.l.b16 %v708
    %v806 = vunpack.c.h.b16 %v708
    %v807 = vunpack.c.l.b16 %v709
    %v808 = vunpack.c.h.b16 %v709
    %v809 = vunpack.c.l.b16 %v710
    %v810 = vunpack.c.h.b16 %v710
    %v811 = vunpack.c.l.b16 %v711
    %v812 = vunpack.c.h.b16 %v711
    %v813 = vunpack.c.l.b16 %v712
    %v814 = vunpack.c.h.b16 %v712
    %v815 = vunpack.c.l.b16 %v713
    %v816 = vunpack.c.h.b16 %v713
    %v817 = vunpack.c.l.b16 %v714
    %v818 = vunpack.c.h.b16 %v714
    %v819 = vunpack.c.l.b16 %v715
    %v820 = vunpack.c.h.b16 %v715
    %v821 = vunpack.c.l.b16 %v716
    %v822 = vunpack.c.h.b16 %v716
    %v823 = vunpack.c.l.b16 %v717
    %v824 = vunpack.c.h.b16 %v717
    %v825 = vunpack.c.l.b16 %v718
    %v826 = vunpack.c.h.b16 %v718
    %v827 = vpack.c.b16 %v765, %v763
    %v828 = vpack.c.b16 %v766, %v764
    %v829 = vpack.c.b16 %v769, %v767
    %v830 = vpack.c.b16 %v770, %v768
    %v831 = vpack.c.b16 %v773, %v771
    %v832 = vpack.c.b16 %v774, %v772
    %v833 = vpack.c.b16 %v777, %v775
    %v834 = vpack.c.b16 %v778, %v776
    %v835 = vpack.c.b16 %v781, %v779
    %v836 = vpack.c.b16 %v782, %v780
    %v837 = vpack.c.b16 %v785, %v783
    %v838 = vpack.c.b16 %v786, %v784
    %v839 = vpack.c.b16 %v789, %v787
    %v840 = vpack.c.b16 %v790, %v788
    %v841 = vpack.c.b16 %v793, %v791
    %v842 = vpack.c.b16 %v794, %v792
    %v843 = vpack.c.b16 %v797, %v795
    %v844 = vpack.c.b16 %v798, %v796
    %v845 = vpack.c.b16 %v801, %v799
    %v846 = vpack.c.b16 %v802, %v800
    %v847 = vpack.c.b16 %v805, %v803
    %v848 = vpack.c.b16 %v806, %v804
    %v849 = vpack.c.b16 %v809, %v807
    %v850 = vpack.c.b16 %v810, %v808
    %v851 = vpack.c.b16 %v813, %v811
    %v852 = vpack.c.b16 %v814, %v812
    %v853 = vpack.c.b16 %v817, %v815
    %v854 = vpack.c.b16 %v818, %v816
    %v855 = vpack.c.b16 %v821, %v819
    %v856 = vpack.c.b16 %v822, %v820
    %v857 = vpack.c.b16 %v825, %v823
    %v858 = vpack.c.b16 %v826, %v824
    %891 = vmatprep.subr.bf16.mxu0 %v828
    %892 = vmatpush1.bf16.msra.mxu0 %v827
    %893 = vmatprep.subr.bf16.mxu0 %v830
    %894 = vmatpush1.bf16.msra.mxu0 %v829
    %895 = vmatprep.subr.bf16.mxu0 %v832
    %896 = vmatpush1.bf16.msra.mxu0 %v831
    %897 = vmatprep.subr.bf16.mxu0 %v834
    %898 = vmatpush1.bf16.msra.mxu0 %v833
    %899 = vmatprep.subr.bf16.mxu0 %v836
    %900 = vmatpush1.bf16.msra.mxu0 %v835
    %901 = vmatprep.subr.bf16.mxu0 %v838
    %902 = vmatpush1.bf16.msra.mxu0 %v837
    %903 = vmatprep.subr.bf16.mxu0 %v840
    %904 = vmatpush1.bf16.msra.mxu0 %v839
    %905 = vmatprep.subr.bf16.mxu0 %v842
    %906 = vmatpush1.bf16.msra.mxu0 %v841
    %907 = vmatprep.subr.bf16.mxu0 %v844
    %908 = vmatpush1.bf16.msra.mxu0 %v843
    %909 = vmatprep.subr.bf16.mxu0 %v846
    %910 = vmatpush1.bf16.msra.mxu0 %v845
    %911 = vmatprep.subr.bf16.mxu0 %v848
    %912 = vmatpush1.bf16.msra.mxu0 %v847
    %913 = vmatprep.subr.bf16.mxu0 %v850
    %914 = vmatpush1.bf16.msra.mxu0 %v849
    %915 = vmatprep.subr.bf16.mxu0 %v852
    %916 = vmatpush1.bf16.msra.mxu0 %v851
    %917 = vmatprep.subr.bf16.mxu0 %v854
    %918 = vmatpush1.bf16.msra.mxu0 %v853
    %919 = vmatprep.subr.bf16.mxu0 %v856
    %920 = vmatpush1.bf16.msra.mxu0 %v855
    %921 = vmatprep.subr.bf16.mxu0 %v858
    %922 = vmatpush1.bf16.msra.mxu0 %v857
    %923 = vmatprep.mubr.bf16.mxu0 %v686
    %924 = vmatmul.mubr.bf16.gmra.mrb[0].mxu0 %v685
    %v925 = vpop.f32.mrb[0].mxu0
    %v926 = vadd.f32 %v724, %v925
    %v927 = vpop.f32.mrb[0].mxu0
    %v928 = vadd.f32 %v728, %v927
    %v929 = vpop.f32.mrb[0].mxu0
    %v930 = vadd.f32 %v724, %v929
    %v931 = vpop.f32.mrb[0].mxu0
    %v932 = vadd.f32 %v728, %v931
    %933 = vdwg.mxu0
    %v934 = vpack.c.bf16 %v634, %v634
    %v935 = vpack.c.bf16 %v677, %v677
    %v936 = vpack.c.bf16 %v926, %v926
    %937 = vmatprep.subr.bf16.mxu0 0
    %938 = vmatpush1.bf16.xpose.msra.mxu0 %v935
    %939 = vmatprep.subr.bf16.mxu0 0
    %940 = vmatpush1.bf16.xpose.msra.mxu0 0
    %941 = vmatprep.subr.bf16.mxu0 0
    %942 = vmatpush1.bf16.xpose.msra.mxu0 0
    %943 = vmatprep.subr.bf16.mxu0 0
    %944 = vmatpush1.bf16.xpose.msra.mxu0 0
    %945 = vmatprep.subr.bf16.mxu0 0
    %946 = vmatpush1.bf16.xpose.msra.mxu0 0
    %947 = vmatprep.subr.bf16.mxu0 0
    %948 = vmatpush1.bf16.xpose.msra.mxu0 0
    %949 = vmatprep.subr.bf16.mxu0 0
    %950 = vmatpush1.bf16.xpose.msra.mxu0 0
    %951 = vmatprep.subr.bf16.mxu0 0
    %952 = vmatpush1.bf16.xpose.msra.mxu0 0
    %953 = vmatprep.subr.bf16.mxu0 0
    %954 = vmatpush1.bf16.xpose.msra.mxu0 0
    %955 = vmatprep.subr.bf16.mxu0 0
    %956 = vmatpush1.bf16.xpose.msra.mxu0 0
    %957 = vmatprep.subr.bf16.mxu0 0
    %958 = vmatpush1.bf16.xpose.msra.mxu0 0
    %959 = vmatprep.subr.bf16.mxu0 0
    %960 = vmatpush1.bf16.xpose.msra.mxu0 0
    %961 = vmatprep.subr.bf16.mxu0 0
    %962 = vmatpush1.bf16.xpose.msra.mxu0 0
    %963 = vmatprep.subr.bf16.mxu0 0
    %964 = vmatpush1.bf16.xpose.msra.mxu0 0
    %965 = vmatprep.subr.bf16.mxu0 0
    %966 = vmatpush1.bf16.xpose.msra.mxu0 0
    %967 = vmatprep.subr.bf16.mxu0 0
    %968 = vmatpush1.bf16.xpose.msra.mxu0 0
    %969 = vmatprep.mubr.bf16.mxu0 0
    %970 = vmatmul.mubr.bf16.gmra.mrb[0].mxu0 %v934
    %v971 = vpop.f32.mrb[0].mxu0
    %v972 = vadd.f32 0.0, %v971
    %v973 = vpop.f32.mrb[0].mxu0
    %v974 = vpop.f32.mrb[0].mxu0
    %v975 = vpop.f32.mrb[0].mxu0
    %976 = vdwg.mxu0
    %vm977 = vcmask 64512
    %v978 = vsel %vm977, %v972, -inf
    %979 = vmax.xlane.f32.xlu0 %v978
    %v980 = vpop.xlane.xlu0 %979
    %v981 = vsub.f32 %v972, %v980
    %v982 = vmul.f32 %v981, 1.442695
    %v983 = vpow.pop %v982
    %v984 = vsel %vm977, %v983, 0.0
    %985 = vadd.xlane.f32.xlu0 %v984
    %v986 = vpop.xlane.xlu0 %985
    %v987 = vrcp.pop %v986
    %v988 = vpack.c.bf16 %v983, %v983
    %v990 = vsel %vm977, %v988, 0
    %vm992 = vcmask 1043456
    %v994 = vsel %vm992, %v936, 0
    %996 = vmatprep.subr.bf16.mxu0 0
    %997 = vmatpush1.bf16.msra.mxu0 %v994
    %998 = vmatprep.subr.bf16.mxu0 0
    %999 = vmatpush1.bf16.msra.mxu0 0
    %1000 = vmatprep.subr.bf16.mxu0 0
    %1001 = vmatpush1.bf16.msra.mxu0 0
    %1002 = vmatprep.subr.bf16.mxu0 0
    %1003 = vmatpush1.bf16.msra.mxu0 0
    %1004 = vmatprep.subr.bf16.mxu0 0
    %1005 = vmatpush1.bf16.msra.mxu0 0
    %1006 = vmatprep.subr.bf16.mxu0 0
    %1007 = vmatpush1.bf16.msra.mxu0 0
    %1008 = vmatprep.subr.bf16.mxu0 0
    %1009 = vmatpush1.bf16.msra.mxu0 0
    %1010 = vmatprep.subr.bf16.mxu0 0
    %1011 = vmatpush1.bf16.msra.mxu0 0
    %1012 = vmatprep.subr.bf16.mxu0 0
    %1013 = vmatpush1.bf16.msra.mxu0 0
    %1014 = vmatprep.subr.bf16.mxu0 0
    %1015 = vmatpush1.bf16.msra.mxu0 0
    %1016 = vmatprep.subr.bf16.mxu0 0
    %1017 = vmatpush1.bf16.msra.mxu0 0
    %1018 = vmatprep.subr.bf16.mxu0 0
    %1019 = vmatpush1.bf16.msra.mxu0 0
    %1020 = vmatprep.subr.bf16.mxu0 0
    %1021 = vmatpush1.bf16.msra.mxu0 0
    %1022 = vmatprep.subr.bf16.mxu0 0
    %1023 = vmatpush1.bf16.msra.mxu0 0
    %1024 = vmatprep.subr.bf16.mxu0 0
    %1025 = vmatpush1.bf16.msra.mxu0 0
    %1026 = vmatprep.subr.bf16.mxu0 0
    %1027 = vmatpush1.bf16.msra.mxu0 0
    %1028 = vmatprep.mubr.bf16.mxu0 0
    %1029 = vmatmul.mubr.bf16.gmra.mrb[0].mxu0 %v990
    %v1030 = vpop.f32.mrb[0].mxu0
    %v1031 = vadd.f32 0.0, %v1030
    %v1032 = vpop.f32.mrb[0].mxu0
    %v1033 = vpop.f32.mrb[0].mxu0
    %v1034 = vpop.f32.mrb[0].mxu0
    %1035 = vdwg.mxu0
    %v1036 = vmul.f32 %v1031, %v987
    %v1037 = vpack.c.bf16 %v1036, %v1036
    %1038 = vst [vmem:[#allocation2] sm:$0xf] %v1037
    %v1039 = vpack.c.bf16 %v636, %v636
    %v1040 = vpack.c.bf16 %v679, %v679
    %v1041 = vpack.c.bf16 %v928, %v928
    %1042 = vmatprep.subr.bf16.mxu0 0
    %1043 = vmatpush1.bf16.xpose.msra.mxu0 %v1040
    %1044 = vmatprep.subr.bf16.mxu0 0
    %1045 = vmatpush1.bf16.xpose.msra.mxu0 0
    %1046 = vmatprep.subr.bf16.mxu0 0
    %1047 = vmatpush1.bf16.xpose.msra.mxu0 0
    %1048 = vmatprep.subr.bf16.mxu0 0
    %1049 = vmatpush1.bf16.xpose.msra.mxu0 0
    %1050 = vmatprep.subr.bf16.mxu0 0
    %1051 = vmatpush1.bf16.xpose.msra.mxu0 0
    %1052 = vmatprep.subr.bf16.mxu0 0
    %1053 = vmatpush1.bf16.xpose.msra.mxu0 0
    %1054 = vmatprep.subr.bf16.mxu0 0
    %1055 = vmatpush1.bf16.xpose.msra.mxu0 0
    %1056 = vmatprep.subr.bf16.mxu0 0
    %1057 = vmatpush1.bf16.xpose.msra.mxu0 0
    %1058 = vmatprep.subr.bf16.mxu0 0
    %1059 = vmatpush1.bf16.xpose.msra.mxu0 0
    %1060 = vmatprep.subr.bf16.mxu0 0
    %1061 = vmatpush1.bf16.xpose.msra.mxu0 0
    %1062 = vmatprep.subr.bf16.mxu0 0
    %1063 = vmatpush1.bf16.xpose.msra.mxu0 0
    %1064 = vmatprep.subr.bf16.mxu0 0
    %1065 = vmatpush1.bf16.xpose.msra.mxu0 0
    %1066 = vmatprep.subr.bf16.mxu0 0
    %1067 = vmatpush1.bf16.xpose.msra.mxu0 0
    %1068 = vmatprep.subr.bf16.mxu0 0
    %1069 = vmatpush1.bf16.xpose.msra.mxu0 0
    %1070 = vmatprep.subr.bf16.mxu0 0
    %1071 = vmatpush1.bf16.xpose.msra.mxu0 0
    %1072 = vmatprep.subr.bf16.mxu0 0
    %1073 = vmatpush1.bf16.xpose.msra.mxu0 0
    %1074 = vmatprep.mubr.bf16.mxu0 0
    %1075 = vmatmul.mubr.bf16.gmra.mrb[0].mxu0 %v1039
    %v1076 = vpop.f32.mrb[0].mxu0
    %v1077 = vadd.f32 0.0, %v1076
    %v1078 = vpop.f32.mrb[0].mxu0
    %v1079 = vpop.f32.mrb[0].mxu0
    %v1080 = vpop.f32.mrb[0].mxu0
    %1081 = vdwg.mxu0
    %v1082 = vsel %vm977, %v1077, -inf
    %1083 = vmax.xlane.f32.xlu0 %v1082
    %v1084 = vpop.xlane.xlu0 %1083
    %v1085 = vsub.f32 %v1077, %v1084
    %v1086 = vmul.f32 %v1085, 1.442695
    %v1087 = vpow.pop %v1086
    %v1088 = vsel %vm977, %v1087, 0.0
    %1089 = vadd.xlane.f32.xlu0 %v1088
    %v1090 = vpop.xlane.xlu0 %1089
    %v1091 = vrcp.pop %v1090
    %v1092 = vpack.c.bf16 %v1087, %v1087
    %v1094 = vsel %vm977, %v1092, 0
    %v1097 = vsel %vm992, %v1041, 0
    %1099 = vmatprep.subr.bf16.mxu0 0
    %1100 = vmatpush1.bf16.msra.mxu0 %v1097
    %1101 = vmatprep.subr.bf16.mxu0 0
    %1102 = vmatpush1.bf16.msra.mxu0 0
    %1103 = vmatprep.subr.bf16.mxu0 0
    %1104 = vmatpush1.bf16.msra.mxu0 0
    %1105 = vmatprep.subr.bf16.mxu0 0
    %1106 = vmatpush1.bf16.msra.mxu0 0
    %1107 = vmatprep.subr.bf16.mxu0 0
    %1108 = vmatpush1.bf16.msra.mxu0 0
    %1109 = vmatprep.subr.bf16.mxu0 0
    %1110 = vmatpush1.bf16.msra.mxu0 0
    %1111 = vmatprep.subr.bf16.mxu0 0
    %1112 = vmatpush1.bf16.msra.mxu0 0
    %1113 = vmatprep.subr.bf16.mxu0 0
    %1114 = vmatpush1.bf16.msra.mxu0 0
    %1115 = vmatprep.subr.bf16.mxu0 0
    %1116 = vmatpush1.bf16.msra.mxu0 0
    %1117 = vmatprep.subr.bf16.mxu0 0
    %1118 = vmatpush1.bf16.msra.mxu0 0
    %1119 = vmatprep.subr.bf16.mxu0 0
    %1120 = vmatpush1.bf16.msra.mxu0 0
    %1121 = vmatprep.subr.bf16.mxu0 0
    %1122 = vmatpush1.bf16.msra.mxu0 0
    %1123 = vmatprep.subr.bf16.mxu0 0
    %1124 = vmatpush1.bf16.msra.mxu0 0
    %1125 = vmatprep.subr.bf16.mxu0 0
    %1126 = vmatpush1.bf16.msra.mxu0 0
    %1127 = vmatprep.subr.bf16.mxu0 0
    %1128 = vmatpush1.bf16.msra.mxu0 0
    %1129 = vmatprep.subr.bf16.mxu0 0
    %1130 = vmatpush1.bf16.msra.mxu0 0
    %1131 = vmatprep.mubr.bf16.mxu0 0
    %1132 = vmatmul.mubr.bf16.gmra.mrb[0].mxu0 %v1094
    %v1133 = vpop.f32.mrb[0].mxu0
    %v1134 = vadd.f32 0.0, %v1133
    %v1135 = vpop.f32.mrb[0].mxu0
    %v1136 = vpop.f32.mrb[0].mxu0
    %v1137 = vpop.f32.mrb[0].mxu0
    %1138 = vdwg.mxu0
    %v1139 = vmul.f32 %v1134, %v1091
    %v1140 = vpack.c.bf16 %v1139, %v1139
    %1141 = vst [vmem:[#allocation2 + $0x8] sm:$0xf] %v1140
    %v1142 = vpack.c.bf16 %v638, %v638
    %v1143 = vpack.c.bf16 %v681, %v681
    %v1144 = vpack.c.bf16 %v930, %v930
    %1145 = vmatprep.subr.bf16.mxu0 0
    %1146 = vmatpush1.bf16.xpose.msra.mxu0 %v1143
    %1147 = vmatprep.subr.bf16.mxu0 0
    %1148 = vmatpush1.bf16.xpose.msra.mxu0 0
    %1149 = vmatprep.subr.bf16.mxu0 0
    %1150 = vmatpush1.bf16.xpose.msra.mxu0 0
    %1151 = vmatprep.subr.bf16.mxu0 0
    %1152 = vmatpush1.bf16.xpose.msra.mxu0 0
    %1153 = vmatprep.subr.bf16.mxu0 0
    %1154 = vmatpush1.bf16.xpose.msra.mxu0 0
    %1155 = vmatprep.subr.bf16.mxu0 0
    %1156 = vmatpush1.bf16.xpose.msra.mxu0 0
    %1157 = vmatprep.subr.bf16.mxu0 0
    %1158 = vmatpush1.bf16.xpose.msra.mxu0 0
    %1159 = vmatprep.subr.bf16.mxu0 0
    %1160 = vmatpush1.bf16.xpose.msra.mxu0 0
    %1161 = vmatprep.subr.bf16.mxu0 0
    %1162 = vmatpush1.bf16.xpose.msra.mxu0 0
    %1163 = vmatprep.subr.bf16.mxu0 0
    %1164 = vmatpush1.bf16.xpose.msra.mxu0 0
    %1165 = vmatprep.subr.bf16.mxu0 0
    %1166 = vmatpush1.bf16.xpose.msra.mxu0 0
    %1167 = vmatprep.subr.bf16.mxu0 0
    %1168 = vmatpush1.bf16.xpose.msra.mxu0 0
    %1169 = vmatprep.subr.bf16.mxu0 0
    %1170 = vmatpush1.bf16.xpose.msra.mxu0 0
    %1171 = vmatprep.subr.bf16.mxu0 0
    %1172 = vmatpush1.bf16.xpose.msra.mxu0 0
    %1173 = vmatprep.subr.bf16.mxu0 0
    %1174 = vmatpush1.bf16.xpose.msra.mxu0 0
    %1175 = vmatprep.subr.bf16.mxu0 0
    %1176 = vmatpush1.bf16.xpose.msra.mxu0 0
    %1177 = vmatprep.mubr.bf16.mxu0 0
    %1178 = vmatmul.mubr.bf16.gmra.mrb[0].mxu0 %v1142
    %v1179 = vpop.f32.mrb[0].mxu0
    %v1180 = vadd.f32 0.0, %v1179
    %v1181 = vpop.f32.mrb[0].mxu0
    %v1182 = vpop.f32.mrb[0].mxu0
    %v1183 = vpop.f32.mrb[0].mxu0
    %1184 = vdwg.mxu0
    %v1185 = vsel %vm977, %v1180, -inf
    %1186 = vmax.xlane.f32.xlu0 %v1185
    %v1187 = vpop.xlane.xlu0 %1186
    %v1188 = vsub.f32 %v1180, %v1187
    %v1189 = vmul.f32 %v1188, 1.442695
    %v1190 = vpow.pop %v1189
    %v1191 = vsel %vm977, %v1190, 0.0
    %1192 = vadd.xlane.f32.xlu0 %v1191
    %v1193 = vpop.xlane.xlu0 %1192
    %v1194 = vrcp.pop %v1193
    %v1195 = vpack.c.bf16 %v1190, %v1190
    %v1197 = vsel %vm977, %v1195, 0
    %v1200 = vsel %vm992, %v1144, 0
    %1202 = vmatprep.subr.bf16.mxu0 0
    %1203 = vmatpush1.bf16.msra.mxu0 %v1200
    %1204 = vmatprep.subr.bf16.mxu0 0
    %1205 = vmatpush1.bf16.msra.mxu0 0
    %1206 = vmatprep.subr.bf16.mxu0 0
    %1207 = vmatpush1.bf16.msra.mxu0 0
    %1208 = vmatprep.subr.bf16.mxu0 0
    %1209 = vmatpush1.bf16.msra.mxu0 0
    %1210 = vmatprep.subr.bf16.mxu0 0
    %1211 = vmatpush1.bf16.msra.mxu0 0
    %1212 = vmatprep.subr.bf16.mxu0 0
    %1213 = vmatpush1.bf16.msra.mxu0 0
    %1214 = vmatprep.subr.bf16.mxu0 0
    %1215 = vmatpush1.bf16.msra.mxu0 0
    %1216 = vmatprep.subr.bf16.mxu0 0
    %1217 = vmatpush1.bf16.msra.mxu0 0
    %1218 = vmatprep.subr.bf16.mxu0 0
    %1219 = vmatpush1.bf16.msra.mxu0 0
    %1220 = vmatprep.subr.bf16.mxu0 0
    %1221 = vmatpush1.bf16.msra.mxu0 0
    %1222 = vmatprep.subr.bf16.mxu0 0
    %1223 = vmatpush1.bf16.msra.mxu0 0
    %1224 = vmatprep.subr.bf16.mxu0 0
    %1225 = vmatpush1.bf16.msra.mxu0 0
    %1226 = vmatprep.subr.bf16.mxu0 0
    %1227 = vmatpush1.bf16.msra.mxu0 0
    %1228 = vmatprep.subr.bf16.mxu0 0
    %1229 = vmatpush1.bf16.msra.mxu0 0
    %1230 = vmatprep.subr.bf16.mxu0 0
    %1231 = vmatpush1.bf16.msra.mxu0 0
    %1232 = vmatprep.subr.bf16.mxu0 0
    %1233 = vmatpush1.bf16.msra.mxu0 0
    %1234 = vmatprep.mubr.bf16.mxu0 0
    %1235 = vmatmul.mubr.bf16.gmra.mrb[0].mxu0 %v1197
    %v1236 = vpop.f32.mrb[0].mxu0
    %v1237 = vadd.f32 0.0, %v1236
    %v1238 = vpop.f32.mrb[0].mxu0
    %v1239 = vpop.f32.mrb[0].mxu0
    %v1240 = vpop.f32.mrb[0].mxu0
    %1241 = vdwg.mxu0
    %v1242 = vmul.f32 %v1237, %v1194
    %v1243 = vpack.c.bf16 %v1242, %v1242
    %v1245 = vrot.slane %v1243, 4
    %1247 = vst [vmem:[#allocation2] sm:$0xf0] %v1245
    %v1248 = vpack.c.bf16 %v640, %v640
    %v1249 = vpack.c.bf16 %v683, %v683
    %v1250 = vpack.c.bf16 %v932, %v932
    %1251 = vmatprep.subr.bf16.mxu0 0
    %1252 = vmatpush1.bf16.xpose.msra.mxu0 %v1249
    %1253 = vmatprep.subr.bf16.mxu0 0
    %1254 = vmatpush1.bf16.xpose.msra.mxu0 0
    %1255 = vmatprep.subr.bf16.mxu0 0
    %1256 = vmatpush1.bf16.xpose.msra.mxu0 0
    %1257 = vmatprep.subr.bf16.mxu0 0
    %1258 = vmatpush1.bf16.xpose.msra.mxu0 0
    %1259 = vmatprep.subr.bf16.mxu0 0
    %1260 = vmatpush1.bf16.xpose.msra.mxu0 0
    %1261 = vmatprep.subr.bf16.mxu0 0
    %1262 = vmatpush1.bf16.xpose.msra.mxu0 0
    %1263 = vmatprep.subr.bf16.mxu0 0
    %1264 = vmatpush1.bf16.xpose.msra.mxu0 0
    %1265 = vmatprep.subr.bf16.mxu0 0
    %1266 = vmatpush1.bf16.xpose.msra.mxu0 0
    %1267 = vmatprep.subr.bf16.mxu0 0
    %1268 = vmatpush1.bf16.xpose.msra.mxu0 0
    %1269 = vmatprep.subr.bf16.mxu0 0
    %1270 = vmatpush1.bf16.xpose.msra.mxu0 0
    %1271 = vmatprep.subr.bf16.mxu0 0
    %1272 = vmatpush1.bf16.xpose.msra.mxu0 0
    %1273 = vmatprep.subr.bf16.mxu0 0
    %1274 = vmatpush1.bf16.xpose.msra.mxu0 0
    %1275 = vmatprep.subr.bf16.mxu0 0
    %1276 = vmatpush1.bf16.xpose.msra.mxu0 0
    %1277 = vmatprep.subr.bf16.mxu0 0
    %1278 = vmatpush1.bf16.xpose.msra.mxu0 0
    %1279 = vmatprep.subr.bf16.mxu0 0
    %1280 = vmatpush1.bf16.xpose.msra.mxu0 0
    %1281 = vmatprep.subr.bf16.mxu0 0
    %1282 = vmatpush1.bf16.xpose.msra.mxu0 0
    %1283 = vmatprep.mubr.bf16.mxu0 0
    %1284 = vmatmul.mubr.bf16.gmra.mrb[0].mxu0 %v1248
    %v1285 = vpop.f32.mrb[0].mxu0
    %v1286 = vadd.f32 0.0, %v1285
    %v1287 = vpop.f32.mrb[0].mxu0
    %v1288 = vpop.f32.mrb[0].mxu0
    %v1289 = vpop.f32.mrb[0].mxu0
    %1290 = vdwg.mxu0
    %v1291 = vsel %vm977, %v1286, -inf
    %1292 = vmax.xlane.f32.xlu0 %v1291
    %v1293 = vpop.xlane.xlu0 %1292
    %v1294 = vsub.f32 %v1286, %v1293
    %v1295 = vmul.f32 %v1294, 1.442695
    %v1296 = vpow.pop %v1295
    %v1297 = vsel %vm977, %v1296, 0.0
    %1298 = vadd.xlane.f32.xlu0 %v1297
    %v1299 = vpop.xlane.xlu0 %1298
    %v1300 = vrcp.pop %v1299
    %v1301 = vpack.c.bf16 %v1296, %v1296
    %v1303 = vsel %vm977, %v1301, 0
    %v1306 = vsel %vm992, %v1250, 0
    %1308 = vmatprep.subr.bf16.mxu0 0
    %1309 = vmatpush1.bf16.msra.mxu0 %v1306
    %1310 = vmatprep.subr.bf16.mxu0 0
    %1311 = vmatpush1.bf16.msra.mxu0 0
    %1312 = vmatprep.subr.bf16.mxu0 0
    %1313 = vmatpush1.bf16.msra.mxu0 0
    %1314 = vmatprep.subr.bf16.mxu0 0
    %1315 = vmatpush1.bf16.msra.mxu0 0
    %1316 = vmatprep.subr.bf16.mxu0 0
    %1317 = vmatpush1.bf16.msra.mxu0 0
    %1318 = vmatprep.subr.bf16.mxu0 0
    %1319 = vmatpush1.bf16.msra.mxu0 0
    %1320 = vmatprep.subr.bf16.mxu0 0
    %1321 = vmatpush1.bf16.msra.mxu0 0
    %1322 = vmatprep.subr.bf16.mxu0 0
    %1323 = vmatpush1.bf16.msra.mxu0 0
    %1324 = vmatprep.subr.bf16.mxu0 0
    %1325 = vmatpush1.bf16.msra.mxu0 0
    %1326 = vmatprep.subr.bf16.mxu0 0
    %1327 = vmatpush1.bf16.msra.mxu0 0
    %1328 = vmatprep.subr.bf16.mxu0 0
    %1329 = vmatpush1.bf16.msra.mxu0 0
    %1330 = vmatprep.subr.bf16.mxu0 0
    %1331 = vmatpush1.bf16.msra.mxu0 0
    %1332 = vmatprep.subr.bf16.mxu0 0
    %1333 = vmatpush1.bf16.msra.mxu0 0
    %1334 = vmatprep.subr.bf16.mxu0 0
    %1335 = vmatpush1.bf16.msra.mxu0 0
    %1336 = vmatprep.subr.bf16.mxu0 0
    %1337 = vmatpush1.bf16.msra.mxu0 0
    %1338 = vmatprep.subr.bf16.mxu0 0
    %1339 = vmatpush1.bf16.msra.mxu0 0
    %1340 = vmatprep.mubr.bf16.mxu0 0
    %1341 = vmatmul.mubr.bf16.gmra.mrb[0].mxu0 %v1303
    %v1342 = vpop.f32.mrb[0].mxu0
    %v1343 = vadd.f32 0.0, %v1342
    %v1344 = vpop.f32.mrb[0].mxu0
    %v1345 = vpop.f32.mrb[0].mxu0
    %v1346 = vpop.f32.mrb[0].mxu0
    %1347 = vdwg.mxu0
    %v1348 = vmul.f32 %v1343, %v1300
    %v1349 = vpack.c.bf16 %v1348, %v1348
    %v1351 = vrot.slane %v1349, 4
    %1353 = vst [vmem:[#allocation2 + $0x8] sm:$0xf0] %v1351
    %v1354 = vld [vmem:[#allocation2] sm:$0xff]
    %v1355 = vld [vmem:[#allocation2 + $0x8] sm:$0xff]
    %v1356 = vld [vmem:[#allocation12] sm:$0xff]
    %v1357 = vld [vmem:[#allocation12 + $0x8] sm:$0xff]
    %v1358 = vld [vmem:[#allocation12 + $0x10] sm:$0xff]
    %v1359 = vld [vmem:[#allocation12 + $0x18] sm:$0xff]
    %v1360 = vld [vmem:[#allocation12 + $0x20] sm:$0xff]
    %v1361 = vld [vmem:[#allocation12 + $0x28] sm:$0xff]
    %v1362 = vld [vmem:[#allocation12 + $0x30] sm:$0xff]
    %v1363 = vld [vmem:[#allocation12 + $0x38] sm:$0xff]
    %v1364 = vld [vmem:[#allocation12 + $0x40] sm:$0xff]
    %v1365 = vld [vmem:[#allocation12 + $0x48] sm:$0xff]
    %v1366 = vld [vmem:[#allocation12 + $0x50] sm:$0xff]
    %v1367 = vld [vmem:[#allocation12 + $0x58] sm:$0xff]
    %v1368 = vld [vmem:[#allocation12 + $0x60] sm:$0xff]
    %v1369 = vld [vmem:[#allocation12 + $0x68] sm:$0xff]
    %v1370 = vld [vmem:[#allocation12 + $0x70] sm:$0xff]
    %v1371 = vld [vmem:[#allocation12 + $0x78] sm:$0xff]
    %v1372 = vld [vmem:[#allocation12 + $0x80] sm:$0xff]
    %v1373 = vld [vmem:[#allocation12 + $0x88] sm:$0xff]
    %v1374 = vld [vmem:[#allocation12 + $0x90] sm:$0xff]
    %v1375 = vld [vmem:[#allocation12 + $0x98] sm:$0xff]
    %v1376 = vld [vmem:[#allocation12 + $0xa0] sm:$0xff]
    %v1377 = vld [vmem:[#allocation12 + $0xa8] sm:$0xff]
    %v1378 = vld [vmem:[#allocation12 + $0xb0] sm:$0xff]
    %v1379 = vld [vmem:[#allocation12 + $0xb8] sm:$0xff]
    %v1380 = vld [vmem:[#allocation12 + $0xc0] sm:$0xff]
    %v1381 = vld [vmem:[#allocation12 + $0xc8] sm:$0xff]
    %v1382 = vld [vmem:[#allocation12 + $0xd0] sm:$0xff]
    %v1383 = vld [vmem:[#allocation12 + $0xd8] sm:$0xff]
    %v1384 = vld [vmem:[#allocation12 + $0xe0] sm:$0xff]
    %v1385 = vld [vmem:[#allocation12 + $0xe8] sm:$0xff]
    %v1386 = vld [vmem:[#allocation12 + $0xf0] sm:$0xff]
    %v1387 = vld [vmem:[#allocation12 + $0xf8] sm:$0xff]
    %v1388 = vld [vmem:[%s8] sm:$0x3]
    %v1390 = vlaneseq
    %v1391 = vshrl.u32 %v1390, 7
    %v1392 = vsub.s32 0, %v1391
    %v1393 = vrot.slane %v1388, %v1392
    %v1394 = vlaneseq
    %v1395 = vshrl.u32 %v1394, 7
    %v1396 = vsub.s32 1, %v1395
    %v1397 = vrot.slane %v1388, %v1396
    %v1432 = vunpack.c.l.b16 %v1356
    %v1433 = vunpack.c.h.b16 %v1356
    %v1434 = vunpack.c.l.b16 %v1357
    %v1435 = vunpack.c.h.b16 %v1357
    %v1436 = vunpack.c.l.b16 %v1358
    %v1437 = vunpack.c.h.b16 %v1358
    %v1438 = vunpack.c.l.b16 %v1359
    %v1439 = vunpack.c.h.b16 %v1359
    %v1440 = vunpack.c.l.b16 %v1360
    %v1441 = vunpack.c.h.b16 %v1360
    %v1442 = vunpack.c.l.b16 %v1361
    %v1443 = vunpack.c.h.b16 %v1361
    %v1444 = vunpack.c.l.b16 %v1362
    %v1445 = vunpack.c.h.b16 %v1362
    %v1446 = vunpack.c.l.b16 %v1363
    %v1447 = vunpack.c.h.b16 %v1363
    %v1448 = vunpack.c.l.b16 %v1364
    %v1449 = vunpack.c.h.b16 %v1364
    %v1450 = vunpack.c.l.b16 %v1365
    %v1451 = vunpack.c.h.b16 %v1365
    %v1452 = vunpack.c.l.b16 %v1366
    %v1453 = vunpack.c.h.b16 %v1366
    %v1454 = vunpack.c.l.b16 %v1367
    %v1455 = vunpack.c.h.b16 %v1367
    %v1456 = vunpack.c.l.b16 %v1368
    %v1457 = vunpack.c.h.b16 %v1368
    %v1458 = vunpack.c.l.b16 %v1369
    %v1459 = vunpack.c.h.b16 %v1369
    %v1460 = vunpack.c.l.b16 %v1370
    %v1461 = vunpack.c.h.b16 %v1370
    %v1462 = vunpack.c.l.b16 %v1371
    %v1463 = vunpack.c.h.b16 %v1371
    %v1464 = vunpack.c.l.b16 %v1372
    %v1465 = vunpack.c.h.b16 %v1372
    %v1466 = vunpack.c.l.b16 %v1373
    %v1467 = vunpack.c.h.b16 %v1373
    %v1468 = vunpack.c.l.b16 %v1374
    %v1469 = vunpack.c.h.b16 %v1374
    %v1470 = vunpack.c.l.b16 %v1375
    %v1471 = vunpack.c.h.b16 %v1375
    %v1472 = vunpack.c.l.b16 %v1376
    %v1473 = vunpack.c.h.b16 %v1376
    %v1474 = vunpack.c.l.b16 %v1377
    %v1475 = vunpack.c.h.b16 %v1377
    %v1476 = vunpack.c.l.b16 %v1378
    %v1477 = vunpack.c.h.b16 %v1378
    %v1478 = vunpack.c.l.b16 %v1379
    %v1479 = vunpack.c.h.b16 %v1379
    %v1480 = vunpack.c.l.b16 %v1380
    %v1481 = vunpack.c.h.b16 %v1380
    %v1482 = vunpack.c.l.b16 %v1381
    %v1483 = vunpack.c.h.b16 %v1381
    %v1484 = vunpack.c.l.b16 %v1382
    %v1485 = vunpack.c.h.b16 %v1382
    %v1486 = vunpack.c.l.b16 %v1383
    %v1487 = vunpack.c.h.b16 %v1383
    %v1488 = vunpack.c.l.b16 %v1384
    %v1489 = vunpack.c.h.b16 %v1384
    %v1490 = vunpack.c.l.b16 %v1385
    %v1491 = vunpack.c.h.b16 %v1385
    %v1492 = vunpack.c.l.b16 %v1386
    %v1493 = vunpack.c.h.b16 %v1386
    %v1494 = vunpack.c.l.b16 %v1387
    %v1495 = vunpack.c.h.b16 %v1387
    %v1496 = vpack.c.b16 %v1434, %v1432
    %v1497 = vpack.c.b16 %v1435, %v1433
    %v1498 = vpack.c.b16 %v1438, %v1436
    %v1499 = vpack.c.b16 %v1439, %v1437
    %v1500 = vpack.c.b16 %v1442, %v1440
    %v1501 = vpack.c.b16 %v1443, %v1441
    %v1502 = vpack.c.b16 %v1446, %v1444
    %v1503 = vpack.c.b16 %v1447, %v1445
    %v1504 = vpack.c.b16 %v1450, %v1448
    %v1505 = vpack.c.b16 %v1451, %v1449
    %v1506 = vpack.c.b16 %v1454, %v1452
    %v1507 = vpack.c.b16 %v1455, %v1453
    %v1508 = vpack.c.b16 %v1458, %v1456
    %v1509 = vpack.c.b16 %v1459, %v1457
    %v1510 = vpack.c.b16 %v1462, %v1460
    %v1511 = vpack.c.b16 %v1463, %v1461
    %v1512 = vpack.c.b16 %v1466, %v1464
    %v1513 = vpack.c.b16 %v1467, %v1465
    %v1514 = vpack.c.b16 %v1470, %v1468
    %v1515 = vpack.c.b16 %v1471, %v1469
    %v1516 = vpack.c.b16 %v1474, %v1472
    %v1517 = vpack.c.b16 %v1475, %v1473
    %v1518 = vpack.c.b16 %v1478, %v1476
    %v1519 = vpack.c.b16 %v1479, %v1477
    %v1520 = vpack.c.b16 %v1482, %v1480
    %v1521 = vpack.c.b16 %v1483, %v1481
    %v1522 = vpack.c.b16 %v1486, %v1484
    %v1523 = vpack.c.b16 %v1487, %v1485
    %v1524 = vpack.c.b16 %v1490, %v1488
    %v1525 = vpack.c.b16 %v1491, %v1489
    %v1526 = vpack.c.b16 %v1494, %v1492
    %v1527 = vpack.c.b16 %v1495, %v1493
    %1560 = vmatprep.subr.bf16.mxu0 %v1497
    %1561 = vmatpush1.bf16.msra.mxu0 %v1496
    %1562 = vmatprep.subr.bf16.mxu0 %v1499
    %1563 = vmatpush1.bf16.msra.mxu0 %v1498
    %1564 = vmatprep.subr.bf16.mxu0 %v1501
    %1565 = vmatpush1.bf16.msra.mxu0 %v1500
    %1566 = vmatprep.subr.bf16.mxu0 %v1503
    %1567 = vmatpush1.bf16.msra.mxu0 %v1502
    %1568 = vmatprep.subr.bf16.mxu0 %v1505
    %1569 = vmatpush1.bf16.msra.mxu0 %v1504
    %1570 = vmatprep.subr.bf16.mxu0 %v1507
    %1571 = vmatpush1.bf16.msra.mxu0 %v1506
    %1572 = vmatprep.subr.bf16.mxu0 %v1509
    %1573 = vmatpush1.bf16.msra.mxu0 %v1508
    %1574 = vmatprep.subr.bf16.mxu0 %v1511
    %1575 = vmatpush1.bf16.msra.mxu0 %v1510
    %1576 = vmatprep.subr.bf16.mxu0 %v1513
    %1577 = vmatpush1.bf16.msra.mxu0 %v1512
    %1578 = vmatprep.subr.bf16.mxu0 %v1515
    %1579 = vmatpush1.bf16.msra.mxu0 %v1514
    %1580 = vmatprep.subr.bf16.mxu0 %v1517
    %1581 = vmatpush1.bf16.msra.mxu0 %v1516
    %1582 = vmatprep.subr.bf16.mxu0 %v1519
    %1583 = vmatpush1.bf16.msra.mxu0 %v1518
    %1584 = vmatprep.subr.bf16.mxu0 %v1521
    %1585 = vmatpush1.bf16.msra.mxu0 %v1520
    %1586 = vmatprep.subr.bf16.mxu0 %v1523
    %1587 = vmatpush1.bf16.msra.mxu0 %v1522
    %1588 = vmatprep.subr.bf16.mxu0 %v1525
    %1589 = vmatpush1.bf16.msra.mxu0 %v1524
    %1590 = vmatprep.subr.bf16.mxu0 %v1527
    %1591 = vmatpush1.bf16.msra.mxu0 %v1526
    %1592 = vmatprep.mubr.bf16.mxu0 %v1355
    %1593 = vmatmul.mubr.bf16.gmra.mrb[0].mxu0 %v1354
    %v1594 = vpop.f32.mrb[0].mxu0
    %v1595 = vadd.f32 %v1393, %v1594
    %v1596 = vpop.f32.mrb[0].mxu0
    %v1597 = vadd.f32 %v1397, %v1596
    %v1598 = vpop.f32.mrb[0].mxu0
    %v1599 = vadd.f32 %v1393, %v1598
    %v1600 = vpop.f32.mrb[0].mxu0
    %v1601 = vadd.f32 %v1397, %v1600
    %1602 = vdwg.mxu0
    %v1603 = vadd.f32 %v167, %v1595
    %v1604 = vadd.f32 %v168, %v1597
    %v1605 = vadd.f32 %v169, %v1599
    %v1606 = vadd.f32 %v170, %v1601
    %v1607 = vadd.f32 %v1603, %v1604
    %1608 = vadd.xlane.f32.xlu0 %v1607
    %v1609 = vpop.xlane.xlu0 %1608
    %v1610 = vadd.f32 %v1605, %v1606
    %1611 = vadd.xlane.f32.xlu0 %v1610
    %v1612 = vpop.xlane.xlu0 %1611
    %v1613 = vrcp.pop 256.0
    %v1614 = vmul.f32 %v1609, %v1613
    %v1615 = vmul.f32 %v1612, %v1613
    %v1616 = vsub.f32 %v1603, %v1614
    %v1617 = vsub.f32 %v1604, %v1614
    %v1618 = vsub.f32 %v1605, %v1615
    %v1619 = vsub.f32 %v1606, %v1615
    %v1620 = vmul.f32 %v1616, %v1616
    %v1621 = vmul.f32 %v1617, %v1617
    %v1622 = vmul.f32 %v1618, %v1618
    %v1623 = vmul.f32 %v1619, %v1619
    %v1624 = vadd.f32 %v1620, %v1621
    %1625 = vadd.xlane.f32.xlu0 %v1624
    %v1626 = vpop.xlane.xlu0 %1625
    %v1627 = vadd.f32 %v1622, %v1623
    %1628 = vadd.xlane.f32.xlu0 %v1627
    %v1629 = vpop.xlane.xlu0 %1628
    %v1630 = vmul.f32 %v1626, %v1613
    %v1631 = vmul.f32 %v1629, %v1613
    %v1632 = vadd.f32 %v1630, 1e-05
    %v1633 = vadd.f32 %v1631, 1e-05
    %v1634 = vrsqrt.pop %v1632
    %v1635 = vrsqrt.pop %v1633
    %v1636 = vmul.f32 %v1616, %v1634
    %v1637 = vmul.f32 %v1617, %v1634
    %v1638 = vmul.f32 %v1618, %v1635
    %v1639 = vmul.f32 %v1619, %v1635
    %v1640 = vld [vmem:[%s9] sm:$0x3]
    %v1642 = vlaneseq
    %v1643 = vshrl.u32 %v1642, 7
    %v1644 = vsub.s32 0, %v1643
    %v1645 = vrot.slane %v1640, %v1644
    %v1646 = vlaneseq
    %v1647 = vshrl.u32 %v1646, 7
    %v1648 = vsub.s32 1, %v1647
    %v1649 = vrot.slane %v1640, %v1648
    %v1652 = vmul.f32 %v1636, %v1645
    %v1653 = vmul.f32 %v1637, %v1649
    %v1654 = vmul.f32 %v1638, %v1645
    %v1655 = vmul.f32 %v1639, %v1649
    %v1656 = vld [vmem:[%s10] sm:$0x3]
    %v1658 = vlaneseq
    %v1659 = vshrl.u32 %v1658, 7
    %v1660 = vsub.s32 0, %v1659
    %v1661 = vrot.slane %v1656, %v1660
    %v1662 = vlaneseq
    %v1663 = vshrl.u32 %v1662, 7
    %v1664 = vsub.s32 1, %v1663
    %v1665 = vrot.slane %v1656, %v1664
    %v1668 = vadd.f32 %v1652, %v1661
    %v1669 = vadd.f32 %v1653, %v1665
    %v1670 = vadd.f32 %v1654, %v1661
    %v1671 = vadd.f32 %v1655, %v1665
    %v1672 = vpack.c.bf16 %v1670, %v1668
    %v1673 = vpack.c.bf16 %v1671, %v1669
    %v1674 = vld [vmem:[#allocation14] sm:$0xff]
    %v1675 = vld [vmem:[#allocation14 + $0x8] sm:$0xff]
    %v1676 = vld [vmem:[#allocation14 + $0x10] sm:$0xff]
    %v1677 = vld [vmem:[#allocation14 + $0x18] sm:$0xff]
    %v1678 = vld [vmem:[#allocation14 + $0x20] sm:$0xff]
    %v1679 = vld [vmem:[#allocation14 + $0x28] sm:$0xff]
    %v1680 = vld [vmem:[#allocation14 + $0x30] sm:$0xff]
    %v1681 = vld [vmem:[#allocation14 + $0x38] sm:$0xff]
    %v1682 = vld [vmem:[#allocation14 + $0x40] sm:$0xff]
    %v1683 = vld [vmem:[#allocation14 + $0x48] sm:$0xff]
    %v1684 = vld [vmem:[#allocation14 + $0x50] sm:$0xff]
    %v1685 = vld [vmem:[#allocation14 + $0x58] sm:$0xff]
    %v1686 = vld [vmem:[#allocation14 + $0x60] sm:$0xff]
    %v1687 = vld [vmem:[#allocation14 + $0x68] sm:$0xff]
    %v1688 = vld [vmem:[#allocation14 + $0x70] sm:$0xff]
    %v1689 = vld [vmem:[#allocation14 + $0x78] sm:$0xff]
    %v1690 = vld [vmem:[#allocation14 + $0x80] sm:$0xff]
    %v1691 = vld [vmem:[#allocation14 + $0x88] sm:$0xff]
    %v1692 = vld [vmem:[#allocation14 + $0x90] sm:$0xff]
    %v1693 = vld [vmem:[#allocation14 + $0x98] sm:$0xff]
    %v1694 = vld [vmem:[#allocation14 + $0xa0] sm:$0xff]
    %v1695 = vld [vmem:[#allocation14 + $0xa8] sm:$0xff]
    %v1696 = vld [vmem:[#allocation14 + $0xb0] sm:$0xff]
    %v1697 = vld [vmem:[#allocation14 + $0xb8] sm:$0xff]
    %v1698 = vld [vmem:[#allocation14 + $0xc0] sm:$0xff]
    %v1699 = vld [vmem:[#allocation14 + $0xc8] sm:$0xff]
    %v1700 = vld [vmem:[#allocation14 + $0xd0] sm:$0xff]
    %v1701 = vld [vmem:[#allocation14 + $0xd8] sm:$0xff]
    %v1702 = vld [vmem:[#allocation14 + $0xe0] sm:$0xff]
    %v1703 = vld [vmem:[#allocation14 + $0xe8] sm:$0xff]
    %v1704 = vld [vmem:[#allocation14 + $0xf0] sm:$0xff]
    %v1705 = vld [vmem:[#allocation14 + $0xf8] sm:$0xff]
    %v1706 = vld [vmem:[#allocation14 + $0x100] sm:$0xff]
    %v1707 = vld [vmem:[#allocation14 + $0x108] sm:$0xff]
    %v1708 = vld [vmem:[#allocation14 + $0x110] sm:$0xff]
    %v1709 = vld [vmem:[#allocation14 + $0x118] sm:$0xff]
    %v1710 = vld [vmem:[#allocation14 + $0x120] sm:$0xff]
    %v1711 = vld [vmem:[#allocation14 + $0x128] sm:$0xff]
    %v1712 = vld [vmem:[#allocation14 + $0x130] sm:$0xff]
    %v1713 = vld [vmem:[#allocation14 + $0x138] sm:$0xff]
    %v1714 = vld [vmem:[#allocation14 + $0x140] sm:$0xff]
    %v1715 = vld [vmem:[#allocation14 + $0x148] sm:$0xff]
    %v1716 = vld [vmem:[#allocation14 + $0x150] sm:$0xff]
    %v1717 = vld [vmem:[#allocation14 + $0x158] sm:$0xff]
    %v1718 = vld [vmem:[#allocation14 + $0x160] sm:$0xff]
    %v1719 = vld [vmem:[#allocation14 + $0x168] sm:$0xff]
    %v1720 = vld [vmem:[#allocation14 + $0x170] sm:$0xff]
    %v1721 = vld [vmem:[#allocation14 + $0x178] sm:$0xff]
    %v1722 = vld [vmem:[#allocation14 + $0x180] sm:$0xff]
    %v1723 = vld [vmem:[#allocation14 + $0x188] sm:$0xff]
    %v1724 = vld [vmem:[#allocation14 + $0x190] sm:$0xff]
    %v1725 = vld [vmem:[#allocation14 + $0x198] sm:$0xff]
    %v1726 = vld [vmem:[#allocation14 + $0x1a0] sm:$0xff]
    %v1727 = vld [vmem:[#allocation14 + $0x1a8] sm:$0xff]
    %v1728 = vld [vmem:[#allocation14 + $0x1b0] sm:$0xff]
    %v1729 = vld [vmem:[#allocation14 + $0x1b8] sm:$0xff]
    %v1730 = vld [vmem:[#allocation14 + $0x1c0] sm:$0xff]
    %v1731 = vld [vmem:[#allocation14 + $0x1c8] sm:$0xff]
    %v1732 = vld [vmem:[#allocation14 + $0x1d0] sm:$0xff]
    %v1733 = vld [vmem:[#allocation14 + $0x1d8] sm:$0xff]
    %v1734 = vld [vmem:[#allocation14 + $0x1e0] sm:$0xff]
    %v1735 = vld [vmem:[#allocation14 + $0x1e8] sm:$0xff]
    %v1736 = vld [vmem:[#allocation14 + $0x1f0] sm:$0xff]
    %v1737 = vld [vmem:[#allocation14 + $0x1f8] sm:$0xff]
    %v1738 = vld [vmem:[#allocation14 + $0x200] sm:$0xff]
    %v1739 = vld [vmem:[#allocation14 + $0x208] sm:$0xff]
    %v1740 = vld [vmem:[#allocation14 + $0x210] sm:$0xff]
    %v1741 = vld [vmem:[#allocation14 + $0x218] sm:$0xff]
    %v1742 = vld [vmem:[#allocation14 + $0x220] sm:$0xff]
    %v1743 = vld [vmem:[#allocation14 + $0x228] sm:$0xff]
    %v1744 = vld [vmem:[#allocation14 + $0x230] sm:$0xff]
    %v1745 = vld [vmem:[#allocation14 + $0x238] sm:$0xff]
    %v1746 = vld [vmem:[#allocation14 + $0x240] sm:$0xff]
    %v1747 = vld [vmem:[#allocation14 + $0x248] sm:$0xff]
    %v1748 = vld [vmem:[#allocation14 + $0x250] sm:$0xff]
    %v1749 = vld [vmem:[#allocation14 + $0x258] sm:$0xff]
    %v1750 = vld [vmem:[#allocation14 + $0x260] sm:$0xff]
    %v1751 = vld [vmem:[#allocation14 + $0x268] sm:$0xff]
    %v1752 = vld [vmem:[#allocation14 + $0x270] sm:$0xff]
    %v1753 = vld [vmem:[#allocation14 + $0x278] sm:$0xff]
    %v1754 = vld [vmem:[#allocation14 + $0x280] sm:$0xff]
    %v1755 = vld [vmem:[#allocation14 + $0x288] sm:$0xff]
    %v1756 = vld [vmem:[#allocation14 + $0x290] sm:$0xff]
    %v1757 = vld [vmem:[#allocation14 + $0x298] sm:$0xff]
    %v1758 = vld [vmem:[#allocation14 + $0x2a0] sm:$0xff]
    %v1759 = vld [vmem:[#allocation14 + $0x2a8] sm:$0xff]
    %v1760 = vld [vmem:[#allocation14 + $0x2b0] sm:$0xff]
    %v1761 = vld [vmem:[#allocation14 + $0x2b8] sm:$0xff]
    %v1762 = vld [vmem:[#allocation14 + $0x2c0] sm:$0xff]
    %v1763 = vld [vmem:[#allocation14 + $0x2c8] sm:$0xff]
    %v1764 = vld [vmem:[#allocation14 + $0x2d0] sm:$0xff]
    %v1765 = vld [vmem:[#allocation14 + $0x2d8] sm:$0xff]
    %v1766 = vld [vmem:[#allocation14 + $0x2e0] sm:$0xff]
    %v1767 = vld [vmem:[#allocation14 + $0x2e8] sm:$0xff]
    %v1768 = vld [vmem:[#allocation14 + $0x2f0] sm:$0xff]
    %v1769 = vld [vmem:[#allocation14 + $0x2f8] sm:$0xff]
    %v1770 = vld [vmem:[#allocation14 + $0x300] sm:$0xff]
    %v1771 = vld [vmem:[#allocation14 + $0x308] sm:$0xff]
    %v1772 = vld [vmem:[#allocation14 + $0x310] sm:$0xff]
    %v1773 = vld [vmem:[#allocation14 + $0x318] sm:$0xff]
    %v1774 = vld [vmem:[#allocation14 + $0x320] sm:$0xff]
    %v1775 = vld [vmem:[#allocation14 + $0x328] sm:$0xff]
    %v1776 = vld [vmem:[#allocation14 + $0x330] sm:$0xff]
    %v1777 = vld [vmem:[#allocation14 + $0x338] sm:$0xff]
    %v1778 = vld [vmem:[#allocation14 + $0x340] sm:$0xff]
    %v1779 = vld [vmem:[#allocation14 + $0x348] sm:$0xff]
    %v1780 = vld [vmem:[#allocation14 + $0x350] sm:$0xff]
    %v1781 = vld [vmem:[#allocation14 + $0x358] sm:$0xff]
    %v1782 = vld [vmem:[#allocation14 + $0x360] sm:$0xff]
    %v1783 = vld [vmem:[#allocation14 + $0x368] sm:$0xff]
    %v1784 = vld [vmem:[#allocation14 + $0x370] sm:$0xff]
    %v1785 = vld [vmem:[#allocation14 + $0x378] sm:$0xff]
    %v1786 = vld [vmem:[#allocation14 + $0x380] sm:$0xff]
    %v1787 = vld [vmem:[#allocation14 + $0x388] sm:$0xff]
    %v1788 = vld [vmem:[#allocation14 + $0x390] sm:$0xff]
    %v1789 = vld [vmem:[#allocation14 + $0x398] sm:$0xff]
    %v1790 = vld [vmem:[#allocation14 + $0x3a0] sm:$0xff]
    %v1791 = vld [vmem:[#allocation14 + $0x3a8] sm:$0xff]
    %v1792 = vld [vmem:[#allocation14 + $0x3b0] sm:$0xff]
    %v1793 = vld [vmem:[#allocation14 + $0x3b8] sm:$0xff]
    %v1794 = vld [vmem:[#allocation14 + $0x3c0] sm:$0xff]
    %v1795 = vld [vmem:[#allocation14 + $0x3c8] sm:$0xff]
    %v1796 = vld [vmem:[#allocation14 + $0x3d0] sm:$0xff]
    %v1797 = vld [vmem:[#allocation14 + $0x3d8] sm:$0xff]
    %v1798 = vld [vmem:[#allocation14 + $0x3e0] sm:$0xff]
    %v1799 = vld [vmem:[#allocation14 + $0x3e8] sm:$0xff]
    %v1800 = vld [vmem:[#allocation14 + $0x3f0] sm:$0xff]
    %v1801 = vld [vmem:[#allocation14 + $0x3f8] sm:$0xff]
    %v1802 = vld [vmem:[%s12] sm:$0xff]
    %v1804 = vlaneseq
    %v1805 = vshrl.u32 %v1804, 7
    %v1806 = vsub.s32 0, %v1805
    %v1807 = vrot.slane %v1802, %v1806
    %v1808 = vlaneseq
    %v1809 = vshrl.u32 %v1808, 7
    %v1810 = vsub.s32 1, %v1809
    %v1811 = vrot.slane %v1802, %v1810
    %v1812 = vlaneseq
    %v1813 = vshrl.u32 %v1812, 7
    %v1814 = vsub.s32 2, %v1813
    %v1815 = vrot.slane %v1802, %v1814
    %v1816 = vlaneseq
    %v1817 = vshrl.u32 %v1816, 7
    %v1818 = vsub.s32 3, %v1817
    %v1819 = vrot.slane %v1802, %v1818
    %v1820 = vlaneseq
    %v1821 = vshrl.u32 %v1820, 7
    %v1822 = vsub.s32 4, %v1821
    %v1823 = vrot.slane %v1802, %v1822
    %v1824 = vlaneseq
    %v1825 = vshrl.u32 %v1824, 7
    %v1826 = vsub.s32 5, %v1825
    %v1827 = vrot.slane %v1802, %v1826
    %v1828 = vlaneseq
    %v1829 = vshrl.u32 %v1828, 7
    %v1830 = vsub.s32 6, %v1829
    %v1831 = vrot.slane %v1802, %v1830
    %v1832 = vlaneseq
    %v1833 = vshrl.u32 %v1832, 7
    %v1834 = vsub.s32 7, %v1833
    %v1835 = vrot.slane %v1802, %v1834
    %v1972 = vunpack.c.l.b16 %v1674
    %v1973 = vunpack.c.h.b16 %v1674
    %v1974 = vunpack.c.l.b16 %v1675
    %v1975 = vunpack.c.h.b16 %v1675
    %v1976 = vunpack.c.l.b16 %v1676
    %v1977 = vunpack.c.h.b16 %v1676
    %v1978 = vunpack.c.l.b16 %v1677
    %v1979 = vunpack.c.h.b16 %v1677
    %v1980 = vunpack.c.l.b16 %v1678
    %v1981 = vunpack.c.h.b16 %v1678
    %v1982 = vunpack.c.l.b16 %v1679
    %v1983 = vunpack.c.h.b16 %v1679
    %v1984 = vunpack.c.l.b16 %v1680
    %v1985 = vunpack.c.h.b16 %v1680
    %v1986 = vunpack.c.l.b16 %v1681
    %v1987 = vunpack.c.h.b16 %v1681
    %v1988 = vunpack.c.l.b16 %v1682
    %v1989 = vunpack.c.h.b16 %v1682
    %v1990 = vunpack.c.l.b16 %v1683
    %v1991 = vunpack.c.h.b16 %v1683
    %v1992 = vunpack.c.l.b16 %v1684
    %v1993 = vunpack.c.h.b16 %v1684
    %v1994 = vunpack.c.l.b16 %v1685
    %v1995 = vunpack.c.h.b16 %v1685
    %v1996 = vunpack.c.l.b16 %v1686
    %v1997 = vunpack.c.h.b16 %v1686
    %v1998 = vunpack.c.l.b16 %v1687
    %v1999 = vunpack.c.h.b16 %v1687
    %v2000 = vunpack.c.l.b16 %v1688
    %v2001 = vunpack.c.h.b16 %v1688
    %v2002 = vunpack.c.l.b16 %v1689
    %v2003 = vunpack.c.h.b16 %v1689
    %v2004 = vunpack.c.l.b16 %v1690
    %v2005 = vunpack.c.h.b16 %v1690
    %v2006 = vunpack.c.l.b16 %v1691
    %v2007 = vunpack.c.h.b16 %v1691
    %v2008 = vunpack.c.l.b16 %v1692
    %v2009 = vunpack.c.h.b16 %v1692
    %v2010 = vunpack.c.l.b16 %v1693
    %v2011 = vunpack.c.h.b16 %v1693
    %v2012 = vunpack.c.l.b16 %v1694
    %v2013 = vunpack.c.h.b16 %v1694
    %v2014 = vunpack.c.l.b16 %v1695
    %v2015 = vunpack.c.h.b16 %v1695
    %v2016 = vunpack.c.l.b16 %v1696
    %v2017 = vunpack.c.h.b16 %v1696
    %v2018 = vunpack.c.l.b16 %v1697
    %v2019 = vunpack.c.h.b16 %v1697
    %v2020 = vunpack.c.l.b16 %v1698
    %v2021 = vunpack.c.h.b16 %v1698
    %v2022 = vunpack.c.l.b16 %v1699
    %v2023 = vunpack.c.h.b16 %v1699
    %v2024 = vunpack.c.l.b16 %v1700
    %v2025 = vunpack.c.h.b16 %v1700
    %v2026 = vunpack.c.l.b16 %v1701
    %v2027 = vunpack.c.h.b16 %v1701
    %v2028 = vunpack.c.l.b16 %v1702
    %v2029 = vunpack.c.h.b16 %v1702
    %v2030 = vunpack.c.l.b16 %v1703
    %v2031 = vunpack.c.h.b16 %v1703
    %v2032 = vunpack.c.l.b16 %v1704
    %v2033 = vunpack.c.h.b16 %v1704
    %v2034 = vunpack.c.l.b16 %v1705
    %v2035 = vunpack.c.h.b16 %v1705
    %v2036 = vunpack.c.l.b16 %v1706
    %v2037 = vunpack.c.h.b16 %v1706
    %v2038 = vunpack.c.l.b16 %v1707
    %v2039 = vunpack.c.h.b16 %v1707
    %v2040 = vunpack.c.l.b16 %v1708
    %v2041 = vunpack.c.h.b16 %v1708
    %v2042 = vunpack.c.l.b16 %v1709
    %v2043 = vunpack.c.h.b16 %v1709
    %v2044 = vunpack.c.l.b16 %v1710
    %v2045 = vunpack.c.h.b16 %v1710
    %v2046 = vunpack.c.l.b16 %v1711
    %v2047 = vunpack.c.h.b16 %v1711
    %v2048 = vunpack.c.l.b16 %v1712
    %v2049 = vunpack.c.h.b16 %v1712
    %v2050 = vunpack.c.l.b16 %v1713
    %v2051 = vunpack.c.h.b16 %v1713
    %v2052 = vunpack.c.l.b16 %v1714
    %v2053 = vunpack.c.h.b16 %v1714
    %v2054 = vunpack.c.l.b16 %v1715
    %v2055 = vunpack.c.h.b16 %v1715
    %v2056 = vunpack.c.l.b16 %v1716
    %v2057 = vunpack.c.h.b16 %v1716
    %v2058 = vunpack.c.l.b16 %v1717
    %v2059 = vunpack.c.h.b16 %v1717
    %v2060 = vunpack.c.l.b16 %v1718
    %v2061 = vunpack.c.h.b16 %v1718
    %v2062 = vunpack.c.l.b16 %v1719
    %v2063 = vunpack.c.h.b16 %v1719
    %v2064 = vunpack.c.l.b16 %v1720
    %v2065 = vunpack.c.h.b16 %v1720
    %v2066 = vunpack.c.l.b16 %v1721
    %v2067 = vunpack.c.h.b16 %v1721
    %v2068 = vunpack.c.l.b16 %v1722
    %v2069 = vunpack.c.h.b16 %v1722
    %v2070 = vunpack.c.l.b16 %v1723
    %v2071 = vunpack.c.h.b16 %v1723
    %v2072 = vunpack.c.l.b16 %v1724
    %v2073 = vunpack.c.h.b16 %v1724
    %v2074 = vunpack.c.l.b16 %v1725
    %v2075 = vunpack.c.h.b16 %v1725
    %v2076 = vunpack.c.l.b16 %v1726
    %v2077 = vunpack.c.h.b16 %v1726
    %v2078 = vunpack.c.l.b16 %v1727
    %v2079 = vunpack.c.h.b16 %v1727
    %v2080 = vunpack.c.l.b16 %v1728
    %v2081 = vunpack.c.h.b16 %v1728
    %v2082 = vunpack.c.l.b16 %v1729
    %v2083 = vunpack.c.h.b16 %v1729
    %v2084 = vunpack.c.l.b16 %v1730
    %v2085 = vunpack.c.h.b16 %v1730
    %v2086 = vunpack.c.l.b16 %v1731
    %v2087 = vunpack.c.h.b16 %v1731
    %v2088 = vunpack.c.l.b16 %v1732
    %v2089 = vunpack.c.h.b16 %v1732
    %v2090 = vunpack.c.l.b16 %v1733
    %v2091 = vunpack.c.h.b16 %v1733
    %v2092 = vunpack.c.l.b16 %v1734
    %v2093 = vunpack.c.h.b16 %v1734
    %v2094 = vunpack.c.l.b16 %v1735
    %v2095 = vunpack.c.h.b16 %v1735
    %v2096 = vunpack.c.l.b16 %v1736
    %v2097 = vunpack.c.h.b16 %v1736
    %v2098 = vunpack.c.l.b16 %v1737
    %v2099 = vunpack.c.h.b16 %v1737
    %v2100 = vunpack.c.l.b16 %v1738
    %v2101 = vunpack.c.h.b16 %v1738
    %v2102 = vunpack.c.l.b16 %v1739
    %v2103 = vunpack.c.h.b16 %v1739
    %v2104 = vunpack.c.l.b16 %v1740
    %v2105 = vunpack.c.h.b16 %v1740
    %v2106 = vunpack.c.l.b16 %v1741
    %v2107 = vunpack.c.h.b16 %v1741
    %v2108 = vunpack.c.l.b16 %v1742
    %v2109 = vunpack.c.h.b16 %v1742
    %v2110 = vunpack.c.l.b16 %v1743
    %v2111 = vunpack.c.h.b16 %v1743
    %v2112 = vunpack.c.l.b16 %v1744
    %v2113 = vunpack.c.h.b16 %v1744
    %v2114 = vunpack.c.l.b16 %v1745
    %v2115 = vunpack.c.h.b16 %v1745
    %v2116 = vunpack.c.l.b16 %v1746
    %v2117 = vunpack.c.h.b16 %v1746
    %v2118 = vunpack.c.l.b16 %v1747
    %v2119 = vunpack.c.h.b16 %v1747
    %v2120 = vunpack.c.l.b16 %v1748
    %v2121 = vunpack.c.h.b16 %v1748
    %v2122 = vunpack.c.l.b16 %v1749
    %v2123 = vunpack.c.h.b16 %v1749
    %v2124 = vunpack.c.l.b16 %v1750
    %v2125 = vunpack.c.h.b16 %v1750
    %v2126 = vunpack.c.l.b16 %v1751
    %v2127 = vunpack.c.h.b16 %v1751
    %v2128 = vunpack.c.l.b16 %v1752
    %v2129 = vunpack.c.h.b16 %v1752
    %v2130 = vunpack.c.l.b16 %v1753
    %v2131 = vunpack.c.h.b16 %v1753
    %v2132 = vunpack.c.l.b16 %v1754
    %v2133 = vunpack.c.h.b16 %v1754
    %v2134 = vunpack.c.l.b16 %v1755
    %v2135 = vunpack.c.h.b16 %v1755
    %v2136 = vunpack.c.l.b16 %v1756
    %v2137 = vunpack.c.h.b16 %v1756
    %v2138 = vunpack.c.l.b16 %v1757
    %v2139 = vunpack.c.h.b16 %v1757
    %v2140 = vunpack.c.l.b16 %v1758
    %v2141 = vunpack.c.h.b16 %v1758
    %v2142 = vunpack.c.l.b16 %v1759
    %v2143 = vunpack.c.h.b16 %v1759
    %v2144 = vunpack.c.l.b16 %v1760
    %v2145 = vunpack.c.h.b16 %v1760
    %v2146 = vunpack.c.l.b16 %v1761
    %v2147 = vunpack.c.h.b16 %v1761
    %v2148 = vunpack.c.l.b16 %v1762
    %v2149 = vunpack.c.h.b16 %v1762
    %v2150 = vunpack.c.l.b16 %v1763
    %v2151 = vunpack.c.h.b16 %v1763
    %v2152 = vunpack.c.l.b16 %v1764
    %v2153 = vunpack.c.h.b16 %v1764
    %v2154 = vunpack.c.l.b16 %v1765
    %v2155 = vunpack.c.h.b16 %v1765
    %v2156 = vunpack.c.l.b16 %v1766
    %v2157 = vunpack.c.h.b16 %v1766
    %v2158 = vunpack.c.l.b16 %v1767
    %v2159 = vunpack.c.h.b16 %v1767
    %v2160 = vunpack.c.l.b16 %v1768
    %v2161 = vunpack.c.h.b16 %v1768
    %v2162 = vunpack.c.l.b16 %v1769
    %v2163 = vunpack.c.h.b16 %v1769
    %v2164 = vunpack.c.l.b16 %v1770
    %v2165 = vunpack.c.h.b16 %v1770
    %v2166 = vunpack.c.l.b16 %v1771
    %v2167 = vunpack.c.h.b16 %v1771
    %v2168 = vunpack.c.l.b16 %v1772
    %v2169 = vunpack.c.h.b16 %v1772
    %v2170 = vunpack.c.l.b16 %v1773
    %v2171 = vunpack.c.h.b16 %v1773
    %v2172 = vunpack.c.l.b16 %v1774
    %v2173 = vunpack.c.h.b16 %v1774
    %v2174 = vunpack.c.l.b16 %v1775
    %v2175 = vunpack.c.h.b16 %v1775
    %v2176 = vunpack.c.l.b16 %v1776
    %v2177 = vunpack.c.h.b16 %v1776
    %v2178 = vunpack.c.l.b16 %v1777
    %v2179 = vunpack.c.h.b16 %v1777
    %v2180 = vunpack.c.l.b16 %v1778
    %v2181 = vunpack.c.h.b16 %v1778
    %v2182 = vunpack.c.l.b16 %v1779
    %v2183 = vunpack.c.h.b16 %v1779
    %v2184 = vunpack.c.l.b16 %v1780
    %v2185 = vunpack.c.h.b16 %v1780
    %v2186 = vunpack.c.l.b16 %v1781
    %v2187 = vunpack.c.h.b16 %v1781
    %v2188 = vunpack.c.l.b16 %v1782
    %v2189 = vunpack.c.h.b16 %v1782
    %v2190 = vunpack.c.l.b16 %v1783
    %v2191 = vunpack.c.h.b16 %v1783
    %v2192 = vunpack.c.l.b16 %v1784
    %v2193 = vunpack.c.h.b16 %v1784
    %v2194 = vunpack.c.l.b16 %v1785
    %v2195 = vunpack.c.h.b16 %v1785
    %v2196 = vunpack.c.l.b16 %v1786
    %v2197 = vunpack.c.h.b16 %v1786
    %v2198 = vunpack.c.l.b16 %v1787
    %v2199 = vunpack.c.h.b16 %v1787
    %v2200 = vunpack.c.l.b16 %v1788
    %v2201 = vunpack.c.h.b16 %v1788
    %v2202 = vunpack.c.l.b16 %v1789
    %v2203 = vunpack.c.h.b16 %v1789
    %v2204 = vunpack.c.l.b16 %v1790
    %v2205 = vunpack.c.h.b16 %v1790
    %v2206 = vunpack.c.l.b16 %v1791
    %v2207 = vunpack.c.h.b16 %v1791
    %v2208 = vunpack.c.l.b16 %v1792
    %v2209 = vunpack.c.h.b16 %v1792
    %v2210 = vunpack.c.l.b16 %v1793
    %v2211 = vunpack.c.h.b16 %v1793
    %v2212 = vunpack.c.l.b16 %v1794
    %v2213 = vunpack.c.h.b16 %v1794
    %v2214 = vunpack.c.l.b16 %v1795
    %v2215 = vunpack.c.h.b16 %v1795
    %v2216 = vunpack.c.l.b16 %v1796
    %v2217 = vunpack.c.h.b16 %v1796
    %v2218 = vunpack.c.l.b16 %v1797
    %v2219 = vunpack.c.h.b16 %v1797
    %v2220 = vunpack.c.l.b16 %v1798
    %v2221 = vunpack.c.h.b16 %v1798
    %v2222 = vunpack.c.l.b16 %v1799
    %v2223 = vunpack.c.h.b16 %v1799
    %v2224 = vunpack.c.l.b16 %v1800
    %v2225 = vunpack.c.h.b16 %v1800
    %v2226 = vunpack.c.l.b16 %v1801
    %v2227 = vunpack.c.h.b16 %v1801
    %v2228 = vpack.c.b16 %v1980, %v1972
    %v2229 = vpack.c.b16 %v1981, %v1973
    %v2230 = vpack.c.b16 %v1982, %v1974
    %v2231 = vpack.c.b16 %v1983, %v1975
    %v2232 = vpack.c.b16 %v1984, %v1976
    %v2233 = vpack.c.b16 %v1985, %v1977
    %v2234 = vpack.c.b16 %v1986, %v1978
    %v2235 = vpack.c.b16 %v1987, %v1979
    %v2236 = vpack.c.b16 %v1996, %v1988
    %v2237 = vpack.c.b16 %v1997, %v1989
    %v2238 = vpack.c.b16 %v1998, %v1990
    %v2239 = vpack.c.b16 %v1999, %v1991
    %v2240 = vpack.c.b16 %v2000, %v1992
    %v2241 = vpack.c.b16 %v2001, %v1993
    %v2242 = vpack.c.b16 %v2002, %v1994
    %v2243 = vpack.c.b16 %v2003, %v1995
    %v2244 = vpack.c.b16 %v2012, %v2004
    %v2245 = vpack.c.b16 %v2013, %v2005
    %v2246 = vpack.c.b16 %v2014, %v2006
    %v2247 = vpack.c.b16 %v2015, %v2007
    %v2248 = vpack.c.b16 %v2016, %v2008
    %v2249 = vpack.c.b16 %v2017, %v2009
    %v2250 = vpack.c.b16 %v2018, %v2010
    %v2251 = vpack.c.b16 %v2019, %v2011
    %v2252 = vpack.c.b16 %v2028, %v2020
    %v2253 = vpack.c.b16 %v2029, %v2021
    %v2254 = vpack.c.b16 %v2030, %v2022
    %v2255 = vpack.c.b16 %v2031, %v2023
    %v2256 = vpack.c.b16 %v2032, %v2024
    %v2257 = vpack.c.b16 %v2033, %v2025
    %v2258 = vpack.c.b16 %v2034, %v2026
    %v2259 = vpack.c.b16 %v2035, %v2027
    %v2260 = vpack.c.b16 %v2044, %v2036
    %v2261 = vpack.c.b16 %v2045, %v2037
    %v2262 = vpack.c.b16 %v2046, %v2038
    %v2263 = vpack.c.b16 %v2047, %v2039
    %v2264 = vpack.c.b16 %v2048, %v2040
    %v2265 = vpack.c.b16 %v2049, %v2041
    %v2266 = vpack.c.b16 %v2050, %v2042
    %v2267 = vpack.c.b16 %v2051, %v2043
    %v2268 = vpack.c.b16 %v2060, %v2052
    %v2269 = vpack.c.b16 %v2061, %v2053
    %v2270 = vpack.c.b16 %v2062, %v2054
    %v2271 = vpack.c.b16 %v2063, %v2055
    %v2272 = vpack.c.b16 %v2064, %v2056
    %v2273 = vpack.c.b16 %v2065, %v2057
    %v2274 = vpack.c.b16 %v2066, %v2058
    %v2275 = vpack.c.b16 %v2067, %v2059
    %v2276 = vpack.c.b16 %v2076, %v2068
    %v2277 = vpack.c.b16 %v2077, %v2069
    %v2278 = vpack.c.b16 %v2078, %v2070
    %v2279 = vpack.c.b16 %v2079, %v2071
    %v2280 = vpack.c.b16 %v2080, %v2072
    %v2281 = vpack.c.b16 %v2081, %v2073
    %v2282 = vpack.c.b16 %v2082, %v2074
    %v2283 = vpack.c.b16 %v2083, %v2075
    %v2284 = vpack.c.b16 %v2092, %v2084
    %v2285 = vpack.c.b16 %v2093, %v2085
    %v2286 = vpack.c.b16 %v2094, %v2086
    %v2287 = vpack.c.b16 %v2095, %v2087
    %v2288 = vpack.c.b16 %v2096, %v2088
    %v2289 = vpack.c.b16 %v2097, %v2089
    %v2290 = vpack.c.b16 %v2098, %v2090
    %v2291 = vpack.c.b16 %v2099, %v2091
    %v2292 = vpack.c.b16 %v2108, %v2100
    %v2293 = vpack.c.b16 %v2109, %v2101
    %v2294 = vpack.c.b16 %v2110, %v2102
    %v2295 = vpack.c.b16 %v2111, %v2103
    %v2296 = vpack.c.b16 %v2112, %v2104
    %v2297 = vpack.c.b16 %v2113, %v2105
    %v2298 = vpack.c.b16 %v2114, %v2106
    %v2299 = vpack.c.b16 %v2115, %v2107
    %v2300 = vpack.c.b16 %v2124, %v2116
    %v2301 = vpack.c.b16 %v2125, %v2117
    %v2302 = vpack.c.b16 %v2126, %v2118
    %v2303 = vpack.c.b16 %v2127, %v2119
    %v2304 = vpack.c.b16 %v2128, %v2120
    %v2305 = vpack.c.b16 %v2129, %v2121
    %v2306 = vpack.c.b16 %v2130, %v2122
    %v2307 = vpack.c.b16 %v2131, %v2123
    %v2308 = vpack.c.b16 %v2140, %v2132
    %v2309 = vpack.c.b16 %v2141, %v2133
    %v2310 = vpack.c.b16 %v2142, %v2134
    %v2311 = vpack.c.b16 %v2143, %v2135
    %v2312 = vpack.c.b16 %v2144, %v2136
    %v2313 = vpack.c.b16 %v2145, %v2137
    %v2314 = vpack.c.b16 %v2146, %v2138
    %v2315 = vpack.c.b16 %v2147, %v2139
    %v2316 = vpack.c.b16 %v2156, %v2148
    %v2317 = vpack.c.b16 %v2157, %v2149
    %v2318 = vpack.c.b16 %v2158, %v2150
    %v2319 = vpack.c.b16 %v2159, %v2151
    %v2320 = vpack.c.b16 %v2160, %v2152
    %v2321 = vpack.c.b16 %v2161, %v2153
    %v2322 = vpack.c.b16 %v2162, %v2154
    %v2323 = vpack.c.b16 %v2163, %v2155
    %v2324 = vpack.c.b16 %v2172, %v2164
    %v2325 = vpack.c.b16 %v2173, %v2165
    %v2326 = vpack.c.b16 %v2174, %v2166
    %v2327 = vpack.c.b16 %v2175, %v2167
    %v2328 = vpack.c.b16 %v2176, %v2168
    %v2329 = vpack.c.b16 %v2177, %v2169
    %v2330 = vpack.c.b16 %v2178, %v2170
    %v2331 = vpack.c.b16 %v2179, %v2171
    %v2332 = vpack.c.b16 %v2188, %v2180
    %v2333 = vpack.c.b16 %v2189, %v2181
    %v2334 = vpack.c.b16 %v2190, %v2182
    %v2335 = vpack.c.b16 %v2191, %v2183
    %v2336 = vpack.c.b16 %v2192, %v2184
    %v2337 = vpack.c.b16 %v2193, %v2185
    %v2338 = vpack.c.b16 %v2194, %v2186
    %v2339 = vpack.c.b16 %v2195, %v2187
    %v2340 = vpack.c.b16 %v2204, %v2196
    %v2341 = vpack.c.b16 %v2205, %v2197
    %v2342 = vpack.c.b16 %v2206, %v2198
    %v2343 = vpack.c.b16 %v2207, %v2199
    %v2344 = vpack.c.b16 %v2208, %v2200
    %v2345 = vpack.c.b16 %v2209, %v2201
    %v2346 = vpack.c.b16 %v2210, %v2202
    %v2347 = vpack.c.b16 %v2211, %v2203
    %v2348 = vpack.c.b16 %v2220, %v2212
    %v2349 = vpack.c.b16 %v2221, %v2213
    %v2350 = vpack.c.b16 %v2222, %v2214
    %v2351 = vpack.c.b16 %v2223, %v2215
    %v2352 = vpack.c.b16 %v2224, %v2216
    %v2353 = vpack.c.b16 %v2225, %v2217
    %v2354 = vpack.c.b16 %v2226, %v2218
    %v2355 = vpack.c.b16 %v2227, %v2219
    %2484 = vmatprep.subr.bf16.mxu0 %v2229
    %2485 = vmatpush1.bf16.msra.mxu0 %v2228
    %2486 = vmatprep.subr.bf16.mxu0 %v2237
    %2487 = vmatpush1.bf16.msra.mxu0 %v2236
    %2488 = vmatprep.subr.bf16.mxu0 %v2245
    %2489 = vmatpush1.bf16.msra.mxu0 %v2244
    %2490 = vmatprep.subr.bf16.mxu0 %v2253
    %2491 = vmatpush1.bf16.msra.mxu0 %v2252
    %2492 = vmatprep.subr.bf16.mxu0 %v2261
    %2493 = vmatpush1.bf16.msra.mxu0 %v2260
    %2494 = vmatprep.subr.bf16.mxu0 %v2269
    %2495 = vmatpush1.bf16.msra.mxu0 %v2268
    %2496 = vmatprep.subr.bf16.mxu0 %v2277
    %2497 = vmatpush1.bf16.msra.mxu0 %v2276
    %2498 = vmatprep.subr.bf16.mxu0 %v2285
    %2499 = vmatpush1.bf16.msra.mxu0 %v2284
    %2500 = vmatprep.subr.bf16.mxu0 %v2293
    %2501 = vmatpush1.bf16.msra.mxu0 %v2292
    %2502 = vmatprep.subr.bf16.mxu0 %v2301
    %2503 = vmatpush1.bf16.msra.mxu0 %v2300
    %2504 = vmatprep.subr.bf16.mxu0 %v2309
    %2505 = vmatpush1.bf16.msra.mxu0 %v2308
    %2506 = vmatprep.subr.bf16.mxu0 %v2317
    %2507 = vmatpush1.bf16.msra.mxu0 %v2316
    %2508 = vmatprep.subr.bf16.mxu0 %v2325
    %2509 = vmatpush1.bf16.msra.mxu0 %v2324
    %2510 = vmatprep.subr.bf16.mxu0 %v2333
    %2511 = vmatpush1.bf16.msra.mxu0 %v2332
    %2512 = vmatprep.subr.bf16.mxu0 %v2341
    %2513 = vmatpush1.bf16.msra.mxu0 %v2340
    %2514 = vmatprep.subr.bf16.mxu0 %v2349
    %2515 = vmatpush1.bf16.msra.mxu0 %v2348
    %2516 = vmatprep.mubr.bf16.mxu0 %v1673
    %2517 = vmatmul.mubr.bf16.gmra.mrb[0].mxu0 %v1672
    %v2518 = vpop.f32.mrb[0].mxu0
    %v2519 = vadd.f32 %v1807, %v2518
    %v2520 = vpop.f32.mrb[0].mxu0
    %v2521 = vadd.f32 %v1811, %v2520
    %v2522 = vpop.f32.mrb[0].mxu0
    %v2523 = vadd.f32 %v1807, %v2522
    %v2524 = vpop.f32.mrb[0].mxu0
    %v2525 = vadd.f32 %v1811, %v2524
    %2526 = vdwg.mxu0
    %2527 = vmatprep.subr.bf16.mxu0 %v2231
    %2528 = vmatpush1.bf16.msra.mxu0 %v2230
    %2529 = vmatprep.subr.bf16.mxu0 %v2239
    %2530 = vmatpush1.bf16.msra.mxu0 %v2238
    %2531 = vmatprep.subr.bf16.mxu0 %v2247
    %2532 = vmatpush1.bf16.msra.mxu0 %v2246
    %2533 = vmatprep.subr.bf16.mxu0 %v2255
    %2534 = vmatpush1.bf16.msra.mxu0 %v2254
    %2535 = vmatprep.subr.bf16.mxu0 %v2263
    %2536 = vmatpush1.bf16.msra.mxu0 %v2262
    %2537 = vmatprep.subr.bf16.mxu0 %v2271
    %2538 = vmatpush1.bf16.msra.mxu0 %v2270
    %2539 = vmatprep.subr.bf16.mxu0 %v2279
    %2540 = vmatpush1.bf16.msra.mxu0 %v2278
    %2541 = vmatprep.subr.bf16.mxu0 %v2287
    %2542 = vmatpush1.bf16.msra.mxu0 %v2286
    %2543 = vmatprep.subr.bf16.mxu0 %v2295
    %2544 = vmatpush1.bf16.msra.mxu0 %v2294
    %2545 = vmatprep.subr.bf16.mxu0 %v2303
    %2546 = vmatpush1.bf16.msra.mxu0 %v2302
    %2547 = vmatprep.subr.bf16.mxu0 %v2311
    %2548 = vmatpush1.bf16.msra.mxu0 %v2310
    %2549 = vmatprep.subr.bf16.mxu0 %v2319
    %2550 = vmatpush1.bf16.msra.mxu0 %v2318
    %2551 = vmatprep.subr.bf16.mxu0 %v2327
    %2552 = vmatpush1.bf16.msra.mxu0 %v2326
    %2553 = vmatprep.subr.bf16.mxu0 %v2335
    %2554 = vmatpush1.bf16.msra.mxu0 %v2334
    %2555 = vmatprep.subr.bf16.mxu0 %v2343
    %2556 = vmatpush1.bf16.msra.mxu0 %v2342
    %2557 = vmatprep.subr.bf16.mxu0 %v2351
    %2558 = vmatpush1.bf16.msra.mxu0 %v2350
    %2559 = vmatprep.mubr.bf16.mxu0 %v1673
    %2560 = vmatmul.mubr.bf16.gmra.mrb[0].mxu0 %v1672
    %v2561 = vpop.f32.mrb[0].mxu0
    %v2562 = vadd.f32 %v1815, %v2561
    %v2563 = vpop.f32.mrb[0].mxu0
    %v2564 = vadd.f32 %v1819, %v2563
    %v2565 = vpop.f32.mrb[0].mxu0
    %v2566 = vadd.f32 %v1815, %v2565
    %v2567 = vpop.f32.mrb[0].mxu0
    %v2568 = vadd.f32 %v1819, %v2567
    %2569 = vdwg.mxu0
    %2570 = vmatprep.subr.bf16.mxu0 %v2233
    %2571 = vmatpush1.bf16.msra.mxu0 %v2232
    %2572 = vmatprep.subr.bf16.mxu0 %v2241
    %2573 = vmatpush1.bf16.msra.mxu0 %v2240
    %2574 = vmatprep.subr.bf16.mxu0 %v2249
    %2575 = vmatpush1.bf16.msra.mxu0 %v2248
    %2576 = vmatprep.subr.bf16.mxu0 %v2257
    %2577 = vmatpush1.bf16.msra.mxu0 %v2256
    %2578 = vmatprep.subr.bf16.mxu0 %v2265
    %2579 = vmatpush1.bf16.msra.mxu0 %v2264
    %2580 = vmatprep.subr.bf16.mxu0 %v2273
    %2581 = vmatpush1.bf16.msra.mxu0 %v2272
    %2582 = vmatprep.subr.bf16.mxu0 %v2281
    %2583 = vmatpush1.bf16.msra.mxu0 %v2280
    %2584 = vmatprep.subr.bf16.mxu0 %v2289
    %2585 = vmatpush1.bf16.msra.mxu0 %v2288
    %2586 = vmatprep.subr.bf16.mxu0 %v2297
    %2587 = vmatpush1.bf16.msra.mxu0 %v2296
    %2588 = vmatprep.subr.bf16.mxu0 %v2305
    %2589 = vmatpush1.bf16.msra.mxu0 %v2304
    %2590 = vmatprep.subr.bf16.mxu0 %v2313
    %2591 = vmatpush1.bf16.msra.mxu0 %v2312
    %2592 = vmatprep.subr.bf16.mxu0 %v2321
    %2593 = vmatpush1.bf16.msra.mxu0 %v2320
    %2594 = vmatprep.subr.bf16.mxu0 %v2329
    %2595 = vmatpush1.bf16.msra.mxu0 %v2328
    %2596 = vmatprep.subr.bf16.mxu0 %v2337
    %2597 = vmatpush1.bf16.msra.mxu0 %v2336
    %2598 = vmatprep.subr.bf16.mxu0 %v2345
    %2599 = vmatpush1.bf16.msra.mxu0 %v2344
    %2600 = vmatprep.subr.bf16.mxu0 %v2353
    %2601 = vmatpush1.bf16.msra.mxu0 %v2352
    %2602 = vmatprep.mubr.bf16.mxu0 %v1673
    %2603 = vmatmul.mubr.bf16.gmra.mrb[0].mxu0 %v1672
    %v2604 = vpop.f32.mrb[0].mxu0
    %v2605 = vadd.f32 %v1823, %v2604
    %v2606 = vpop.f32.mrb[0].mxu0
    %v2607 = vadd.f32 %v1827, %v2606
    %v2608 = vpop.f32.mrb[0].mxu0
    %v2609 = vadd.f32 %v1823, %v2608
    %v2610 = vpop.f32.mrb[0].mxu0
    %v2611 = vadd.f32 %v1827, %v2610
    %2612 = vdwg.mxu0
    %2613 = vmatprep.subr.bf16.mxu0 %v2235
    %2614 = vmatpush1.bf16.msra.mxu0 %v2234
    %2615 = vmatprep.subr.bf16.mxu0 %v2243
    %2616 = vmatpush1.bf16.msra.mxu0 %v2242
    %2617 = vmatprep.subr.bf16.mxu0 %v2251
    %2618 = vmatpush1.bf16.msra.mxu0 %v2250
    %2619 = vmatprep.subr.bf16.mxu0 %v2259
    %2620 = vmatpush1.bf16.msra.mxu0 %v2258
    %2621 = vmatprep.subr.bf16.mxu0 %v2267
    %2622 = vmatpush1.bf16.msra.mxu0 %v2266
    %2623 = vmatprep.subr.bf16.mxu0 %v2275
    %2624 = vmatpush1.bf16.msra.mxu0 %v2274
    %2625 = vmatprep.subr.bf16.mxu0 %v2283
    %2626 = vmatpush1.bf16.msra.mxu0 %v2282
    %2627 = vmatprep.subr.bf16.mxu0 %v2291
    %2628 = vmatpush1.bf16.msra.mxu0 %v2290
    %2629 = vmatprep.subr.bf16.mxu0 %v2299
    %2630 = vmatpush1.bf16.msra.mxu0 %v2298
    %2631 = vmatprep.subr.bf16.mxu0 %v2307
    %2632 = vmatpush1.bf16.msra.mxu0 %v2306
    %2633 = vmatprep.subr.bf16.mxu0 %v2315
    %2634 = vmatpush1.bf16.msra.mxu0 %v2314
    %2635 = vmatprep.subr.bf16.mxu0 %v2323
    %2636 = vmatpush1.bf16.msra.mxu0 %v2322
    %2637 = vmatprep.subr.bf16.mxu0 %v2331
    %2638 = vmatpush1.bf16.msra.mxu0 %v2330
    %2639 = vmatprep.subr.bf16.mxu0 %v2339
    %2640 = vmatpush1.bf16.msra.mxu0 %v2338
    %2641 = vmatprep.subr.bf16.mxu0 %v2347
    %2642 = vmatpush1.bf16.msra.mxu0 %v2346
    %2643 = vmatprep.subr.bf16.mxu0 %v2355
    %2644 = vmatpush1.bf16.msra.mxu0 %v2354
    %2645 = vmatprep.mubr.bf16.mxu0 %v1673
    %2646 = vmatmul.mubr.bf16.gmra.mrb[0].mxu0 %v1672
    %v2647 = vpop.f32.mrb[0].mxu0
    %v2648 = vadd.f32 %v1831, %v2647
    %v2649 = vpop.f32.mrb[0].mxu0
    %v2650 = vadd.f32 %v1835, %v2649
    %v2651 = vpop.f32.mrb[0].mxu0
    %v2652 = vadd.f32 %v1831, %v2651
    %v2653 = vpop.f32.mrb[0].mxu0
    %v2654 = vadd.f32 %v1835, %v2653
    %2655 = vdwg.mxu0
    %v2656 = vmax.f32 %v2519, 0.0
    %v2657 = vmax.f32 %v2521, 0.0
    %v2658 = vmax.f32 %v2562, 0.0
    %v2659 = vmax.f32 %v2564, 0.0
    %v2660 = vmax.f32 %v2605, 0.0
    %v2661 = vmax.f32 %v2607, 0.0
    %v2662 = vmax.f32 %v2648, 0.0
    %v2663 = vmax.f32 %v2650, 0.0
    %v2664 = vmax.f32 %v2523, 0.0
    %v2665 = vmax.f32 %v2525, 0.0
    %v2666 = vmax.f32 %v2566, 0.0
    %v2667 = vmax.f32 %v2568, 0.0
    %v2668 = vmax.f32 %v2609, 0.0
    %v2669 = vmax.f32 %v2611, 0.0
    %v2670 = vmax.f32 %v2652, 0.0
    %v2671 = vmax.f32 %v2654, 0.0
    %v2672 = vpack.c.bf16 %v2664, %v2656
    %v2673 = vpack.c.bf16 %v2665, %v2657
    %v2674 = vpack.c.bf16 %v2666, %v2658
    %v2675 = vpack.c.bf16 %v2667, %v2659
    %v2676 = vpack.c.bf16 %v2668, %v2660
    %v2677 = vpack.c.bf16 %v2669, %v2661
    %v2678 = vpack.c.bf16 %v2670, %v2662
    %v2679 = vpack.c.bf16 %v2671, %v2663
    %v2680 = vld [vmem:[#allocation15] sm:$0xff]
    %v2681 = vld [vmem:[#allocation15 + $0x8] sm:$0xff]
    %v2682 = vld [vmem:[#allocation15 + $0x10] sm:$0xff]
    %v2683 = vld [vmem:[#allocation15 + $0x18] sm:$0xff]
    %v2684 = vld [vmem:[#allocation15 + $0x20] sm:$0xff]
    %v2685 = vld [vmem:[#allocation15 + $0x28] sm:$0xff]
    %v2686 = vld [vmem:[#allocation15 + $0x30] sm:$0xff]
    %v2687 = vld [vmem:[#allocation15 + $0x38] sm:$0xff]
    %v2688 = vld [vmem:[#allocation15 + $0x40] sm:$0xff]
    %v2689 = vld [vmem:[#allocation15 + $0x48] sm:$0xff]
    %v2690 = vld [vmem:[#allocation15 + $0x50] sm:$0xff]
    %v2691 = vld [vmem:[#allocation15 + $0x58] sm:$0xff]
    %v2692 = vld [vmem:[#allocation15 + $0x60] sm:$0xff]
    %v2693 = vld [vmem:[#allocation15 + $0x68] sm:$0xff]
    %v2694 = vld [vmem:[#allocation15 + $0x70] sm:$0xff]
    %v2695 = vld [vmem:[#allocation15 + $0x78] sm:$0xff]
    %v2696 = vld [vmem:[#allocation15 + $0x80] sm:$0xff]
    %v2697 = vld [vmem:[#allocation15 + $0x88] sm:$0xff]
    %v2698 = vld [vmem:[#allocation15 + $0x90] sm:$0xff]
    %v2699 = vld [vmem:[#allocation15 + $0x98] sm:$0xff]
    %v2700 = vld [vmem:[#allocation15 + $0xa0] sm:$0xff]
    %v2701 = vld [vmem:[#allocation15 + $0xa8] sm:$0xff]
    %v2702 = vld [vmem:[#allocation15 + $0xb0] sm:$0xff]
    %v2703 = vld [vmem:[#allocation15 + $0xb8] sm:$0xff]
    %v2704 = vld [vmem:[#allocation15 + $0xc0] sm:$0xff]
    %v2705 = vld [vmem:[#allocation15 + $0xc8] sm:$0xff]
    %v2706 = vld [vmem:[#allocation15 + $0xd0] sm:$0xff]
    %v2707 = vld [vmem:[#allocation15 + $0xd8] sm:$0xff]
    %v2708 = vld [vmem:[#allocation15 + $0xe0] sm:$0xff]
    %v2709 = vld [vmem:[#allocation15 + $0xe8] sm:$0xff]
    %v2710 = vld [vmem:[#allocation15 + $0xf0] sm:$0xff]
    %v2711 = vld [vmem:[#allocation15 + $0xf8] sm:$0xff]
    %v2712 = vld [vmem:[#allocation15 + $0x100] sm:$0xff]
    %v2713 = vld [vmem:[#allocation15 + $0x108] sm:$0xff]
    %v2714 = vld [vmem:[#allocation15 + $0x110] sm:$0xff]
    %v2715 = vld [vmem:[#allocation15 + $0x118] sm:$0xff]
    %v2716 = vld [vmem:[#allocation15 + $0x120] sm:$0xff]
    %v2717 = vld [vmem:[#allocation15 + $0x128] sm:$0xff]
    %v2718 = vld [vmem:[#allocation15 + $0x130] sm:$0xff]
    %v2719 = vld [vmem:[#allocation15 + $0x138] sm:$0xff]
    %v2720 = vld [vmem:[#allocation15 + $0x140] sm:$0xff]
    %v2721 = vld [vmem:[#allocation15 + $0x148] sm:$0xff]
    %v2722 = vld [vmem:[#allocation15 + $0x150] sm:$0xff]
    %v2723 = vld [vmem:[#allocation15 + $0x158] sm:$0xff]
    %v2724 = vld [vmem:[#allocation15 + $0x160] sm:$0xff]
    %v2725 = vld [vmem:[#allocation15 + $0x168] sm:$0xff]
    %v2726 = vld [vmem:[#allocation15 + $0x170] sm:$0xff]
    %v2727 = vld [vmem:[#allocation15 + $0x178] sm:$0xff]
    %v2728 = vld [vmem:[#allocation15 + $0x180] sm:$0xff]
    %v2729 = vld [vmem:[#allocation15 + $0x188] sm:$0xff]
    %v2730 = vld [vmem:[#allocation15 + $0x190] sm:$0xff]
    %v2731 = vld [vmem:[#allocation15 + $0x198] sm:$0xff]
    %v2732 = vld [vmem:[#allocation15 + $0x1a0] sm:$0xff]
    %v2733 = vld [vmem:[#allocation15 + $0x1a8] sm:$0xff]
    %v2734 = vld [vmem:[#allocation15 + $0x1b0] sm:$0xff]
    %v2735 = vld [vmem:[#allocation15 + $0x1b8] sm:$0xff]
    %v2736 = vld [vmem:[#allocation15 + $0x1c0] sm:$0xff]
    %v2737 = vld [vmem:[#allocation15 + $0x1c8] sm:$0xff]
    %v2738 = vld [vmem:[#allocation15 + $0x1d0] sm:$0xff]
    %v2739 = vld [vmem:[#allocation15 + $0x1d8] sm:$0xff]
    %v2740 = vld [vmem:[#allocation15 + $0x1e0] sm:$0xff]
    %v2741 = vld [vmem:[#allocation15 + $0x1e8] sm:$0xff]
    %v2742 = vld [vmem:[#allocation15 + $0x1f0] sm:$0xff]
    %v2743 = vld [vmem:[#allocation15 + $0x1f8] sm:$0xff]
    %v2744 = vld [vmem:[#allocation15 + $0x200] sm:$0xff]
    %v2745 = vld [vmem:[#allocation15 + $0x208] sm:$0xff]
    %v2746 = vld [vmem:[#allocation15 + $0x210] sm:$0xff]
    %v2747 = vld [vmem:[#allocation15 + $0x218] sm:$0xff]
    %v2748 = vld [vmem:[#allocation15 + $0x220] sm:$0xff]
    %v2749 = vld [vmem:[#allocation15 + $0x228] sm:$0xff]
    %v2750 = vld [vmem:[#allocation15 + $0x230] sm:$0xff]
    %v2751 = vld [vmem:[#allocation15 + $0x238] sm:$0xff]
    %v2752 = vld [vmem:[#allocation15 + $0x240] sm:$0xff]
    %v2753 = vld [vmem:[#allocation15 + $0x248] sm:$0xff]
    %v2754 = vld [vmem:[#allocation15 + $0x250] sm:$0xff]
    %v2755 = vld [vmem:[#allocation15 + $0x258] sm:$0xff]
    %v2756 = vld [vmem:[#allocation15 + $0x260] sm:$0xff]
    %v2757 = vld [vmem:[#allocation15 + $0x268] sm:$0xff]
    %v2758 = vld [vmem:[#allocation15 + $0x270] sm:$0xff]
    %v2759 = vld [vmem:[#allocation15 + $0x278] sm:$0xff]
    %v2760 = vld [vmem:[#allocation15 + $0x280] sm:$0xff]
    %v2761 = vld [vmem:[#allocation15 + $0x288] sm:$0xff]
    %v2762 = vld [vmem:[#allocation15 + $0x290] sm:$0xff]
    %v2763 = vld [vmem:[#allocation15 + $0x298] sm:$0xff]
    %v2764 = vld [vmem:[#allocation15 + $0x2a0] sm:$0xff]
    %v2765 = vld [vmem:[#allocation15 + $0x2a8] sm:$0xff]
    %v2766 = vld [vmem:[#allocation15 + $0x2b0] sm:$0xff]
    %v2767 = vld [vmem:[#allocation15 + $0x2b8] sm:$0xff]
    %v2768 = vld [vmem:[#allocation15 + $0x2c0] sm:$0xff]
    %v2769 = vld [vmem:[#allocation15 + $0x2c8] sm:$0xff]
    %v2770 = vld [vmem:[#allocation15 + $0x2d0] sm:$0xff]
    %v2771 = vld [vmem:[#allocation15 + $0x2d8] sm:$0xff]
    %v2772 = vld [vmem:[#allocation15 + $0x2e0] sm:$0xff]
    %v2773 = vld [vmem:[#allocation15 + $0x2e8] sm:$0xff]
    %v2774 = vld [vmem:[#allocation15 + $0x2f0] sm:$0xff]
    %v2775 = vld [vmem:[#allocation15 + $0x2f8] sm:$0xff]
    %v2776 = vld [vmem:[#allocation15 + $0x300] sm:$0xff]
    %v2777 = vld [vmem:[#allocation15 + $0x308] sm:$0xff]
    %v2778 = vld [vmem:[#allocation15 + $0x310] sm:$0xff]
    %v2779 = vld [vmem:[#allocation15 + $0x318] sm:$0xff]
    %v2780 = vld [vmem:[#allocation15 + $0x320] sm:$0xff]
    %v2781 = vld [vmem:[#allocation15 + $0x328] sm:$0xff]
    %v2782 = vld [vmem:[#allocation15 + $0x330] sm:$0xff]
    %v2783 = vld [vmem:[#allocation15 + $0x338] sm:$0xff]
    %v2784 = vld [vmem:[#allocation15 + $0x340] sm:$0xff]
    %v2785 = vld [vmem:[#allocation15 + $0x348] sm:$0xff]
    %v2786 = vld [vmem:[#allocation15 + $0x350] sm:$0xff]
    %v2787 = vld [vmem:[#allocation15 + $0x358] sm:$0xff]
    %v2788 = vld [vmem:[#allocation15 + $0x360] sm:$0xff]
    %v2789 = vld [vmem:[#allocation15 + $0x368] sm:$0xff]
    %v2790 = vld [vmem:[#allocation15 + $0x370] sm:$0xff]
    %v2791 = vld [vmem:[#allocation15 + $0x378] sm:$0xff]
    %v2792 = vld [vmem:[#allocation15 + $0x380] sm:$0xff]
    %v2793 = vld [vmem:[#allocation15 + $0x388] sm:$0xff]
    %v2794 = vld [vmem:[#allocation15 + $0x390] sm:$0xff]
    %v2795 = vld [vmem:[#allocation15 + $0x398] sm:$0xff]
    %v2796 = vld [vmem:[#allocation15 + $0x3a0] sm:$0xff]
    %v2797 = vld [vmem:[#allocation15 + $0x3a8] sm:$0xff]
    %v2798 = vld [vmem:[#allocation15 + $0x3b0] sm:$0xff]
    %v2799 = vld [vmem:[#allocation15 + $0x3b8] sm:$0xff]
    %v2800 = vld [vmem:[#allocation15 + $0x3c0] sm:$0xff]
    %v2801 = vld [vmem:[#allocation15 + $0x3c8] sm:$0xff]
    %v2802 = vld [vmem:[#allocation15 + $0x3d0] sm:$0xff]
    %v2803 = vld [vmem:[#allocation15 + $0x3d8] sm:$0xff]
    %v2804 = vld [vmem:[#allocation15 + $0x3e0] sm:$0xff]
    %v2805 = vld [vmem:[#allocation15 + $0x3e8] sm:$0xff]
    %v2806 = vld [vmem:[#allocation15 + $0x3f0] sm:$0xff]
    %v2807 = vld [vmem:[#allocation15 + $0x3f8] sm:$0xff]
    %v2808 = vld [vmem:[%s14] sm:$0x3]
    %v2810 = vlaneseq
    %v2811 = vshrl.u32 %v2810, 7
    %v2812 = vsub.s32 0, %v2811
    %v2813 = vrot.slane %v2808, %v2812
    %v2814 = vlaneseq
    %v2815 = vshrl.u32 %v2814, 7
    %v2816 = vsub.s32 1, %v2815
    %v2817 = vrot.slane %v2808, %v2816
    %v2948 = vunpack.c.l.b16 %v2680
    %v2949 = vunpack.c.h.b16 %v2680
    %v2950 = vunpack.c.l.b16 %v2681
    %v2951 = vunpack.c.h.b16 %v2681
    %v2952 = vunpack.c.l.b16 %v2682
    %v2953 = vunpack.c.h.b16 %v2682
    %v2954 = vunpack.c.l.b16 %v2683
    %v2955 = vunpack.c.h.b16 %v2683
    %v2956 = vunpack.c.l.b16 %v2684
    %v2957 = vunpack.c.h.b16 %v2684
    %v2958 = vunpack.c.l.b16 %v2685
    %v2959 = vunpack.c.h.b16 %v2685
    %v2960 = vunpack.c.l.b16 %v2686
    %v2961 = vunpack.c.h.b16 %v2686
    %v2962 = vunpack.c.l.b16 %v2687
    %v2963 = vunpack.c.h.b16 %v2687
    %v2964 = vunpack.c.l.b16 %v2688
    %v2965 = vunpack.c.h.b16 %v2688
    %v2966 = vunpack.c.l.b16 %v2689
    %v2967 = vunpack.c.h.b16 %v2689
    %v2968 = vunpack.c.l.b16 %v2690
    %v2969 = vunpack.c.h.b16 %v2690
    %v2970 = vunpack.c.l.b16 %v2691
    %v2971 = vunpack.c.h.b16 %v2691
    %v2972 = vunpack.c.l.b16 %v2692
    %v2973 = vunpack.c.h.b16 %v2692
    %v2974 = vunpack.c.l.b16 %v2693
    %v2975 = vunpack.c.h.b16 %v2693
    %v2976 = vunpack.c.l.b16 %v2694
    %v2977 = vunpack.c.h.b16 %v2694
    %v2978 = vunpack.c.l.b16 %v2695
    %v2979 = vunpack.c.h.b16 %v2695
    %v2980 = vunpack.c.l.b16 %v2696
    %v2981 = vunpack.c.h.b16 %v2696
    %v2982 = vunpack.c.l.b16 %v2697
    %v2983 = vunpack.c.h.b16 %v2697
    %v2984 = vunpack.c.l.b16 %v2698
    %v2985 = vunpack.c.h.b16 %v2698
    %v2986 = vunpack.c.l.b16 %v2699
    %v2987 = vunpack.c.h.b16 %v2699
    %v2988 = vunpack.c.l.b16 %v2700
    %v2989 = vunpack.c.h.b16 %v2700
    %v2990 = vunpack.c.l.b16 %v2701
    %v2991 = vunpack.c.h.b16 %v2701
    %v2992 = vunpack.c.l.b16 %v2702
    %v2993 = vunpack.c.h.b16 %v2702
    %v2994 = vunpack.c.l.b16 %v2703
    %v2995 = vunpack.c.h.b16 %v2703
    %v2996 = vunpack.c.l.b16 %v2704
    %v2997 = vunpack.c.h.b16 %v2704
    %v2998 = vunpack.c.l.b16 %v2705
    %v2999 = vunpack.c.h.b16 %v2705
    %v3000 = vunpack.c.l.b16 %v2706
    %v3001 = vunpack.c.h.b16 %v2706
    %v3002 = vunpack.c.l.b16 %v2707
    %v3003 = vunpack.c.h.b16 %v2707
    %v3004 = vunpack.c.l.b16 %v2708
    %v3005 = vunpack.c.h.b16 %v2708
    %v3006 = vunpack.c.l.b16 %v2709
    %v3007 = vunpack.c.h.b16 %v2709
    %v3008 = vunpack.c.l.b16 %v2710
    %v3009 = vunpack.c.h.b16 %v2710
    %v3010 = vunpack.c.l.b16 %v2711
    %v3011 = vunpack.c.h.b16 %v2711
    %v3012 = vunpack.c.l.b16 %v2712
    %v3013 = vunpack.c.h.b16 %v2712
    %v3014 = vunpack.c.l.b16 %v2713
    %v3015 = vunpack.c.h.b16 %v2713
    %v3016 = vunpack.c.l.b16 %v2714
    %v3017 = vunpack.c.h.b16 %v2714
    %v3018 = vunpack.c.l.b16 %v2715
    %v3019 = vunpack.c.h.b16 %v2715
    %v3020 = vunpack.c.l.b16 %v2716
    %v3021 = vunpack.c.h.b16 %v2716
    %v3022 = vunpack.c.l.b16 %v2717
    %v3023 = vunpack.c.h.b16 %v2717
    %v3024 = vunpack.c.l.b16 %v2718
    %v3025 = vunpack.c.h.b16 %v2718
    %v3026 = vunpack.c.l.b16 %v2719
    %v3027 = vunpack.c.h.b16 %v2719
    %v3028 = vunpack.c.l.b16 %v2720
    %v3029 = vunpack.c.h.b16 %v2720
    %v3030 = vunpack.c.l.b16 %v2721
    %v3031 = vunpack.c.h.b16 %v2721
    %v3032 = vunpack.c.l.b16 %v2722
    %v3033 = vunpack.c.h.b16 %v2722
    %v3034 = vunpack.c.l.b16 %v2723
    %v3035 = vunpack.c.h.b16 %v2723
    %v3036 = vunpack.c.l.b16 %v2724
    %v3037 = vunpack.c.h.b16 %v2724
    %v3038 = vunpack.c.l.b16 %v2725
    %v3039 = vunpack.c.h.b16 %v2725
    %v3040 = vunpack.c.l.b16 %v2726
    %v3041 = vunpack.c.h.b16 %v2726
    %v3042 = vunpack.c.l.b16 %v2727
    %v3043 = vunpack.c.h.b16 %v2727
    %v3044 = vunpack.c.l.b16 %v2728
    %v3045 = vunpack.c.h.b16 %v2728
    %v3046 = vunpack.c.l.b16 %v2729
    %v3047 = vunpack.c.h.b16 %v2729
    %v3048 = vunpack.c.l.b16 %v2730
    %v3049 = vunpack.c.h.b16 %v2730
    %v3050 = vunpack.c.l.b16 %v2731
    %v3051 = vunpack.c.h.b16 %v2731
    %v3052 = vunpack.c.l.b16 %v2732
    %v3053 = vunpack.c.h.b16 %v2732
    %v3054 = vunpack.c.l.b16 %v2733
    %v3055 = vunpack.c.h.b16 %v2733
    %v3056 = vunpack.c.l.b16 %v2734
    %v3057 = vunpack.c.h.b16 %v2734
    %v3058 = vunpack.c.l.b16 %v2735
    %v3059 = vunpack.c.h.b16 %v2735
    %v3060 = vunpack.c.l.b16 %v2736
    %v3061 = vunpack.c.h.b16 %v2736
    %v3062 = vunpack.c.l.b16 %v2737
    %v3063 = vunpack.c.h.b16 %v2737
    %v3064 = vunpack.c.l.b16 %v2738
    %v3065 = vunpack.c.h.b16 %v2738
    %v3066 = vunpack.c.l.b16 %v2739
    %v3067 = vunpack.c.h.b16 %v2739
    %v3068 = vunpack.c.l.b16 %v2740
    %v3069 = vunpack.c.h.b16 %v2740
    %v3070 = vunpack.c.l.b16 %v2741
    %v3071 = vunpack.c.h.b16 %v2741
    %v3072 = vunpack.c.l.b16 %v2742
    %v3073 = vunpack.c.h.b16 %v2742
    %v3074 = vunpack.c.l.b16 %v2743
    %v3075 = vunpack.c.h.b16 %v2743
    %v3076 = vunpack.c.l.b16 %v2744
    %v3077 = vunpack.c.h.b16 %v2744
    %v3078 = vunpack.c.l.b16 %v2745
    %v3079 = vunpack.c.h.b16 %v2745
    %v3080 = vunpack.c.l.b16 %v2746
    %v3081 = vunpack.c.h.b16 %v2746
    %v3082 = vunpack.c.l.b16 %v2747
    %v3083 = vunpack.c.h.b16 %v2747
    %v3084 = vunpack.c.l.b16 %v2748
    %v3085 = vunpack.c.h.b16 %v2748
    %v3086 = vunpack.c.l.b16 %v2749
    %v3087 = vunpack.c.h.b16 %v2749
    %v3088 = vunpack.c.l.b16 %v2750
    %v3089 = vunpack.c.h.b16 %v2750
    %v3090 = vunpack.c.l.b16 %v2751
    %v3091 = vunpack.c.h.b16 %v2751
    %v3092 = vunpack.c.l.b16 %v2752
    %v3093 = vunpack.c.h.b16 %v2752
    %v3094 = vunpack.c.l.b16 %v2753
    %v3095 = vunpack.c.h.b16 %v2753
    %v3096 = vunpack.c.l.b16 %v2754
    %v3097 = vunpack.c.h.b16 %v2754
    %v3098 = vunpack.c.l.b16 %v2755
    %v3099 = vunpack.c.h.b16 %v2755
    %v3100 = vunpack.c.l.b16 %v2756
    %v3101 = vunpack.c.h.b16 %v2756
    %v3102 = vunpack.c.l.b16 %v2757
    %v3103 = vunpack.c.h.b16 %v2757
    %v3104 = vunpack.c.l.b16 %v2758
    %v3105 = vunpack.c.h.b16 %v2758
    %v3106 = vunpack.c.l.b16 %v2759
    %v3107 = vunpack.c.h.b16 %v2759
    %v3108 = vunpack.c.l.b16 %v2760
    %v3109 = vunpack.c.h.b16 %v2760
    %v3110 = vunpack.c.l.b16 %v2761
    %v3111 = vunpack.c.h.b16 %v2761
    %v3112 = vunpack.c.l.b16 %v2762
    %v3113 = vunpack.c.h.b16 %v2762
    %v3114 = vunpack.c.l.b16 %v2763
    %v3115 = vunpack.c.h.b16 %v2763
    %v3116 = vunpack.c.l.b16 %v2764
    %v3117 = vunpack.c.h.b16 %v2764
    %v3118 = vunpack.c.l.b16 %v2765
    %v3119 = vunpack.c.h.b16 %v2765
    %v3120 = vunpack.c.l.b16 %v2766
    %v3121 = vunpack.c.h.b16 %v2766
    %v3122 = vunpack.c.l.b16 %v2767
    %v3123 = vunpack.c.h.b16 %v2767
    %v3124 = vunpack.c.l.b16 %v2768
    %v3125 = vunpack.c.h.b16 %v2768
    %v3126 = vunpack.c.l.b16 %v2769
    %v3127 = vunpack.c.h.b16 %v2769
    %v3128 = vunpack.c.l.b16 %v2770
    %v3129 = vunpack.c.h.b16 %v2770
    %v3130 = vunpack.c.l.b16 %v2771
    %v3131 = vunpack.c.h.b16 %v2771
    %v3132 = vunpack.c.l.b16 %v2772
    %v3133 = vunpack.c.h.b16 %v2772
    %v3134 = vunpack.c.l.b16 %v2773
    %v3135 = vunpack.c.h.b16 %v2773
    %v3136 = vunpack.c.l.b16 %v2774
    %v3137 = vunpack.c.h.b16 %v2774
    %v3138 = vunpack.c.l.b16 %v2775
    %v3139 = vunpack.c.h.b16 %v2775
    %v3140 = vunpack.c.l.b16 %v2776
    %v3141 = vunpack.c.h.b16 %v2776
    %v3142 = vunpack.c.l.b16 %v2777
    %v3143 = vunpack.c.h.b16 %v2777
    %v3144 = vunpack.c.l.b16 %v2778
    %v3145 = vunpack.c.h.b16 %v2778
    %v3146 = vunpack.c.l.b16 %v2779
    %v3147 = vunpack.c.h.b16 %v2779
    %v3148 = vunpack.c.l.b16 %v2780
    %v3149 = vunpack.c.h.b16 %v2780
    %v3150 = vunpack.c.l.b16 %v2781
    %v3151 = vunpack.c.h.b16 %v2781
    %v3152 = vunpack.c.l.b16 %v2782
    %v3153 = vunpack.c.h.b16 %v2782
    %v3154 = vunpack.c.l.b16 %v2783
    %v3155 = vunpack.c.h.b16 %v2783
    %v3156 = vunpack.c.l.b16 %v2784
    %v3157 = vunpack.c.h.b16 %v2784
    %v3158 = vunpack.c.l.b16 %v2785
    %v3159 = vunpack.c.h.b16 %v2785
    %v3160 = vunpack.c.l.b16 %v2786
    %v3161 = vunpack.c.h.b16 %v2786
    %v3162 = vunpack.c.l.b16 %v2787
    %v3163 = vunpack.c.h.b16 %v2787
    %v3164 = vunpack.c.l.b16 %v2788
    %v3165 = vunpack.c.h.b16 %v2788
    %v3166 = vunpack.c.l.b16 %v2789
    %v3167 = vunpack.c.h.b16 %v2789
    %v3168 = vunpack.c.l.b16 %v2790
    %v3169 = vunpack.c.h.b16 %v2790
    %v3170 = vunpack.c.l.b16 %v2791
    %v3171 = vunpack.c.h.b16 %v2791
    %v3172 = vunpack.c.l.b16 %v2792
    %v3173 = vunpack.c.h.b16 %v2792
    %v3174 = vunpack.c.l.b16 %v2793
    %v3175 = vunpack.c.h.b16 %v2793
    %v3176 = vunpack.c.l.b16 %v2794
    %v3177 = vunpack.c.h.b16 %v2794
    %v3178 = vunpack.c.l.b16 %v2795
    %v3179 = vunpack.c.h.b16 %v2795
    %v3180 = vunpack.c.l.b16 %v2796
    %v3181 = vunpack.c.h.b16 %v2796
    %v3182 = vunpack.c.l.b16 %v2797
    %v3183 = vunpack.c.h.b16 %v2797
    %v3184 = vunpack.c.l.b16 %v2798
    %v3185 = vunpack.c.h.b16 %v2798
    %v3186 = vunpack.c.l.b16 %v2799
    %v3187 = vunpack.c.h.b16 %v2799
    %v3188 = vunpack.c.l.b16 %v2800
    %v3189 = vunpack.c.h.b16 %v2800
    %v3190 = vunpack.c.l.b16 %v2801
    %v3191 = vunpack.c.h.b16 %v2801
    %v3192 = vunpack.c.l.b16 %v2802
    %v3193 = vunpack.c.h.b16 %v2802
    %v3194 = vunpack.c.l.b16 %v2803
    %v3195 = vunpack.c.h.b16 %v2803
    %v3196 = vunpack.c.l.b16 %v2804
    %v3197 = vunpack.c.h.b16 %v2804
    %v3198 = vunpack.c.l.b16 %v2805
    %v3199 = vunpack.c.h.b16 %v2805
    %v3200 = vunpack.c.l.b16 %v2806
    %v3201 = vunpack.c.h.b16 %v2806
    %v3202 = vunpack.c.l.b16 %v2807
    %v3203 = vunpack.c.h.b16 %v2807
    %v3204 = vpack.c.b16 %v2950, %v2948
    %v3205 = vpack.c.b16 %v2951, %v2949
    %v3206 = vpack.c.b16 %v2954, %v2952
    %v3207 = vpack.c.b16 %v2955, %v2953
    %v3208 = vpack.c.b16 %v2958, %v2956
    %v3209 = vpack.c.b16 %v2959, %v2957
    %v3210 = vpack.c.b16 %v2962, %v2960
    %v3211 = vpack.c.b16 %v2963, %v2961
    %v3212 = vpack.c.b16 %v2966, %v2964
    %v3213 = vpack.c.b16 %v2967, %v2965
    %v3214 = vpack.c.b16 %v2970, %v2968
    %v3215 = vpack.c.b16 %v2971, %v2969
    %v3216 = vpack.c.b16 %v2974, %v2972
    %v3217 = vpack.c.b16 %v2975, %v2973
    %v3218 = vpack.c.b16 %v2978, %v2976
    %v3219 = vpack.c.b16 %v2979, %v2977
    %v3220 = vpack.c.b16 %v2982, %v2980
    %v3221 = vpack.c.b16 %v2983, %v2981
    %v3222 = vpack.c.b16 %v2986, %v2984
    %v3223 = vpack.c.b16 %v2987, %v2985
    %v3224 = vpack.c.b16 %v2990, %v2988
    %v3225 = vpack.c.b16 %v2991, %v2989
    %v3226 = vpack.c.b16 %v2994, %v2992
    %v3227 = vpack.c.b16 %v2995, %v2993
    %v3228 = vpack.c.b16 %v2998, %v2996
    %v3229 = vpack.c.b16 %v2999, %v2997
    %v3230 = vpack.c.b16 %v3002, %v3000
    %v3231 = vpack.c.b16 %v3003, %v3001
    %v3232 = vpack.c.b16 %v3006, %v3004
    %v3233 = vpack.c.b16 %v3007, %v3005
    %v3234 = vpack.c.b16 %v3010, %v3008
    %v3235 = vpack.c.b16 %v3011, %v3009
    %v3236 = vpack.c.b16 %v3014, %v3012
    %v3237 = vpack.c.b16 %v3015, %v3013
    %v3238 = vpack.c.b16 %v3018, %v3016
    %v3239 = vpack.c.b16 %v3019, %v3017
    %v3240 = vpack.c.b16 %v3022, %v3020
    %v3241 = vpack.c.b16 %v3023, %v3021
    %v3242 = vpack.c.b16 %v3026, %v3024
    %v3243 = vpack.c.b16 %v3027, %v3025
    %v3244 = vpack.c.b16 %v3030, %v3028
    %v3245 = vpack.c.b16 %v3031, %v3029
    %v3246 = vpack.c.b16 %v3034, %v3032
    %v3247 = vpack.c.b16 %v3035, %v3033
    %v3248 = vpack.c.b16 %v3038, %v3036
    %v3249 = vpack.c.b16 %v3039, %v3037
    %v3250 = vpack.c.b16 %v3042, %v3040
    %v3251 = vpack.c.b16 %v3043, %v3041
    %v3252 = vpack.c.b16 %v3046, %v3044
    %v3253 = vpack.c.b16 %v3047, %v3045
    %v3254 = vpack.c.b16 %v3050, %v3048
    %v3255 = vpack.c.b16 %v3051, %v3049
    %v3256 = vpack.c.b16 %v3054, %v3052
    %v3257 = vpack.c.b16 %v3055, %v3053
    %v3258 = vpack.c.b16 %v3058, %v3056
    %v3259 = vpack.c.b16 %v3059, %v3057
    %v3260 = vpack.c.b16 %v3062, %v3060
    %v3261 = vpack.c.b16 %v3063, %v3061
    %v3262 = vpack.c.b16 %v3066, %v3064
    %v3263 = vpack.c.b16 %v3067, %v3065
    %v3264 = vpack.c.b16 %v3070, %v3068
    %v3265 = vpack.c.b16 %v3071, %v3069
    %v3266 = vpack.c.b16 %v3074, %v3072
    %v3267 = vpack.c.b16 %v3075, %v3073
    %v3268 = vpack.c.b16 %v3078, %v3076
    %v3269 = vpack.c.b16 %v3079, %v3077
    %v3270 = vpack.c.b16 %v3082, %v3080
    %v3271 = vpack.c.b16 %v3083, %v3081
    %v3272 = vpack.c.b16 %v3086, %v3084
    %v3273 = vpack.c.b16 %v3087, %v3085
    %v3274 = vpack.c.b16 %v3090, %v3088
    %v3275 = vpack.c.b16 %v3091, %v3089
    %v3276 = vpack.c.b16 %v3094, %v3092
    %v3277 = vpack.c.b16 %v3095, %v3093
    %v3278 = vpack.c.b16 %v3098, %v3096
    %v3279 = vpack.c.b16 %v3099, %v3097
    %v3280 = vpack.c.b16 %v3102, %v3100
    %v3281 = vpack.c.b16 %v3103, %v3101
    %v3282 = vpack.c.b16 %v3106, %v3104
    %v3283 = vpack.c.b16 %v3107, %v3105
    %v3284 = vpack.c.b16 %v3110, %v3108
    %v3285 = vpack.c.b16 %v3111, %v3109
    %v3286 = vpack.c.b16 %v3114, %v3112
    %v3287 = vpack.c.b16 %v3115, %v3113
    %v3288 = vpack.c.b16 %v3118, %v3116
    %v3289 = vpack.c.b16 %v3119, %v3117
    %v3290 = vpack.c.b16 %v3122, %v3120
    %v3291 = vpack.c.b16 %v3123, %v3121
    %v3292 = vpack.c.b16 %v3126, %v3124
    %v3293 = vpack.c.b16 %v3127, %v3125
    %v3294 = vpack.c.b16 %v3130, %v3128
    %v3295 = vpack.c.b16 %v3131, %v3129
    %v3296 = vpack.c.b16 %v3134, %v3132
    %v3297 = vpack.c.b16 %v3135, %v3133
    %v3298 = vpack.c.b16 %v3138, %v3136
    %v3299 = vpack.c.b16 %v3139, %v3137
    %v3300 = vpack.c.b16 %v3142, %v3140
    %v3301 = vpack.c.b16 %v3143, %v3141
    %v3302 = vpack.c.b16 %v3146, %v3144
    %v3303 = vpack.c.b16 %v3147, %v3145
    %v3304 = vpack.c.b16 %v3150, %v3148
    %v3305 = vpack.c.b16 %v3151, %v3149
    %v3306 = vpack.c.b16 %v3154, %v3152
    %v3307 = vpack.c.b16 %v3155, %v3153
    %v3308 = vpack.c.b16 %v3158, %v3156
    %v3309 = vpack.c.b16 %v3159, %v3157
    %v3310 = vpack.c.b16 %v3162, %v3160
    %v3311 = vpack.c.b16 %v3163, %v3161
    %v3312 = vpack.c.b16 %v3166, %v3164
    %v3313 = vpack.c.b16 %v3167, %v3165
    %v3314 = vpack.c.b16 %v3170, %v3168
    %v3315 = vpack.c.b16 %v3171, %v3169
    %v3316 = vpack.c.b16 %v3174, %v3172
    %v3317 = vpack.c.b16 %v3175, %v3173
    %v3318 = vpack.c.b16 %v3178, %v3176
    %v3319 = vpack.c.b16 %v3179, %v3177
    %v3320 = vpack.c.b16 %v3182, %v3180
    %v3321 = vpack.c.b16 %v3183, %v3181
    %v3322 = vpack.c.b16 %v3186, %v3184
    %v3323 = vpack.c.b16 %v3187, %v3185
    %v3324 = vpack.c.b16 %v3190, %v3188
    %v3325 = vpack.c.b16 %v3191, %v3189
    %v3326 = vpack.c.b16 %v3194, %v3192
    %v3327 = vpack.c.b16 %v3195, %v3193
    %v3328 = vpack.c.b16 %v3198, %v3196
    %v3329 = vpack.c.b16 %v3199, %v3197
    %v3330 = vpack.c.b16 %v3202, %v3200
    %v3331 = vpack.c.b16 %v3203, %v3201
    %3460 = vmatprep.subr.bf16.mxu0 %v3205
    %3461 = vmatpush1.bf16.msra.mxu0 %v3204
    %3462 = vmatprep.subr.bf16.mxu0 %v3207
    %3463 = vmatpush1.bf16.msra.mxu0 %v3206
    %3464 = vmatprep.subr.bf16.mxu0 %v3209
    %3465 = vmatpush1.bf16.msra.mxu0 %v3208
    %3466 = vmatprep.subr.bf16.mxu0 %v3211
    %3467 = vmatpush1.bf16.msra.mxu0 %v3210
    %3468 = vmatprep.subr.bf16.mxu0 %v3213
    %3469 = vmatpush1.bf16.msra.mxu0 %v3212
    %3470 = vmatprep.subr.bf16.mxu0 %v3215
    %3471 = vmatpush1.bf16.msra.mxu0 %v3214
    %3472 = vmatprep.subr.bf16.mxu0 %v3217
    %3473 = vmatpush1.bf16.msra.mxu0 %v3216
    %3474 = vmatprep.subr.bf16.mxu0 %v3219
    %3475 = vmatpush1.bf16.msra.mxu0 %v3218
    %3476 = vmatprep.subr.bf16.mxu0 %v3221
    %3477 = vmatpush1.bf16.msra.mxu0 %v3220
    %3478 = vmatprep.subr.bf16.mxu0 %v3223
    %3479 = vmatpush1.bf16.msra.mxu0 %v3222
    %3480 = vmatprep.subr.bf16.mxu0 %v3225
    %3481 = vmatpush1.bf16.msra.mxu0 %v3224
    %3482 = vmatprep.subr.bf16.mxu0 %v3227
    %3483 = vmatpush1.bf16.msra.mxu0 %v3226
    %3484 = vmatprep.subr.bf16.mxu0 %v3229
    %3485 = vmatpush1.bf16.msra.mxu0 %v3228
    %3486 = vmatprep.subr.bf16.mxu0 %v3231
    %3487 = vmatpush1.bf16.msra.mxu0 %v3230
    %3488 = vmatprep.subr.bf16.mxu0 %v3233
    %3489 = vmatpush1.bf16.msra.mxu0 %v3232
    %3490 = vmatprep.subr.bf16.mxu0 %v3235
    %3491 = vmatpush1.bf16.msra.mxu0 %v3234
    %3492 = vmatprep.mubr.bf16.mxu0 %v2673
    %3493 = vmatmul.mubr.bf16.gmra.mrb[0].mxu0 %v2672
    %v3494 = vpop.f32.mrb[0].mxu0
    %v3495 = vadd.f32 %v2813, %v3494
    %v3496 = vpop.f32.mrb[0].mxu0
    %v3497 = vadd.f32 %v2817, %v3496
    %v3498 = vpop.f32.mrb[0].mxu0
    %v3499 = vadd.f32 %v2813, %v3498
    %v3500 = vpop.f32.mrb[0].mxu0
    %v3501 = vadd.f32 %v2817, %v3500
    %3502 = vdwg.mxu0
    %3503 = vmatprep.subr.bf16.mxu0 %v3237
    %3504 = vmatpush1.bf16.msra.mxu0 %v3236
    %3505 = vmatprep.subr.bf16.mxu0 %v3239
    %3506 = vmatpush1.bf16.msra.mxu0 %v3238
    %3507 = vmatprep.subr.bf16.mxu0 %v3241
    %3508 = vmatpush1.bf16.msra.mxu0 %v3240
    %3509 = vmatprep.subr.bf16.mxu0 %v3243
    %3510 = vmatpush1.bf16.msra.mxu0 %v3242
    %3511 = vmatprep.subr.bf16.mxu0 %v3245
    %3512 = vmatpush1.bf16.msra.mxu0 %v3244
    %3513 = vmatprep.subr.bf16.mxu0 %v3247
    %3514 = vmatpush1.bf16.msra.mxu0 %v3246
    %3515 = vmatprep.subr.bf16.mxu0 %v3249
    %3516 = vmatpush1.bf16.msra.mxu0 %v3248
    %3517 = vmatprep.subr.bf16.mxu0 %v3251
    %3518 = vmatpush1.bf16.msra.mxu0 %v3250
    %3519 = vmatprep.subr.bf16.mxu0 %v3253
    %3520 = vmatpush1.bf16.msra.mxu0 %v3252
    %3521 = vmatprep.subr.bf16.mxu0 %v3255
    %3522 = vmatpush1.bf16.msra.mxu0 %v3254
    %3523 = vmatprep.subr.bf16.mxu0 %v3257
    %3524 = vmatpush1.bf16.msra.mxu0 %v3256
    %3525 = vmatprep.subr.bf16.mxu0 %v3259
    %3526 = vmatpush1.bf16.msra.mxu0 %v3258
    %3527 = vmatprep.subr.bf16.mxu0 %v3261
    %3528 = vmatpush1.bf16.msra.mxu0 %v3260
    %3529 = vmatprep.subr.bf16.mxu0 %v3263
    %3530 = vmatpush1.bf16.msra.mxu0 %v3262
    %3531 = vmatprep.subr.bf16.mxu0 %v3265
    %3532 = vmatpush1.bf16.msra.mxu0 %v3264
    %3533 = vmatprep.subr.bf16.mxu0 %v3267
    %3534 = vmatpush1.bf16.msra.mxu0 %v3266
    %3535 = vmatprep.mubr.bf16.mxu0 %v2675
    %3536 = vmatmul.mubr.bf16.gmra.mrb[0].mxu0 %v2674
    %v3537 = vpop.f32.mrb[0].mxu0
    %v3538 = vadd.f32 %v3495, %v3537
    %v3539 = vpop.f32.mrb[0].mxu0
    %v3540 = vadd.f32 %v3497, %v3539
    %v3541 = vpop.f32.mrb[0].mxu0
    %v3542 = vadd.f32 %v3499, %v3541
    %v3543 = vpop.f32.mrb[0].mxu0
    %v3544 = vadd.f32 %v3501, %v3543
    %3545 = vdwg.mxu0
    %3546 = vmatprep.subr.bf16.mxu0 %v3269
    %3547 = vmatpush1.bf16.msra.mxu0 %v3268
    %3548 = vmatprep.subr.bf16.mxu0 %v3271
    %3549 = vmatpush1.bf16.msra.mxu0 %v3270
    %3550 = vmatprep.subr.bf16.mxu0 %v3273
    %3551 = vmatpush1.bf16.msra.mxu0 %v3272
    %3552 = vmatprep.subr.bf16.mxu0 %v3275
    %3553 = vmatpush1.bf16.msra.mxu0 %v3274
    %3554 = vmatprep.subr.bf16.mxu0 %v3277
    %3555 = vmatpush1.bf16.msra.mxu0 %v3276
    %3556 = vmatprep.subr.bf16.mxu0 %v3279
    %3557 = vmatpush1.bf16.msra.mxu0 %v3278
    %3558 = vmatprep.subr.bf16.mxu0 %v3281
    %3559 = vmatpush1.bf16.msra.mxu0 %v3280
    %3560 = vmatprep.subr.bf16.mxu0 %v3283
    %3561 = vmatpush1.bf16.msra.mxu0 %v3282
    %3562 = vmatprep.subr.bf16.mxu0 %v3285
    %3563 = vmatpush1.bf16.msra.mxu0 %v3284
    %3564 = vmatprep.subr.bf16.mxu0 %v3287
    %3565 = vmatpush1.bf16.msra.mxu0 %v3286
    %3566 = vmatprep.subr.bf16.mxu0 %v3289
    %3567 = vmatpush1.bf16.msra.mxu0 %v3288
    %3568 = vmatprep.subr.bf16.mxu0 %v3291
    %3569 = vmatpush1.bf16.msra.mxu0 %v3290
    %3570 = vmatprep.subr.bf16.mxu0 %v3293
    %3571 = vmatpush1.bf16.msra.mxu0 %v3292
    %3572 = vmatprep.subr.bf16.mxu0 %v3295
    %3573 = vmatpush1.bf16.msra.mxu0 %v3294
    %3574 = vmatprep.subr.bf16.mxu0 %v3297
    %3575 = vmatpush1.bf16.msra.mxu0 %v3296
    %3576 = vmatprep.subr.bf16.mxu0 %v3299
    %3577 = vmatpush1.bf16.msra.mxu0 %v3298
    %3578 = vmatprep.mubr.bf16.mxu0 %v2677
    %3579 = vmatmul.mubr.bf16.gmra.mrb[0].mxu0 %v2676
    %v3580 = vpop.f32.mrb[0].mxu0
    %v3581 = vadd.f32 %v3538, %v3580
    %v3582 = vpop.f32.mrb[0].mxu0
    %v3583 = vadd.f32 %v3540, %v3582
    %v3584 = vpop.f32.mrb[0].mxu0
    %v3585 = vadd.f32 %v3542, %v3584
    %v3586 = vpop.f32.mrb[0].mxu0
    %v3587 = vadd.f32 %v3544, %v3586
    %3588 = vdwg.mxu0
    %3589 = vmatprep.subr.bf16.mxu0 %v3301
    %3590 = vmatpush1.bf16.msra.mxu0 %v3300
    %3591 = vmatprep.subr.bf16.mxu0 %v3303
    %3592 = vmatpush1.bf16.msra.mxu0 %v3302
    %3593 = vmatprep.subr.bf16.mxu0 %v3305
    %3594 = vmatpush1.bf16.msra.mxu0 %v3304
    %3595 = vmatprep.subr.bf16.mxu0 %v3307
    %3596 = vmatpush1.bf16.msra.mxu0 %v3306
    %3597 = vmatprep.subr.bf16.mxu0 %v3309
    %3598 = vmatpush1.bf16.msra.mxu0 %v3308
    %3599 = vmatprep.subr.bf16.mxu0 %v3311
    %3600 = vmatpush1.bf16.msra.mxu0 %v3310
    %3601 = vmatprep.subr.bf16.mxu0 %v3313
    %3602 = vmatpush1.bf16.msra.mxu0 %v3312
    %3603 = vmatprep.subr.bf16.mxu0 %v3315
    %3604 = vmatpush1.bf16.msra.mxu0 %v3314
    %3605 = vmatprep.subr.bf16.mxu0 %v3317
    %3606 = vmatpush1.bf16.msra.mxu0 %v3316
    %3607 = vmatprep.subr.bf16.mxu0 %v3319
    %3608 = vmatpush1.bf16.msra.mxu0 %v3318
    %3609 = vmatprep.subr.bf16.mxu0 %v3321
    %3610 = vmatpush1.bf16.msra.mxu0 %v3320
    %3611 = vmatprep.subr.bf16.mxu0 %v3323
    %3612 = vmatpush1.bf16.msra.mxu0 %v3322
    %3613 = vmatprep.subr.bf16.mxu0 %v3325
    %3614 = vmatpush1.bf16.msra.mxu0 %v3324
    %3615 = vmatprep.subr.bf16.mxu0 %v3327
    %3616 = vmatpush1.bf16.msra.mxu0 %v3326
    %3617 = vmatprep.subr.bf16.mxu0 %v3329
    %3618 = vmatpush1.bf16.msra.mxu0 %v3328
    %3619 = vmatprep.subr.bf16.mxu0 %v3331
    %3620 = vmatpush1.bf16.msra.mxu0 %v3330
    %3621 = vmatprep.mubr.bf16.mxu0 %v2679
    %3622 = vmatmul.mubr.bf16.gmra.mrb[0].mxu0 %v2678
    %v3623 = vpop.f32.mrb[0].mxu0
    %v3624 = vadd.f32 %v3581, %v3623
    %v3625 = vpop.f32.mrb[0].mxu0
    %v3626 = vadd.f32 %v3583, %v3625
    %v3627 = vpop.f32.mrb[0].mxu0
    %v3628 = vadd.f32 %v3585, %v3627
    %v3629 = vpop.f32.mrb[0].mxu0
    %v3630 = vadd.f32 %v3587, %v3629
    %3631 = vdwg.mxu0
    %v3632 = vadd.f32 %v1668, %v3624
    %v3633 = vadd.f32 %v1669, %v3626
    %v3634 = vadd.f32 %v1670, %v3628
    %v3635 = vadd.f32 %v1671, %v3630
    %v3636 = vadd.f32 %v3632, %v3633
    %3637 = vadd.xlane.f32.xlu0 %v3636
    %v3638 = vpop.xlane.xlu0 %3637
    %v3639 = vadd.f32 %v3634, %v3635
    %3640 = vadd.xlane.f32.xlu0 %v3639
    %v3641 = vpop.xlane.xlu0 %3640
    %v3642 = vmul.f32 %v3638, %v1613
    %v3643 = vmul.f32 %v3641, %v1613
    %v3644 = vsub.f32 %v3632, %v3642
    %v3645 = vsub.f32 %v3633, %v3642
    %v3646 = vsub.f32 %v3634, %v3643
    %v3647 = vsub.f32 %v3635, %v3643
    %v3648 = vmul.f32 %v3644, %v3644
    %v3649 = vmul.f32 %v3645, %v3645
    %v3650 = vmul.f32 %v3646, %v3646
    %v3651 = vmul.f32 %v3647, %v3647
    %v3652 = vadd.f32 %v3648, %v3649
    %3653 = vadd.xlane.f32.xlu0 %v3652
    %v3654 = vpop.xlane.xlu0 %3653
    %v3655 = vadd.f32 %v3650, %v3651
    %3656 = vadd.xlane.f32.xlu0 %v3655
    %v3657 = vpop.xlane.xlu0 %3656
    %v3658 = vmul.f32 %v3654, %v1613
    %v3659 = vmul.f32 %v3657, %v1613
    %v3660 = vadd.f32 %v3658, 1e-05
    %v3661 = vadd.f32 %v3659, 1e-05
    %v3662 = vrsqrt.pop %v3660
    %v3663 = vrsqrt.pop %v3661
    %v3664 = vmul.f32 %v3644, %v3662
    %v3665 = vmul.f32 %v3645, %v3662
    %v3666 = vmul.f32 %v3646, %v3663
    %v3667 = vmul.f32 %v3647, %v3663
    %v3668 = vld [vmem:[%s15] sm:$0x3]
    %v3670 = vlaneseq
    %v3671 = vshrl.u32 %v3670, 7
    %v3672 = vsub.s32 0, %v3671
    %v3673 = vrot.slane %v3668, %v3672
    %v3674 = vlaneseq
    %v3675 = vshrl.u32 %v3674, 7
    %v3676 = vsub.s32 1, %v3675
    %v3677 = vrot.slane %v3668, %v3676
    %v3680 = vmul.f32 %v3664, %v3673
    %v3681 = vmul.f32 %v3665, %v3677
    %v3682 = vmul.f32 %v3666, %v3673
    %v3683 = vmul.f32 %v3667, %v3677
    %v3684 = vld [vmem:[%s16] sm:$0x3]
    %v3686 = vlaneseq
    %v3687 = vshrl.u32 %v3686, 7
    %v3688 = vsub.s32 0, %v3687
    %v3689 = vrot.slane %v3684, %v3688
    %v3690 = vlaneseq
    %v3691 = vshrl.u32 %v3690, 7
    %v3692 = vsub.s32 1, %v3691
    %v3693 = vrot.slane %v3684, %v3692
    %v3696 = vadd.f32 %v3680, %v3689
    %v3697 = vadd.f32 %v3681, %v3693
    %v3698 = vadd.f32 %v3682, %v3689
    %v3699 = vadd.f32 %v3683, %v3693
    %3700 = vst [vmem:[#allocation17] sm:$0xff] %v3696
    %3701 = vst [vmem:[#allocation17 + $0x8] sm:$0xff] %v3697
    %3702 = vst [vmem:[#allocation17 + $0x10] sm:$0xff] %v3698
    %3703 = vst [vmem:[#allocation17 + $0x18] sm:$0xff] %v3699
    // Predicated region
    $region102: #{tpu_custom_call.1} parent=1 // pred_check
      _
    $region103: #{tpu_custom_call.1} parent=1 // pred_check_branch
      %3705 = sbr.rel (0) target = $region105
    $region104: #{tpu_custom_call.1} parent=1 // pred_region
      %s3707 = ssub.s32 512, 512
      %3708 = vsyncadd [#allocation5], %s3707
      %s3709 = sshll.u32 [#allocation17], 4
      %s3710 = int_to_ptr.vmem [resolvable:$true] %s3709
      %3715 = dma.vmem_to_hbm [thread:$0]  %s3710, 512, %s17, [#allocation5], 256, 256, 16
    $region105: #{tpu_custom_call.1} parent=1 // pred_fallthru
      _
    // Predicated region
    $region106: #{tpu_custom_call.1} parent=1 // pred_check
      _
    $region107: #{tpu_custom_call.1} parent=1 // pred_check_branch
      %3717 = sbr.rel (0) target = $region109
    $region108: #{tpu_custom_call.1} parent=1 // pred_region
      %3718 = dma.done [#allocation5], 512
    $region109: #{tpu_custom_call.1} parent=1 // pred_fallthru
      _
    %3719 = vsyncpa [#allocation4], 1
    %3720 = vsyncpa [#allocation7], 1
    %3721 = vsyncpa [#allocation10], 1
    %3722 = vsyncpa [#allocation13], 1
    %3723 = vsyncpa [#allocation16], 1
    %3724 = vsyncpa [#allocation5], 1

</llo_original>
